<compile_context>
chip_gen: v5e
topology: v5e:2x2
jax: 0.10.0
libtpu: 0.0.40
codegen_flags: <defaults>
</compile_context>

<pallas_src>
import jax
import jax.numpy as jnp
from jax import lax
from jax.experimental import pallas as pl
from jax.experimental.pallas import tpu as pltpu

NUM_TITLE = 1664          # multiple of 128
NUM_RELEASE = 241
NUM_GENRE = 19
EMB_DIM = 10
VOCAB_PAD = 1920          # 1664 + 256 (release padded); multiple of 128

_HIGHEST = jax.lax.Precision.HIGHEST


def _round_up(x, m):
    return (x + m - 1) // m * m


def _item_kernel(xg_ref,    # (TM, 19) f32   genre multi-hot tile
                 idx_ref,   # (TM, 2)  i32   [title_idx, NUM_TITLE + release_idx]
                 wg_ref,    # (19, 10) f32   genre Linear W^T, pre-scaled by gw/(gw+tw+rw)
                 tab_ref,   # (1920, 10) f32 [title_table*tw_n ; release_table*rw_n ; 0-pad]
                 out_ref):  # (TM, 10) f32
    tm = xg_ref.shape[0]

    # Genre Linear(19 -> 10, bias=False), normalized by the multi-hot row sum.
    # wg_ref is already scaled by the normalized genre mix weight.
    xg = xg_ref[...]                                            # (TM, 19)
    gsum = jnp.sum(xg, axis=1, keepdims=True)                   # (TM, 1)
    genre = jnp.dot(xg, wg_ref[...], precision=_HIGHEST,
                    preferred_element_type=jnp.float32) / gsum  # (TM, 10)

    # Title + release gathers fused into a single "two-hot" MXU matmul against
    # the pre-scaled concatenated table (tables are VMEM-resident).
    idx = idx_ref[...]                                          # (TM, 2) int32
    iota = lax.broadcasted_iota(jnp.int32, (tm, VOCAB_PAD), 1)  # (TM, 1920)
    twohot = ((iota == idx[:, 0:1]) | (iota == idx[:, 1:2])).astype(jnp.float32)
    gathered = jnp.dot(twohot, tab_ref[...], precision=_HIGHEST,
                       preferred_element_type=jnp.float32)      # (TM, 10)

    out_ref[...] = genre + gathered


def _item_100k_forward(x, w_genre, title_table, release_table,
                       genre_weight, title_weight, release_weight):
    """x: (B, 27) int32.  Returns (B, 10) float32."""
    B = x.shape[0]
    TM = min(256, _round_up(max(B, 1), 8))       # rows per grid step
    B_pad = _round_up(B, TM)

    # Plain-JAX glue: slicing, casts, padding, weight normalization / fusion.
    x_genre = x[:, 8:].astype(jnp.float32)                       # (B, 19)
    title_idx = x[:, 6].astype(jnp.int32)                        # (B,)
    rel_idx = x[:, 7].astype(jnp.int32) + NUM_TITLE              # offset into fused table
    idx = jnp.stack([title_idx, rel_idx], axis=1)                # (B, 2)
    if B_pad != B:
        pad = B_pad - B
        # Pad genre rows with 1s so padded (discarded) rows don't produce 0/0.
        x_genre = jnp.pad(x_genre, ((0, pad), (0, 0)), constant_values=1.0)
        idx = jnp.pad(idx, ((0, pad), (0, 0)))                   # index 0 -> harmless gather

    total_w = genre_weight + title_weight + release_weight       # (10,)
    gw_n = genre_weight / total_w
    tw_n = title_weight / total_w
    rw_n = release_weight / total_w
    wg_scaled = w_genre.T * gw_n[None, :]                        # (19, 10)
    tab = jnp.concatenate(
        [title_table * tw_n[None, :],
         release_table * rw_n[None, :],
         jnp.zeros((VOCAB_PAD - NUM_TITLE - NUM_RELEASE, EMB_DIM), jnp.float32)],
        axis=0)                                                  # (1920, 10)

    grid_spec = pl.GridSpec(
        grid=(B_pad // TM,),
        in_specs=[
            pl.BlockSpec((TM, NUM_GENRE), lambda i: (i, 0)),       # genre multi-hot tile
            pl.BlockSpec((TM, 2), lambda i: (i, 0)),               # fused indices
            pl.BlockSpec((NUM_GENRE, EMB_DIM), lambda i: (0, 0)),  # scaled genre W^T (resident)
            pl.BlockSpec((VOCAB_PAD, EMB_DIM), lambda i: (0, 0)),  # fused scaled table (resident)
        ],
        out_specs=pl.BlockSpec((TM, EMB_DIM), lambda i: (i, 0)),
    )

    out = pl.pallas_call(
        _item_kernel,
        out_shape=jax.ShapeDtypeStruct((B_pad, EMB_DIM), jnp.float32),
        grid_spec=grid_spec,
        compiler_params=pltpu.CompilerParams(
            dimension_semantics=("parallel",)),                  # shard batch tiles across TCs
    )(x_genre, idx, wg_scaled, tab)

    return out[:B]


item_100k_forward = jax.jit(_item_100k_forward)


def _reference(x, w_genre, title_table, release_table, gw, tw, rw):
    xg = x[:, 8:].astype(jnp.float32)
    genre_emb = jnp.dot(xg, w_genre.T, precision=_HIGHEST) \
        / jnp.sum(xg, axis=1, keepdims=True)
    title_emb = title_table[x[:, 6]]
    rel_emb = release_table[x[:, 7]]
    total = gw + tw + rw
    return (genre_emb * gw + title_emb * tw + rel_emb * rw) / total


if __name__ == "__main__":
    key = jax.random.PRNGKey(0)
    k_w, k_tt, k_rt, k_t, k_r, k_g = jax.random.split(key, 6)

    # Deterministic parameter init (shapes from the module __init__).
    w_genre = jax.random.normal(k_w, (EMB_DIM, NUM_GENRE), jnp.float32) * 0.1
    title_table = jax.random.normal(k_tt, (NUM_TITLE, EMB_DIM), jnp.float32)
    release_table = jax.random.normal(k_rt, (NUM_RELEASE, EMB_DIM), jnp.float32)
    genre_weight = jnp.ones((EMB_DIM,), jnp.float32)
    title_weight = jnp.ones((EMB_DIM,), jnp.float32)
    release_weight = jnp.ones((EMB_DIM,), jnp.float32)

    # Small deterministic input batch: (B, 27) int32.
    B = 8
    title_idx = jax.random.randint(k_t, (B,), 0, NUM_TITLE, jnp.int32)
    rel_idx = jax.random.randint(k_r, (B,), 0, NUM_RELEASE, jnp.int32)
    genre_hot = jax.random.bernoulli(k_g, 0.3, (B, NUM_GENRE)).astype(jnp.int32)
    genre_hot = genre_hot.at[:, 0].set(1)  # ensure nonzero genre sum per row
    misc = jnp.zeros((B, 6), jnp.int32)
    x = jnp.concatenate(
        [misc, title_idx[:, None], rel_idx[:, None], genre_hot], axis=1)

    out = item_100k_forward(x, w_genre, title_table, release_table,
                            genre_weight, title_weight, release_weight)
    out = jax.block_until_ready(out)

    ref = _reference(x, w_genre, title_table, release_table,
                     genre_weight.reshape(1, -1),
                     title_weight.reshape(1, -1),
                     release_weight.reshape(1, -1))
    assert out.shape == (B, EMB_DIM) and out.dtype == jnp.float32
    assert jnp.allclose(out, ref, atol=1e-5, rtol=1e-5), "mismatch vs reference"

    print("KERNEL_OK")
</pallas_src>

<mosaic_0001>
module attributes {stable_mosaic.version = 11 : i64} {
  func.func @_item_kernel(%arg0: i32, %arg1: memref<8x19xf32, #tpu.memory_space<vmem>>, %arg2: memref<8x2xi32, #tpu.memory_space<vmem>>, %arg3: memref<19x10xf32, #tpu.memory_space<vmem>>, %arg4: memref<1920x10xf32, #tpu.memory_space<vmem>>, %arg5: memref<8x10xf32, #tpu.memory_space<vmem>>) attributes {dimension_semantics = [#tpu.dimension_semantics<parallel>], iteration_bounds = array<i64: 1>, scalar_prefetch = 0 : i64, scratch_operands = 0 : i64, tpu.core_type = #tpu.core_type<tc>, window_params = [{transform_indices = @transform_0, window_bounds = array<i64: 8, 19>}, {transform_indices = @transform_1, window_bounds = array<i64: 8, 2>}, {pipeline_mode = #tpu.pipeline_mode<synchronous>, transform_indices = @transform_2, window_bounds = array<i64: 19, 10>}, {pipeline_mode = #tpu.pipeline_mode<synchronous>, transform_indices = @transform_3, window_bounds = array<i64: 1920, 10>}, {transform_indices = @transform_4, window_bounds = array<i64: 8, 10>}]} {
    %c0 = arith.constant 0 : index
    %c0_0 = arith.constant 0 : index
    %0 = vector.load %arg1[%c0, %c0_0] : memref<8x19xf32, #tpu.memory_space<vmem>>, vector<8x19xf32>
    %cst = arith.constant dense<0.000000e+00> : vector<8xf32>
    %1 = vector.multi_reduction <add>, %0, %cst [1] : vector<8x19xf32> to vector<8xf32>
    %2 = vector.shape_cast %1 : vector<8xf32> to vector<8x1xf32>
    %c0_1 = arith.constant 0 : index
    %c0_2 = arith.constant 0 : index
    %3 = vector.load %arg3[%c0_1, %c0_2] : memref<19x10xf32, #tpu.memory_space<vmem>>, vector<19x10xf32>
    %cst_3 = arith.constant dense<0.000000e+00> : vector<8x10xf32>
    %4 = tpu.matmul %0, %3, %cst_3 {dimension_numbers = #tpu.dot_dimension_numbers<[1], [0], [0], [1], [0, 0, 1, 1], [], []>, precision = #tpu.contract_precision<fp32>} : vector<8x19xf32>, vector<19x10xf32>, vector<8x10xf32> -> vector<8x10xf32>
    %5 = vector.broadcast %2 : vector<8x1xf32> to vector<8x10xf32>
    %6 = arith.divf %4, %5 : vector<8x10xf32>
    %c0_4 = arith.constant 0 : index
    %c0_5 = arith.constant 0 : index
    %7 = vector.load %arg2[%c0_4, %c0_5] : memref<8x2xi32, #tpu.memory_space<vmem>>, vector<8x2xi32>
    %8 = tpu.iota {dimensions = array<i32: 1>} : vector<8x1920xi32>
    %9 = vector.extract_strided_slice %7 {offsets = [0, 0], sizes = [8, 1], strides = [1, 1]} : vector<8x2xi32> to vector<8x1xi32>
    %10 = vector.broadcast %9 : vector<8x1xi32> to vector<8x1920xi32>
    %11 = arith.cmpi eq, %8, %10 : vector<8x1920xi32>
    %12 = vector.extract_strided_slice %7 {offsets = [0, 1], sizes = [8, 1], strides = [1, 1]} : vector<8x2xi32> to vector<8x1xi32>
    %13 = vector.broadcast %12 : vector<8x1xi32> to vector<8x1920xi32>
    %14 = arith.cmpi eq, %8, %13 : vector<8x1920xi32>
    %15 = arith.ori %11, %14 : vector<8x1920xi1>
    %16 = arith.extui %15 : vector<8x1920xi1> to vector<8x1920xi32>
    %17 = arith.sitofp %16 : vector<8x1920xi32> to vector<8x1920xf32>
    %c0_6 = arith.constant 0 : index
    %c0_7 = arith.constant 0 : index
    %18 = vector.load %arg4[%c0_6, %c0_7] : memref<1920x10xf32, #tpu.memory_space<vmem>>, vector<1920x10xf32>
    %cst_8 = arith.constant dense<0.000000e+00> : vector<8x10xf32>
    %19 = tpu.matmul %17, %18, %cst_8 {dimension_numbers = #tpu.dot_dimension_numbers<[1], [0], [0], [1], [0, 0, 1, 1], [], []>, precision = #tpu.contract_precision<fp32>} : vector<8x1920xf32>, vector<1920x10xf32>, vector<8x10xf32> -> vector<8x10xf32>
    %20 = arith.addf %6, %19 : vector<8x10xf32>
    %c0_9 = arith.constant 0 : index
    %c0_10 = arith.constant 0 : index
    %21 = vector.load %arg5[%c0_9, %c0_10] : memref<8x10xf32, #tpu.memory_space<vmem>>, vector<8x10xf32>
    tpu.vector_store %arg5[%c0_9, %c0_10], %20 {strides = array<i32>} : memref<8x10xf32, #tpu.memory_space<vmem>>, vector<8x10xf32>,
    return
  }
  func.func @transform_0(%arg0: i32) -> (i32, i32) {
    %c0_i32 = arith.constant 0 : i32
    %c0_i32_0 = arith.constant 0 : i32
    return %arg0, %c0_i32 : i32, i32
  }
  func.func @transform_1(%arg0: i32) -> (i32, i32) {
    %c0_i32 = arith.constant 0 : i32
    %c0_i32_0 = arith.constant 0 : i32
    return %arg0, %c0_i32 : i32, i32
  }
  func.func @transform_2(%arg0: i32) -> (i32, i32) {
    %c0_i32 = arith.constant 0 : i32
    %c0_i32_0 = arith.constant 0 : i32
    %c0_i32_1 = arith.constant 0 : i32
    return %c0_i32, %c0_i32_0 : i32, i32
  }
  func.func @transform_3(%arg0: i32) -> (i32, i32) {
    %c0_i32 = arith.constant 0 : i32
    %c0_i32_0 = arith.constant 0 : i32
    %c0_i32_1 = arith.constant 0 : i32
    return %c0_i32, %c0_i32_0 : i32, i32
  }
  func.func @transform_4(%arg0: i32) -> (i32, i32) {
    %c0_i32 = arith.constant 0 : i32
    %c0_i32_0 = arith.constant 0 : i32
    return %arg0, %c0_i32 : i32, i32
  }
}

</mosaic_0001>

<llo_original>
// kernel: _item_100k_forward.1
$region0: #{_item_100k_forward.1}
  #allocation0 [shape = 'u32[]', space=smem, size = 0x4, offset = 0x4, fixed_abs, tag = 'smem constant byte address 0x4 - core index']
  #allocation1 [shape = 'u32[72,128]{1,0:T(1,128)}', space=vmem, size = 0x9000, scoped, tag = 'internal scratch']
  %s0 = inlined_call_operand.vmem [shape: f32[8,19], index: 0, kind: input, shape index: {}]
  %s1 = inlined_call_operand.vmem [shape: s32[8,2], index: 1, kind: input, shape index: {}]
  %s2 = inlined_call_operand.vmem [shape: f32[19,10], index: 2, kind: input, shape index: {}]
  %s3 = inlined_call_operand.vmem [shape: f32[1920,10], index: 3, kind: input, shape index: {}]
  %s4 = inlined_call_operand.hbm [shape: f32[8,10], index: 4, kind: output, shape index: {}]
  %s5 = sld [smem:[#allocation0]]
  $region26: #{_item_100k_forward.1} parent=0
    _
  %s7 = ssub.s32 1, %s5
  %s8 = scalar_select 0, %s7, %s5
  $region1: #{_item_100k_forward.1} parent=0
    #allocation2 [shape = 'u8[4096]{0}', space=vmem, size = 0x1000, scoped, tag = 'output window, operand 0, single buffered']
    #allocation3 [shape = 's32[1]{0}', space=sflag, size = 0x4, scoped, tag = 'scoped memory for _item_100k_forward.1']
    %9 = vsyncpa [#allocation3], 0
    // Predicated region
    $region2: #{_item_100k_forward.1} parent=1 // pred_check
      _
    $region3: #{_item_100k_forward.1} parent=1 // pred_check_branch
      %11 = sbr.rel (0) target = $region5
    $region4: #{_item_100k_forward.1} parent=1 // pred_region
      _
    $region5: #{_item_100k_forward.1} parent=1 // pred_fallthru
      _
    // Predicated region
    $region6: #{_item_100k_forward.1} parent=1 // pred_check
      _
    $region7: #{_item_100k_forward.1} parent=1 // pred_check_branch
      %13 = sbr.rel (0) target = $region9
    $region8: #{_item_100k_forward.1} parent=1 // pred_region
      _
    $region9: #{_item_100k_forward.1} parent=1 // pred_fallthru
      _
    // Predicated region
    $region10: #{_item_100k_forward.1} parent=1 // pred_check
      _
    $region11: #{_item_100k_forward.1} parent=1 // pred_check_branch
      %15 = sbr.rel (0) target = $region13
    $region12: #{_item_100k_forward.1} parent=1 // pred_region
      _
    $region13: #{_item_100k_forward.1} parent=1 // pred_fallthru
      _
    // Predicated region
    $region14: #{_item_100k_forward.1} parent=1 // pred_check
      _
    $region15: #{_item_100k_forward.1} parent=1 // pred_check_branch
      %17 = sbr.rel (0) target = $region17
    $region16: #{_item_100k_forward.1} parent=1 // pred_region
      _
    $region17: #{_item_100k_forward.1} parent=1 // pred_fallthru
      _
    %v18 = vld [vmem:[%s0] sm:$0xff]
    %vm19 = vcmask 154624
    %v20 = vsel %vm19, %v18, 0.0
    %21 = vadd.xlane.f32.xlu0 %v20
    %v22 = vpop.xlane.xlu0 %21
    %v23 = vld [vmem:[%s2] sm:$0xff]
    %v24 = vld [vmem:[%s2 + $0x8] sm:$0xff]
    %v25 = vld [vmem:[%s2 + $0x10] sm:$0x7]
    %v27 = vsel %vm19, %v18, 0
    %vm29 = vcmask 1042432
    %v31 = vsel %vm29, %v25, 0
    %33 = vmatpush.msra.mxu0 0.0
    %34 = vmatpush.msra.mxu0 0.0
    %35 = vmatpush.msra.mxu0 0.0
    %36 = vmatpush.msra.mxu0 0.0
    %37 = vmatpush.msra.mxu0 0.0
    %38 = vmatpush.msra.mxu0 0.0
    %39 = vmatpush.msra.mxu0 0.0
    %40 = vmatpush.msra.mxu0 0.0
    %41 = vmatpush.msra.mxu0 0.0
    %42 = vmatpush.msra.mxu0 0.0
    %43 = vmatpush.msra.mxu0 0.0
    %44 = vmatpush.msra.mxu0 0.0
    %45 = vmatpush.msra.mxu0 0.0
    %v46 = vand.u32 %v31, 4294901760
    %47 = vmatpush.msra.mxu0 %v46
    %v48 = vand.u32 %v24, 4294901760
    %49 = vmatpush.msra.mxu0 %v48
    %v50 = vand.u32 %v23, 4294901760
    %51 = vmatpush.msra.mxu0 %v50
    %v52 = vand.u32 %v27, 4294901760
    %v53 = vsub.f32 %v27, %v52
    %v54 = vand.u32 %v53, 4294901760
    %v55 = vsub.f32 %v53, %v54
    %v56 = vand.u32 %v55, 4294901760
    %57 = vmatmul.f32.gmra.mxu0 %v56
    %v58 = vpop.f32.mrf.mxu0
    %v59 = vadd.f32 0.0, %v58
    %60 = vdwg.mxu0
    %61 = vmatpush.msra.mxu0 0.0
    %62 = vmatpush.msra.mxu0 0.0
    %63 = vmatpush.msra.mxu0 0.0
    %64 = vmatpush.msra.mxu0 0.0
    %65 = vmatpush.msra.mxu0 0.0
    %66 = vmatpush.msra.mxu0 0.0
    %67 = vmatpush.msra.mxu0 0.0
    %68 = vmatpush.msra.mxu0 0.0
    %69 = vmatpush.msra.mxu0 0.0
    %70 = vmatpush.msra.mxu0 0.0
    %71 = vmatpush.msra.mxu0 0.0
    %72 = vmatpush.msra.mxu0 0.0
    %73 = vmatpush.msra.mxu0 0.0
    %v74 = vand.u32 %v31, 4294901760
    %v75 = vsub.f32 %v31, %v74
    %v76 = vand.u32 %v75, 4294901760
    %v77 = vsub.f32 %v75, %v76
    %v78 = vand.u32 %v77, 4294901760
    %79 = vmatpush.msra.mxu0 %v78
    %v80 = vand.u32 %v24, 4294901760
    %v81 = vsub.f32 %v24, %v80
    %v82 = vand.u32 %v81, 4294901760
    %v83 = vsub.f32 %v81, %v82
    %v84 = vand.u32 %v83, 4294901760
    %85 = vmatpush.msra.mxu0 %v84
    %v86 = vand.u32 %v23, 4294901760
    %v87 = vsub.f32 %v23, %v86
    %v88 = vand.u32 %v87, 4294901760
    %v89 = vsub.f32 %v87, %v88
    %v90 = vand.u32 %v89, 4294901760
    %91 = vmatpush.msra.mxu0 %v90
    %v92 = vand.u32 %v27, 4294901760
    %93 = vmatmul.f32.gmra.mxu0 %v92
    %v94 = vpop.f32.mrf.mxu0
    %v95 = vadd.f32 %v59, %v94
    %96 = vdwg.mxu0
    %97 = vmatpush.msra.mxu0 0.0
    %98 = vmatpush.msra.mxu0 0.0
    %99 = vmatpush.msra.mxu0 0.0
    %100 = vmatpush.msra.mxu0 0.0
    %101 = vmatpush.msra.mxu0 0.0
    %102 = vmatpush.msra.mxu0 0.0
    %103 = vmatpush.msra.mxu0 0.0
    %104 = vmatpush.msra.mxu0 0.0
    %105 = vmatpush.msra.mxu0 0.0
    %106 = vmatpush.msra.mxu0 0.0
    %107 = vmatpush.msra.mxu0 0.0
    %108 = vmatpush.msra.mxu0 0.0
    %109 = vmatpush.msra.mxu0 0.0
    %v110 = vand.u32 %v31, 4294901760
    %v111 = vsub.f32 %v31, %v110
    %112 = vmatpush.msra.mxu0 %v111
    %v113 = vand.u32 %v24, 4294901760
    %v114 = vsub.f32 %v24, %v113
    %115 = vmatpush.msra.mxu0 %v114
    %v116 = vand.u32 %v23, 4294901760
    %v117 = vsub.f32 %v23, %v116
    %118 = vmatpush.msra.mxu0 %v117
    %v119 = vand.u32 %v27, 4294901760
    %v120 = vsub.f32 %v27, %v119
    %121 = vmatmul.f32.gmra.mxu0 %v120
    %v122 = vpop.f32.mrf.mxu0
    %v123 = vadd.f32 %v95, %v122
    %124 = vdwg.mxu0
    %125 = vmatpush.msra.mxu0 0.0
    %126 = vmatpush.msra.mxu0 0.0
    %127 = vmatpush.msra.mxu0 0.0
    %128 = vmatpush.msra.mxu0 0.0
    %129 = vmatpush.msra.mxu0 0.0
    %130 = vmatpush.msra.mxu0 0.0
    %131 = vmatpush.msra.mxu0 0.0
    %132 = vmatpush.msra.mxu0 0.0
    %133 = vmatpush.msra.mxu0 0.0
    %134 = vmatpush.msra.mxu0 0.0
    %135 = vmatpush.msra.mxu0 0.0
    %136 = vmatpush.msra.mxu0 0.0
    %137 = vmatpush.msra.mxu0 0.0
    %v138 = vand.u32 %v31, 4294901760
    %139 = vmatpush.msra.mxu0 %v138
    %v140 = vand.u32 %v24, 4294901760
    %141 = vmatpush.msra.mxu0 %v140
    %v142 = vand.u32 %v23, 4294901760
    %143 = vmatpush.msra.mxu0 %v142
    %v144 = vand.u32 %v27, 4294901760
    %v145 = vsub.f32 %v27, %v144
    %v146 = vand.u32 %v145, 4294901760
    %147 = vmatmul.f32.gmra.mxu0 %v146
    %v148 = vpop.f32.mrf.mxu0
    %v149 = vadd.f32 %v123, %v148
    %150 = vdwg.mxu0
    %151 = vmatpush.msra.mxu0 0.0
    %152 = vmatpush.msra.mxu0 0.0
    %153 = vmatpush.msra.mxu0 0.0
    %154 = vmatpush.msra.mxu0 0.0
    %155 = vmatpush.msra.mxu0 0.0
    %156 = vmatpush.msra.mxu0 0.0
    %157 = vmatpush.msra.mxu0 0.0
    %158 = vmatpush.msra.mxu0 0.0
    %159 = vmatpush.msra.mxu0 0.0
    %160 = vmatpush.msra.mxu0 0.0
    %161 = vmatpush.msra.mxu0 0.0
    %162 = vmatpush.msra.mxu0 0.0
    %163 = vmatpush.msra.mxu0 0.0
    %v164 = vand.u32 %v31, 4294901760
    %v165 = vsub.f32 %v31, %v164
    %v166 = vand.u32 %v165, 4294901760
    %167 = vmatpush.msra.mxu0 %v166
    %v168 = vand.u32 %v24, 4294901760
    %v169 = vsub.f32 %v24, %v168
    %v170 = vand.u32 %v169, 4294901760
    %171 = vmatpush.msra.mxu0 %v170
    %v172 = vand.u32 %v23, 4294901760
    %v173 = vsub.f32 %v23, %v172
    %v174 = vand.u32 %v173, 4294901760
    %175 = vmatpush.msra.mxu0 %v174
    %v176 = vand.u32 %v27, 4294901760
    %177 = vmatmul.f32.gmra.mxu0 %v176
    %v178 = vpop.f32.mrf.mxu0
    %v179 = vadd.f32 %v149, %v178
    %180 = vdwg.mxu0
    %181 = vmatpush.msra.mxu0 0.0
    %182 = vmatpush.msra.mxu0 0.0
    %183 = vmatpush.msra.mxu0 0.0
    %184 = vmatpush.msra.mxu0 0.0
    %185 = vmatpush.msra.mxu0 0.0
    %186 = vmatpush.msra.mxu0 0.0
    %187 = vmatpush.msra.mxu0 0.0
    %188 = vmatpush.msra.mxu0 0.0
    %189 = vmatpush.msra.mxu0 0.0
    %190 = vmatpush.msra.mxu0 0.0
    %191 = vmatpush.msra.mxu0 0.0
    %192 = vmatpush.msra.mxu0 0.0
    %193 = vmatpush.msra.mxu0 0.0
    %v194 = vand.u32 %v31, 4294901760
    %195 = vmatpush.msra.mxu0 %v194
    %v196 = vand.u32 %v24, 4294901760
    %197 = vmatpush.msra.mxu0 %v196
    %v198 = vand.u32 %v23, 4294901760
    %199 = vmatpush.msra.mxu0 %v198
    %v200 = vand.u32 %v27, 4294901760
    %201 = vmatmul.f32.gmra.mxu0 %v200
    %v202 = vpop.f32.mrf.mxu0
    %v203 = vadd.f32 %v179, %v202
    %204 = vdwg.mxu0
    %v205 = vrcp.pop %v22
    %v206 = vmul.f32 %v22, %v205
    %v207 = vsub.f32 1.0, %v206
    %v208 = vmul.f32 %v205, %v207
    %v209 = vadd.f32 %v205, %v208
    %vm210 = vweird.f32 %v22
    %vm211 = vweird.f32 %v205
    %vm212 = vmor %vm210, %vm211
    %v213 = vsel %vm212, %v205, %v209
    %v214 = vand.u32 2147483647, %v22
    %vm215 = vcmp.eq.f32.partialorder %v214, 8.507059e+37
    %v216 = vand.u32 %v22, 2147483648
    %v217 = vor.u32 1.1754944e-38, %v216
    %v218 = vsel %vm215, %v217, %v213
    %v219 = vmul.f32 %v203, %v218
    %v220 = vld [vmem:[%s1] sm:$0xff]
    %v221 = vlaneseq
    %v222 = vand.u32 %v221, 127
    %v223 = vadd.s32 %v222, 128
    %v224 = vadd.s32 %v222, 256
    %v225 = vadd.s32 %v222, 384
    %v226 = vadd.s32 %v222, 512
    %v227 = vadd.s32 %v222, 640
    %v228 = vadd.s32 %v222, 768
    %v229 = vadd.s32 %v222, 896
    %v230 = vadd.s32 %v222, 1024
    %v231 = vadd.s32 %v222, 1152
    %v232 = vadd.s32 %v222, 1280
    %v233 = vadd.s32 %v222, 1408
    %v234 = vadd.s32 %v222, 1536
    %v235 = vadd.s32 %v222, 1664
    %v236 = vadd.s32 %v222, 1792
    %237 = vset.pattern.permute.xlu0 0
    %238 = vperm.xlu0 %237, %v220
    %v239 = vpop.permute.xlu0 %238
    %vm240 = vcmp.eq.s32.totalorder %v222, %v239
    %vm241 = vcmp.eq.s32.totalorder %v223, %v239
    %vm242 = vcmp.eq.s32.totalorder %v224, %v239
    %vm243 = vcmp.eq.s32.totalorder %v225, %v239
    %vm244 = vcmp.eq.s32.totalorder %v226, %v239
    %vm245 = vcmp.eq.s32.totalorder %v227, %v239
    %vm246 = vcmp.eq.s32.totalorder %v228, %v239
    %vm247 = vcmp.eq.s32.totalorder %v229, %v239
    %vm248 = vcmp.eq.s32.totalorder %v230, %v239
    %vm249 = vcmp.eq.s32.totalorder %v231, %v239
    %vm250 = vcmp.eq.s32.totalorder %v232, %v239
    %vm251 = vcmp.eq.s32.totalorder %v233, %v239
    %vm252 = vcmp.eq.s32.totalorder %v234, %v239
    %vm253 = vcmp.eq.s32.totalorder %v235, %v239
    %vm254 = vcmp.eq.s32.totalorder %v236, %v239
    %255 = vset.pattern.permute.xlu0 1
    %256 = vperm.xlu0 %255, %v220
    %v257 = vpop.permute.xlu0 %256
    %vm258 = vcmp.eq.s32.totalorder %v222, %v257
    %vm259 = vcmp.eq.s32.totalorder %v223, %v257
    %vm260 = vcmp.eq.s32.totalorder %v224, %v257
    %vm261 = vcmp.eq.s32.totalorder %v225, %v257
    %vm262 = vcmp.eq.s32.totalorder %v226, %v257
    %vm263 = vcmp.eq.s32.totalorder %v227, %v257
    %vm264 = vcmp.eq.s32.totalorder %v228, %v257
    %vm265 = vcmp.eq.s32.totalorder %v229, %v257
    %vm266 = vcmp.eq.s32.totalorder %v230, %v257
    %vm267 = vcmp.eq.s32.totalorder %v231, %v257
    %vm268 = vcmp.eq.s32.totalorder %v232, %v257
    %vm269 = vcmp.eq.s32.totalorder %v233, %v257
    %vm270 = vcmp.eq.s32.totalorder %v234, %v257
    %vm271 = vcmp.eq.s32.totalorder %v235, %v257
    %vm272 = vcmp.eq.s32.totalorder %v236, %v257
    %vm273 = vmor %vm240, %vm258
    %vm274 = vmor %vm241, %vm259
    %vm275 = vmor %vm242, %vm260
    %vm276 = vmor %vm243, %vm261
    %vm277 = vmor %vm244, %vm262
    %vm278 = vmor %vm245, %vm263
    %vm279 = vmor %vm246, %vm264
    %vm280 = vmor %vm247, %vm265
    %vm281 = vmor %vm248, %vm266
    %vm282 = vmor %vm249, %vm267
    %vm283 = vmor %vm250, %vm268
    %vm284 = vmor %vm251, %vm269
    %vm285 = vmor %vm252, %vm270
    %vm286 = vmor %vm253, %vm271
    %vm287 = vmor %vm254, %vm272
    %v288 = vsel %vm273, 1, 0
    %v289 = vsel %vm274, 1, 0
    %v290 = vsel %vm275, 1, 0
    %v291 = vsel %vm276, 1, 0
    %v292 = vsel %vm277, 1, 0
    %v293 = vsel %vm278, 1, 0
    %v294 = vsel %vm279, 1, 0
    %v295 = vsel %vm280, 1, 0
    %v296 = vsel %vm281, 1, 0
    %v297 = vsel %vm282, 1, 0
    %v298 = vsel %vm283, 1, 0
    %v299 = vsel %vm284, 1, 0
    %v300 = vsel %vm285, 1, 0
    %v301 = vsel %vm286, 1, 0
    %v302 = vsel %vm287, 1, 0
    %v303 = vcvt.s32.f32 %v288
    %v304 = vcvt.s32.f32 %v289
    %v305 = vcvt.s32.f32 %v290
    %v306 = vcvt.s32.f32 %v291
    %v307 = vcvt.s32.f32 %v292
    %v308 = vcvt.s32.f32 %v293
    %v309 = vcvt.s32.f32 %v294
    %v310 = vcvt.s32.f32 %v295
    %v311 = vcvt.s32.f32 %v296
    %v312 = vcvt.s32.f32 %v297
    %v313 = vcvt.s32.f32 %v298
    %v314 = vcvt.s32.f32 %v299
    %v315 = vcvt.s32.f32 %v300
    %v316 = vcvt.s32.f32 %v301
    %v317 = vcvt.s32.f32 %v302
    %v318 = vld [vmem:[%s3] sm:$0xff]
    %v319 = vld [vmem:[%s3 + $0x8] sm:$0xff]
    %v320 = vld [vmem:[%s3 + $0x10] sm:$0xff]
    %v321 = vld [vmem:[%s3 + $0x18] sm:$0xff]
    %v322 = vld [vmem:[%s3 + $0x20] sm:$0xff]
    %v323 = vld [vmem:[%s3 + $0x28] sm:$0xff]
    %v324 = vld [vmem:[%s3 + $0x30] sm:$0xff]
    %v325 = vld [vmem:[%s3 + $0x38] sm:$0xff]
    %v326 = vld [vmem:[%s3 + $0x40] sm:$0xff]
    %v327 = vld [vmem:[%s3 + $0x48] sm:$0xff]
    %v328 = vld [vmem:[%s3 + $0x50] sm:$0xff]
    %v329 = vld [vmem:[%s3 + $0x58] sm:$0xff]
    %v330 = vld [vmem:[%s3 + $0x60] sm:$0xff]
    %v331 = vld [vmem:[%s3 + $0x68] sm:$0xff]
    %v332 = vld [vmem:[%s3 + $0x70] sm:$0xff]
    %v333 = vld [vmem:[%s3 + $0x78] sm:$0xff]
    %v334 = vld [vmem:[%s3 + $0x80] sm:$0xff]
    %v335 = vld [vmem:[%s3 + $0x88] sm:$0xff]
    %v336 = vld [vmem:[%s3 + $0x90] sm:$0xff]
    %v337 = vld [vmem:[%s3 + $0x98] sm:$0xff]
    %v338 = vld [vmem:[%s3 + $0xa0] sm:$0xff]
    %v339 = vld [vmem:[%s3 + $0xa8] sm:$0xff]
    %v340 = vld [vmem:[%s3 + $0xb0] sm:$0xff]
    %v341 = vld [vmem:[%s3 + $0xb8] sm:$0xff]
    %v342 = vld [vmem:[%s3 + $0xc0] sm:$0xff]
    %v343 = vld [vmem:[%s3 + $0xc8] sm:$0xff]
    %v344 = vld [vmem:[%s3 + $0xd0] sm:$0xff]
    %v345 = vld [vmem:[%s3 + $0xd8] sm:$0xff]
    %v346 = vld [vmem:[%s3 + $0xe0] sm:$0xff]
    %v347 = vld [vmem:[%s3 + $0xe8] sm:$0xff]
    %v348 = vld [vmem:[%s3 + $0xf0] sm:$0xff]
    %v349 = vld [vmem:[%s3 + $0xf8] sm:$0xff]
    %v350 = vld [vmem:[%s3 + $0x100] sm:$0xff]
    %v351 = vld [vmem:[%s3 + $0x108] sm:$0xff]
    %v352 = vld [vmem:[%s3 + $0x110] sm:$0xff]
    %v353 = vld [vmem:[%s3 + $0x118] sm:$0xff]
    %v354 = vld [vmem:[%s3 + $0x120] sm:$0xff]
    %v355 = vld [vmem:[%s3 + $0x128] sm:$0xff]
    %v356 = vld [vmem:[%s3 + $0x130] sm:$0xff]
    %v357 = vld [vmem:[%s3 + $0x138] sm:$0xff]
    %v358 = vld [vmem:[%s3 + $0x140] sm:$0xff]
    %v359 = vld [vmem:[%s3 + $0x148] sm:$0xff]
    %v360 = vld [vmem:[%s3 + $0x150] sm:$0xff]
    %v361 = vld [vmem:[%s3 + $0x158] sm:$0xff]
    %v362 = vld [vmem:[%s3 + $0x160] sm:$0xff]
    %v363 = vld [vmem:[%s3 + $0x168] sm:$0xff]
    %v364 = vld [vmem:[%s3 + $0x170] sm:$0xff]
    %v365 = vld [vmem:[%s3 + $0x178] sm:$0xff]
    %v366 = vld [vmem:[%s3 + $0x180] sm:$0xff]
    %v367 = vld [vmem:[%s3 + $0x188] sm:$0xff]
    %v368 = vld [vmem:[%s3 + $0x190] sm:$0xff]
    %v369 = vld [vmem:[%s3 + $0x198] sm:$0xff]
    %v370 = vld [vmem:[%s3 + $0x1a0] sm:$0xff]
    %v371 = vld [vmem:[%s3 + $0x1a8] sm:$0xff]
    %v372 = vld [vmem:[%s3 + $0x1b0] sm:$0xff]
    %v373 = vld [vmem:[%s3 + $0x1b8] sm:$0xff]
    %v374 = vld [vmem:[%s3 + $0x1c0] sm:$0xff]
    %v375 = vld [vmem:[%s3 + $0x1c8] sm:$0xff]
    %v376 = vld [vmem:[%s3 + $0x1d0] sm:$0xff]
    %v377 = vld [vmem:[%s3 + $0x1d8] sm:$0xff]
    %v378 = vld [vmem:[%s3 + $0x1e0] sm:$0xff]
    %v379 = vld [vmem:[%s3 + $0x1e8] sm:$0xff]
    %v380 = vld [vmem:[%s3 + $0x1f0] sm:$0xff]
    %v381 = vld [vmem:[%s3 + $0x1f8] sm:$0xff]
    %v382 = vld [vmem:[%s3 + $0x200] sm:$0xff]
    %v383 = vld [vmem:[%s3 + $0x208] sm:$0xff]
    %v384 = vld [vmem:[%s3 + $0x210] sm:$0xff]
    %v385 = vld [vmem:[%s3 + $0x218] sm:$0xff]
    %v386 = vld [vmem:[%s3 + $0x220] sm:$0xff]
    %v387 = vld [vmem:[%s3 + $0x228] sm:$0xff]
    %v388 = vld [vmem:[%s3 + $0x230] sm:$0xff]
    %v389 = vld [vmem:[%s3 + $0x238] sm:$0xff]
    %v390 = vld [vmem:[%s3 + $0x240] sm:$0xff]
    %v391 = vld [vmem:[%s3 + $0x248] sm:$0xff]
    %v392 = vld [vmem:[%s3 + $0x250] sm:$0xff]
    %v393 = vld [vmem:[%s3 + $0x258] sm:$0xff]
    %v394 = vld [vmem:[%s3 + $0x260] sm:$0xff]
    %v395 = vld [vmem:[%s3 + $0x268] sm:$0xff]
    %v396 = vld [vmem:[%s3 + $0x270] sm:$0xff]
    %v397 = vld [vmem:[%s3 + $0x278] sm:$0xff]
    %v398 = vld [vmem:[%s3 + $0x280] sm:$0xff]
    %v399 = vld [vmem:[%s3 + $0x288] sm:$0xff]
    %v400 = vld [vmem:[%s3 + $0x290] sm:$0xff]
    %v401 = vld [vmem:[%s3 + $0x298] sm:$0xff]
    %v402 = vld [vmem:[%s3 + $0x2a0] sm:$0xff]
    %v403 = vld [vmem:[%s3 + $0x2a8] sm:$0xff]
    %v404 = vld [vmem:[%s3 + $0x2b0] sm:$0xff]
    %v405 = vld [vmem:[%s3 + $0x2b8] sm:$0xff]
    %v406 = vld [vmem:[%s3 + $0x2c0] sm:$0xff]
    %v407 = vld [vmem:[%s3 + $0x2c8] sm:$0xff]
    %v408 = vld [vmem:[%s3 + $0x2d0] sm:$0xff]
    %v409 = vld [vmem:[%s3 + $0x2d8] sm:$0xff]
    %v410 = vld [vmem:[%s3 + $0x2e0] sm:$0xff]
    %v411 = vld [vmem:[%s3 + $0x2e8] sm:$0xff]
    %v412 = vld [vmem:[%s3 + $0x2f0] sm:$0xff]
    %v413 = vld [vmem:[%s3 + $0x2f8] sm:$0xff]
    %v414 = vld [vmem:[%s3 + $0x300] sm:$0xff]
    %v415 = vld [vmem:[%s3 + $0x308] sm:$0xff]
    %v416 = vld [vmem:[%s3 + $0x310] sm:$0xff]
    %v417 = vld [vmem:[%s3 + $0x318] sm:$0xff]
    %v418 = vld [vmem:[%s3 + $0x320] sm:$0xff]
    %v419 = vld [vmem:[%s3 + $0x328] sm:$0xff]
    %v420 = vld [vmem:[%s3 + $0x330] sm:$0xff]
    %v421 = vld [vmem:[%s3 + $0x338] sm:$0xff]
    %v422 = vld [vmem:[%s3 + $0x340] sm:$0xff]
    %v423 = vld [vmem:[%s3 + $0x348] sm:$0xff]
    %v424 = vld [vmem:[%s3 + $0x350] sm:$0xff]
    %v425 = vld [vmem:[%s3 + $0x358] sm:$0xff]
    %v426 = vld [vmem:[%s3 + $0x360] sm:$0xff]
    %v427 = vld [vmem:[%s3 + $0x368] sm:$0xff]
    %v428 = vld [vmem:[%s3 + $0x370] sm:$0xff]
    %v429 = vld [vmem:[%s3 + $0x378] sm:$0xff]
    %v430 = vld [vmem:[%s3 + $0x380] sm:$0xff]
    %v431 = vld [vmem:[%s3 + $0x388] sm:$0xff]
    %v432 = vld [vmem:[%s3 + $0x390] sm:$0xff]
    %v433 = vld [vmem:[%s3 + $0x398] sm:$0xff]
    %v434 = vld [vmem:[%s3 + $0x3a0] sm:$0xff]
    %v435 = vld [vmem:[%s3 + $0x3a8] sm:$0xff]
    %v436 = vld [vmem:[%s3 + $0x3b0] sm:$0xff]
    %v437 = vld [vmem:[%s3 + $0x3b8] sm:$0xff]
    %v438 = vld [vmem:[%s3 + $0x3c0] sm:$0xff]
    %v439 = vld [vmem:[%s3 + $0x3c8] sm:$0xff]
    %v440 = vld [vmem:[%s3 + $0x3d0] sm:$0xff]
    %v441 = vld [vmem:[%s3 + $0x3d8] sm:$0xff]
    %v442 = vld [vmem:[%s3 + $0x3e0] sm:$0xff]
    %v443 = vld [vmem:[%s3 + $0x3e8] sm:$0xff]
    %v444 = vld [vmem:[%s3 + $0x3f0] sm:$0xff]
    %v445 = vld [vmem:[%s3 + $0x3f8] sm:$0xff]
    %v446 = vld [vmem:[%s3 + $0x400] sm:$0xff]
    %v447 = vld [vmem:[%s3 + $0x408] sm:$0xff]
    %v448 = vld [vmem:[%s3 + $0x410] sm:$0xff]
    %v449 = vld [vmem:[%s3 + $0x418] sm:$0xff]
    %v450 = vld [vmem:[%s3 + $0x420] sm:$0xff]
    %v451 = vld [vmem:[%s3 + $0x428] sm:$0xff]
    %v452 = vld [vmem:[%s3 + $0x430] sm:$0xff]
    %v453 = vld [vmem:[%s3 + $0x438] sm:$0xff]
    %v454 = vld [vmem:[%s3 + $0x440] sm:$0xff]
    %v455 = vld [vmem:[%s3 + $0x448] sm:$0xff]
    %v456 = vld [vmem:[%s3 + $0x450] sm:$0xff]
    %v457 = vld [vmem:[%s3 + $0x458] sm:$0xff]
    %v458 = vld [vmem:[%s3 + $0x460] sm:$0xff]
    %v459 = vld [vmem:[%s3 + $0x468] sm:$0xff]
    %v460 = vld [vmem:[%s3 + $0x470] sm:$0xff]
    %v461 = vld [vmem:[%s3 + $0x478] sm:$0xff]
    %v462 = vld [vmem:[%s3 + $0x480] sm:$0xff]
    %v463 = vld [vmem:[%s3 + $0x488] sm:$0xff]
    %v464 = vld [vmem:[%s3 + $0x490] sm:$0xff]
    %v465 = vld [vmem:[%s3 + $0x498] sm:$0xff]
    %v466 = vld [vmem:[%s3 + $0x4a0] sm:$0xff]
    %v467 = vld [vmem:[%s3 + $0x4a8] sm:$0xff]
    %v468 = vld [vmem:[%s3 + $0x4b0] sm:$0xff]
    %v469 = vld [vmem:[%s3 + $0x4b8] sm:$0xff]
    %v470 = vld [vmem:[%s3 + $0x4c0] sm:$0xff]
    %v471 = vld [vmem:[%s3 + $0x4c8] sm:$0xff]
    %v472 = vld [vmem:[%s3 + $0x4d0] sm:$0xff]
    %v473 = vld [vmem:[%s3 + $0x4d8] sm:$0xff]
    %v474 = vld [vmem:[%s3 + $0x4e0] sm:$0xff]
    %v475 = vld [vmem:[%s3 + $0x4e8] sm:$0xff]
    %v476 = vld [vmem:[%s3 + $0x4f0] sm:$0xff]
    %v477 = vld [vmem:[%s3 + $0x4f8] sm:$0xff]
    %v478 = vld [vmem:[%s3 + $0x500] sm:$0xff]
    %v479 = vld [vmem:[%s3 + $0x508] sm:$0xff]
    %v480 = vld [vmem:[%s3 + $0x510] sm:$0xff]
    %v481 = vld [vmem:[%s3 + $0x518] sm:$0xff]
    %v482 = vld [vmem:[%s3 + $0x520] sm:$0xff]
    %v483 = vld [vmem:[%s3 + $0x528] sm:$0xff]
    %v484 = vld [vmem:[%s3 + $0x530] sm:$0xff]
    %v485 = vld [vmem:[%s3 + $0x538] sm:$0xff]
    %v486 = vld [vmem:[%s3 + $0x540] sm:$0xff]
    %v487 = vld [vmem:[%s3 + $0x548] sm:$0xff]
    %v488 = vld [vmem:[%s3 + $0x550] sm:$0xff]
    %v489 = vld [vmem:[%s3 + $0x558] sm:$0xff]
    %v490 = vld [vmem:[%s3 + $0x560] sm:$0xff]
    %v491 = vld [vmem:[%s3 + $0x568] sm:$0xff]
    %v492 = vld [vmem:[%s3 + $0x570] sm:$0xff]
    %v493 = vld [vmem:[%s3 + $0x578] sm:$0xff]
    %v494 = vld [vmem:[%s3 + $0x580] sm:$0xff]
    %v495 = vld [vmem:[%s3 + $0x588] sm:$0xff]
    %v496 = vld [vmem:[%s3 + $0x590] sm:$0xff]
    %v497 = vld [vmem:[%s3 + $0x598] sm:$0xff]
    %v498 = vld [vmem:[%s3 + $0x5a0] sm:$0xff]
    %v499 = vld [vmem:[%s3 + $0x5a8] sm:$0xff]
    %v500 = vld [vmem:[%s3 + $0x5b0] sm:$0xff]
    %v501 = vld [vmem:[%s3 + $0x5b8] sm:$0xff]
    %v502 = vld [vmem:[%s3 + $0x5c0] sm:$0xff]
    %v503 = vld [vmem:[%s3 + $0x5c8] sm:$0xff]
    %v504 = vld [vmem:[%s3 + $0x5d0] sm:$0xff]
    %v505 = vld [vmem:[%s3 + $0x5d8] sm:$0xff]
    %v506 = vld [vmem:[%s3 + $0x5e0] sm:$0xff]
    %v507 = vld [vmem:[%s3 + $0x5e8] sm:$0xff]
    %v508 = vld [vmem:[%s3 + $0x5f0] sm:$0xff]
    %v509 = vld [vmem:[%s3 + $0x5f8] sm:$0xff]
    %v510 = vld [vmem:[%s3 + $0x600] sm:$0xff]
    %v511 = vld [vmem:[%s3 + $0x608] sm:$0xff]
    %v512 = vld [vmem:[%s3 + $0x610] sm:$0xff]
    %v513 = vld [vmem:[%s3 + $0x618] sm:$0xff]
    %v514 = vld [vmem:[%s3 + $0x620] sm:$0xff]
    %v515 = vld [vmem:[%s3 + $0x628] sm:$0xff]
    %v516 = vld [vmem:[%s3 + $0x630] sm:$0xff]
    %v517 = vld [vmem:[%s3 + $0x638] sm:$0xff]
    %v518 = vld [vmem:[%s3 + $0x640] sm:$0xff]
    %v519 = vld [vmem:[%s3 + $0x648] sm:$0xff]
    %v520 = vld [vmem:[%s3 + $0x650] sm:$0xff]
    %v521 = vld [vmem:[%s3 + $0x658] sm:$0xff]
    %v522 = vld [vmem:[%s3 + $0x660] sm:$0xff]
    %v523 = vld [vmem:[%s3 + $0x668] sm:$0xff]
    %v524 = vld [vmem:[%s3 + $0x670] sm:$0xff]
    %v525 = vld [vmem:[%s3 + $0x678] sm:$0xff]
    %v526 = vld [vmem:[%s3 + $0x680] sm:$0xff]
    %v527 = vld [vmem:[%s3 + $0x688] sm:$0xff]
    %v528 = vld [vmem:[%s3 + $0x690] sm:$0xff]
    %v529 = vld [vmem:[%s3 + $0x698] sm:$0xff]
    %v530 = vld [vmem:[%s3 + $0x6a0] sm:$0xff]
    %v531 = vld [vmem:[%s3 + $0x6a8] sm:$0xff]
    %v532 = vld [vmem:[%s3 + $0x6b0] sm:$0xff]
    %v533 = vld [vmem:[%s3 + $0x6b8] sm:$0xff]
    %v534 = vld [vmem:[%s3 + $0x6c0] sm:$0xff]
    %v535 = vld [vmem:[%s3 + $0x6c8] sm:$0xff]
    %v536 = vld [vmem:[%s3 + $0x6d0] sm:$0xff]
    %v537 = vld [vmem:[%s3 + $0x6d8] sm:$0xff]
    %v538 = vld [vmem:[%s3 + $0x6e0] sm:$0xff]
    %v539 = vld [vmem:[%s3 + $0x6e8] sm:$0xff]
    %v540 = vld [vmem:[%s3 + $0x6f0] sm:$0xff]
    %v541 = vld [vmem:[%s3 + $0x6f8] sm:$0xff]
    %v542 = vld [vmem:[%s3 + $0x700] sm:$0xff]
    %v543 = vld [vmem:[%s3 + $0x708] sm:$0xff]
    %v544 = vld [vmem:[%s3 + $0x710] sm:$0xff]
    %v545 = vld [vmem:[%s3 + $0x718] sm:$0xff]
    %v546 = vld [vmem:[%s3 + $0x720] sm:$0xff]
    %v547 = vld [vmem:[%s3 + $0x728] sm:$0xff]
    %v548 = vld [vmem:[%s3 + $0x730] sm:$0xff]
    %v549 = vld [vmem:[%s3 + $0x738] sm:$0xff]
    %v550 = vld [vmem:[%s3 + $0x740] sm:$0xff]
    %v551 = vld [vmem:[%s3 + $0x748] sm:$0xff]
    %v552 = vld [vmem:[%s3 + $0x750] sm:$0xff]
    %v553 = vld [vmem:[%s3 + $0x758] sm:$0xff]
    %v554 = vld [vmem:[%s3 + $0x760] sm:$0xff]
    %v555 = vld [vmem:[%s3 + $0x768] sm:$0xff]
    %v556 = vld [vmem:[%s3 + $0x770] sm:$0xff]
    %v557 = vld [vmem:[%s3 + $0x778] sm:$0xff]
    %v558 = vand.u32 %v333, 4294901760
    %559 = vmatpush.msra.mxu0 %v558
    %v560 = vand.u32 %v332, 4294901760
    %561 = vmatpush.msra.mxu0 %v560
    %v562 = vand.u32 %v331, 4294901760
    %563 = vmatpush.msra.mxu0 %v562
    %v564 = vand.u32 %v330, 4294901760
    %565 = vmatpush.msra.mxu0 %v564
    %v566 = vand.u32 %v329, 4294901760
    %567 = vmatpush.msra.mxu0 %v566
    %v568 = vand.u32 %v328, 4294901760
    %569 = vmatpush.msra.mxu0 %v568
    %v570 = vand.u32 %v327, 4294901760
    %571 = vmatpush.msra.mxu0 %v570
    %v572 = vand.u32 %v326, 4294901760
    %573 = vmatpush.msra.mxu0 %v572
    %v574 = vand.u32 %v325, 4294901760
    %575 = vmatpush.msra.mxu0 %v574
    %v576 = vand.u32 %v324, 4294901760
    %577 = vmatpush.msra.mxu0 %v576
    %v578 = vand.u32 %v323, 4294901760
    %579 = vmatpush.msra.mxu0 %v578
    %v580 = vand.u32 %v322, 4294901760
    %581 = vmatpush.msra.mxu0 %v580
    %v582 = vand.u32 %v321, 4294901760
    %583 = vmatpush.msra.mxu0 %v582
    %v584 = vand.u32 %v320, 4294901760
    %585 = vmatpush.msra.mxu0 %v584
    %v586 = vand.u32 %v319, 4294901760
    %587 = vmatpush.msra.mxu0 %v586
    %v588 = vand.u32 %v318, 4294901760
    %589 = vmatpush.msra.mxu0 %v588
    %v590 = vand.u32 %v303, 4294901760
    %v591 = vsub.f32 %v303, %v590
    %v592 = vand.u32 %v591, 4294901760
    %v593 = vsub.f32 %v591, %v592
    %v594 = vand.u32 %v593, 4294901760
    %595 = vmatmul.f32.gmra.mxu0 %v594
    %v596 = vpop.f32.mrf.mxu0
    %v597 = vadd.f32 0.0, %v596
    %598 = vdwg.mxu0
    %v599 = vand.u32 %v333, 4294901760
    %v600 = vsub.f32 %v333, %v599
    %v601 = vand.u32 %v600, 4294901760
    %v602 = vsub.f32 %v600, %v601
    %v603 = vand.u32 %v602, 4294901760
    %604 = vmatpush.msra.mxu0 %v603
    %v605 = vand.u32 %v332, 4294901760
    %v606 = vsub.f32 %v332, %v605
    %v607 = vand.u32 %v606, 4294901760
    %v608 = vsub.f32 %v606, %v607
    %v609 = vand.u32 %v608, 4294901760
    %610 = vmatpush.msra.mxu0 %v609
    %v611 = vand.u32 %v331, 4294901760
    %v612 = vsub.f32 %v331, %v611
    %v613 = vand.u32 %v612, 4294901760
    %v614 = vsub.f32 %v612, %v613
    %v615 = vand.u32 %v614, 4294901760
    %616 = vmatpush.msra.mxu0 %v615
    %v617 = vand.u32 %v330, 4294901760
    %v618 = vsub.f32 %v330, %v617
    %v619 = vand.u32 %v618, 4294901760
    %v620 = vsub.f32 %v618, %v619
    %v621 = vand.u32 %v620, 4294901760
    %622 = vmatpush.msra.mxu0 %v621
    %v623 = vand.u32 %v329, 4294901760
    %v624 = vsub.f32 %v329, %v623
    %v625 = vand.u32 %v624, 4294901760
    %v626 = vsub.f32 %v624, %v625
    %v627 = vand.u32 %v626, 4294901760
    %628 = vmatpush.msra.mxu0 %v627
    %v629 = vand.u32 %v328, 4294901760
    %v630 = vsub.f32 %v328, %v629
    %v631 = vand.u32 %v630, 4294901760
    %v632 = vsub.f32 %v630, %v631
    %v633 = vand.u32 %v632, 4294901760
    %634 = vmatpush.msra.mxu0 %v633
    %v635 = vand.u32 %v327, 4294901760
    %v636 = vsub.f32 %v327, %v635
    %v637 = vand.u32 %v636, 4294901760
    %v638 = vsub.f32 %v636, %v637
    %v639 = vand.u32 %v638, 4294901760
    %640 = vmatpush.msra.mxu0 %v639
    %v641 = vand.u32 %v326, 4294901760
    %v642 = vsub.f32 %v326, %v641
    %v643 = vand.u32 %v642, 4294901760
    %v644 = vsub.f32 %v642, %v643
    %v645 = vand.u32 %v644, 4294901760
    %646 = vmatpush.msra.mxu0 %v645
    %v647 = vand.u32 %v325, 4294901760
    %v648 = vsub.f32 %v325, %v647
    %v649 = vand.u32 %v648, 4294901760
    %v650 = vsub.f32 %v648, %v649
    %v651 = vand.u32 %v650, 4294901760
    %652 = vmatpush.msra.mxu0 %v651
    %v653 = vand.u32 %v324, 4294901760
    %v654 = vsub.f32 %v324, %v653
    %v655 = vand.u32 %v654, 4294901760
    %v656 = vsub.f32 %v654, %v655
    %v657 = vand.u32 %v656, 4294901760
    %658 = vmatpush.msra.mxu0 %v657
    %v659 = vand.u32 %v323, 4294901760
    %v660 = vsub.f32 %v323, %v659
    %v661 = vand.u32 %v660, 4294901760
    %v662 = vsub.f32 %v660, %v661
    %v663 = vand.u32 %v662, 4294901760
    %664 = vmatpush.msra.mxu0 %v663
    %v665 = vand.u32 %v322, 4294901760
    %v666 = vsub.f32 %v322, %v665
    %v667 = vand.u32 %v666, 4294901760
    %v668 = vsub.f32 %v666, %v667
    %v669 = vand.u32 %v668, 4294901760
    %670 = vmatpush.msra.mxu0 %v669
    %v671 = vand.u32 %v321, 4294901760
    %v672 = vsub.f32 %v321, %v671
    %v673 = vand.u32 %v672, 4294901760
    %v674 = vsub.f32 %v672, %v673
    %v675 = vand.u32 %v674, 4294901760
    %676 = vmatpush.msra.mxu0 %v675
    %v677 = vand.u32 %v320, 4294901760
    %v678 = vsub.f32 %v320, %v677
    %v679 = vand.u32 %v678, 4294901760
    %v680 = vsub.f32 %v678, %v679
    %v681 = vand.u32 %v680, 4294901760
    %682 = vmatpush.msra.mxu0 %v681
    %v683 = vand.u32 %v319, 4294901760
    %v684 = vsub.f32 %v319, %v683
    %v685 = vand.u32 %v684, 4294901760
    %v686 = vsub.f32 %v684, %v685
    %v687 = vand.u32 %v686, 4294901760
    %688 = vmatpush.msra.mxu0 %v687
    %v689 = vand.u32 %v318, 4294901760
    %v690 = vsub.f32 %v318, %v689
    %v691 = vand.u32 %v690, 4294901760
    %v692 = vsub.f32 %v690, %v691
    %v693 = vand.u32 %v692, 4294901760
    %694 = vmatpush.msra.mxu0 %v693
    %v695 = vand.u32 %v303, 4294901760
    %696 = vmatmul.f32.gmra.mxu0 %v695
    %v697 = vpop.f32.mrf.mxu0
    %v698 = vadd.f32 %v597, %v697
    %699 = vdwg.mxu0
    %v700 = vand.u32 %v333, 4294901760
    %v701 = vsub.f32 %v333, %v700
    %702 = vmatpush.msra.mxu0 %v701
    %v703 = vand.u32 %v332, 4294901760
    %v704 = vsub.f32 %v332, %v703
    %705 = vmatpush.msra.mxu0 %v704
    %v706 = vand.u32 %v331, 4294901760
    %v707 = vsub.f32 %v331, %v706
    %708 = vmatpush.msra.mxu0 %v707
    %v709 = vand.u32 %v330, 4294901760
    %v710 = vsub.f32 %v330, %v709
    %711 = vmatpush.msra.mxu0 %v710
    %v712 = vand.u32 %v329, 4294901760
    %v713 = vsub.f32 %v329, %v712
    %714 = vmatpush.msra.mxu0 %v713
    %v715 = vand.u32 %v328, 4294901760
    %v716 = vsub.f32 %v328, %v715
    %717 = vmatpush.msra.mxu0 %v716
    %v718 = vand.u32 %v327, 4294901760
    %v719 = vsub.f32 %v327, %v718
    %720 = vmatpush.msra.mxu0 %v719
    %v721 = vand.u32 %v326, 4294901760
    %v722 = vsub.f32 %v326, %v721
    %723 = vmatpush.msra.mxu0 %v722
    %v724 = vand.u32 %v325, 4294901760
    %v725 = vsub.f32 %v325, %v724
    %726 = vmatpush.msra.mxu0 %v725
    %v727 = vand.u32 %v324, 4294901760
    %v728 = vsub.f32 %v324, %v727
    %729 = vmatpush.msra.mxu0 %v728
    %v730 = vand.u32 %v323, 4294901760
    %v731 = vsub.f32 %v323, %v730
    %732 = vmatpush.msra.mxu0 %v731
    %v733 = vand.u32 %v322, 4294901760
    %v734 = vsub.f32 %v322, %v733
    %735 = vmatpush.msra.mxu0 %v734
    %v736 = vand.u32 %v321, 4294901760
    %v737 = vsub.f32 %v321, %v736
    %738 = vmatpush.msra.mxu0 %v737
    %v739 = vand.u32 %v320, 4294901760
    %v740 = vsub.f32 %v320, %v739
    %741 = vmatpush.msra.mxu0 %v740
    %v742 = vand.u32 %v319, 4294901760
    %v743 = vsub.f32 %v319, %v742
    %744 = vmatpush.msra.mxu0 %v743
    %v745 = vand.u32 %v318, 4294901760
    %v746 = vsub.f32 %v318, %v745
    %747 = vmatpush.msra.mxu0 %v746
    %v748 = vand.u32 %v303, 4294901760
    %v749 = vsub.f32 %v303, %v748
    %750 = vmatmul.f32.gmra.mxu0 %v749
    %v751 = vpop.f32.mrf.mxu0
    %v752 = vadd.f32 %v698, %v751
    %753 = vdwg.mxu0
    %v754 = vand.u32 %v333, 4294901760
    %755 = vmatpush.msra.mxu0 %v754
    %v756 = vand.u32 %v332, 4294901760
    %757 = vmatpush.msra.mxu0 %v756
    %v758 = vand.u32 %v331, 4294901760
    %759 = vmatpush.msra.mxu0 %v758
    %v760 = vand.u32 %v330, 4294901760
    %761 = vmatpush.msra.mxu0 %v760
    %v762 = vand.u32 %v329, 4294901760
    %763 = vmatpush.msra.mxu0 %v762
    %v764 = vand.u32 %v328, 4294901760
    %765 = vmatpush.msra.mxu0 %v764
    %v766 = vand.u32 %v327, 4294901760
    %767 = vmatpush.msra.mxu0 %v766
    %v768 = vand.u32 %v326, 4294901760
    %769 = vmatpush.msra.mxu0 %v768
    %v770 = vand.u32 %v325, 4294901760
    %771 = vmatpush.msra.mxu0 %v770
    %v772 = vand.u32 %v324, 4294901760
    %773 = vmatpush.msra.mxu0 %v772
    %v774 = vand.u32 %v323, 4294901760
    %775 = vmatpush.msra.mxu0 %v774
    %v776 = vand.u32 %v322, 4294901760
    %777 = vmatpush.msra.mxu0 %v776
    %v778 = vand.u32 %v321, 4294901760
    %779 = vmatpush.msra.mxu0 %v778
    %v780 = vand.u32 %v320, 4294901760
    %781 = vmatpush.msra.mxu0 %v780
    %v782 = vand.u32 %v319, 4294901760
    %783 = vmatpush.msra.mxu0 %v782
    %v784 = vand.u32 %v318, 4294901760
    %785 = vmatpush.msra.mxu0 %v784
    %v786 = vand.u32 %v303, 4294901760
    %v787 = vsub.f32 %v303, %v786
    %v788 = vand.u32 %v787, 4294901760
    %789 = vmatmul.f32.gmra.mxu0 %v788
    %v790 = vpop.f32.mrf.mxu0
    %v791 = vadd.f32 %v752, %v790
    %792 = vdwg.mxu0
    %v793 = vand.u32 %v333, 4294901760
    %v794 = vsub.f32 %v333, %v793
    %v795 = vand.u32 %v794, 4294901760
    %796 = vmatpush.msra.mxu0 %v795
    %v797 = vand.u32 %v332, 4294901760
    %v798 = vsub.f32 %v332, %v797
    %v799 = vand.u32 %v798, 4294901760
    %800 = vmatpush.msra.mxu0 %v799
    %v801 = vand.u32 %v331, 4294901760
    %v802 = vsub.f32 %v331, %v801
    %v803 = vand.u32 %v802, 4294901760
    %804 = vmatpush.msra.mxu0 %v803
    %v805 = vand.u32 %v330, 4294901760
    %v806 = vsub.f32 %v330, %v805
    %v807 = vand.u32 %v806, 4294901760
    %808 = vmatpush.msra.mxu0 %v807
    %v809 = vand.u32 %v329, 4294901760
    %v810 = vsub.f32 %v329, %v809
    %v811 = vand.u32 %v810, 4294901760
    %812 = vmatpush.msra.mxu0 %v811
    %v813 = vand.u32 %v328, 4294901760
    %v814 = vsub.f32 %v328, %v813
    %v815 = vand.u32 %v814, 4294901760
    %816 = vmatpush.msra.mxu0 %v815
    %v817 = vand.u32 %v327, 4294901760
    %v818 = vsub.f32 %v327, %v817
    %v819 = vand.u32 %v818, 4294901760
    %820 = vmatpush.msra.mxu0 %v819
    %v821 = vand.u32 %v326, 4294901760
    %v822 = vsub.f32 %v326, %v821
    %v823 = vand.u32 %v822, 4294901760
    %824 = vmatpush.msra.mxu0 %v823
    %v825 = vand.u32 %v325, 4294901760
    %v826 = vsub.f32 %v325, %v825
    %v827 = vand.u32 %v826, 4294901760
    %828 = vmatpush.msra.mxu0 %v827
    %v829 = vand.u32 %v324, 4294901760
    %v830 = vsub.f32 %v324, %v829
    %v831 = vand.u32 %v830, 4294901760
    %832 = vmatpush.msra.mxu0 %v831
    %v833 = vand.u32 %v323, 4294901760
    %v834 = vsub.f32 %v323, %v833
    %v835 = vand.u32 %v834, 4294901760
    %836 = vmatpush.msra.mxu0 %v835
    %v837 = vand.u32 %v322, 4294901760
    %v838 = vsub.f32 %v322, %v837
    %v839 = vand.u32 %v838, 4294901760
    %840 = vmatpush.msra.mxu0 %v839
    %v841 = vand.u32 %v321, 4294901760
    %v842 = vsub.f32 %v321, %v841
    %v843 = vand.u32 %v842, 4294901760
    %844 = vmatpush.msra.mxu0 %v843
    %v845 = vand.u32 %v320, 4294901760
    %v846 = vsub.f32 %v320, %v845
    %v847 = vand.u32 %v846, 4294901760
    %848 = vmatpush.msra.mxu0 %v847
    %v849 = vand.u32 %v319, 4294901760
    %v850 = vsub.f32 %v319, %v849
    %v851 = vand.u32 %v850, 4294901760
    %852 = vmatpush.msra.mxu0 %v851
    %v853 = vand.u32 %v318, 4294901760
    %v854 = vsub.f32 %v318, %v853
    %v855 = vand.u32 %v854, 4294901760
    %856 = vmatpush.msra.mxu0 %v855
    %v857 = vand.u32 %v303, 4294901760
    %858 = vmatmul.f32.gmra.mxu0 %v857
    %v859 = vpop.f32.mrf.mxu0
    %v860 = vadd.f32 %v791, %v859
    %861 = vdwg.mxu0
    %v862 = vand.u32 %v333, 4294901760
    %863 = vmatpush.msra.mxu0 %v862
    %v864 = vand.u32 %v332, 4294901760
    %865 = vmatpush.msra.mxu0 %v864
    %v866 = vand.u32 %v331, 4294901760
    %867 = vmatpush.msra.mxu0 %v866
    %v868 = vand.u32 %v330, 4294901760
    %869 = vmatpush.msra.mxu0 %v868
    %v870 = vand.u32 %v329, 4294901760
    %871 = vmatpush.msra.mxu0 %v870
    %v872 = vand.u32 %v328, 4294901760
    %873 = vmatpush.msra.mxu0 %v872
    %v874 = vand.u32 %v327, 4294901760
    %875 = vmatpush.msra.mxu0 %v874
    %v876 = vand.u32 %v326, 4294901760
    %877 = vmatpush.msra.mxu0 %v876
    %v878 = vand.u32 %v325, 4294901760
    %879 = vmatpush.msra.mxu0 %v878
    %v880 = vand.u32 %v324, 4294901760
    %881 = vmatpush.msra.mxu0 %v880
    %v882 = vand.u32 %v323, 4294901760
    %883 = vmatpush.msra.mxu0 %v882
    %v884 = vand.u32 %v322, 4294901760
    %885 = vmatpush.msra.mxu0 %v884
    %v886 = vand.u32 %v321, 4294901760
    %887 = vmatpush.msra.mxu0 %v886
    %v888 = vand.u32 %v320, 4294901760
    %889 = vmatpush.msra.mxu0 %v888
    %v890 = vand.u32 %v319, 4294901760
    %891 = vmatpush.msra.mxu0 %v890
    %v892 = vand.u32 %v318, 4294901760
    %893 = vmatpush.msra.mxu0 %v892
    %v894 = vand.u32 %v303, 4294901760
    %895 = vmatmul.f32.gmra.mxu0 %v894
    %v896 = vpop.f32.mrf.mxu0
    %v897 = vadd.f32 %v860, %v896
    %898 = vdwg.mxu0
    %v899 = vand.u32 %v349, 4294901760
    %900 = vmatpush.msra.mxu0 %v899
    %v901 = vand.u32 %v348, 4294901760
    %902 = vmatpush.msra.mxu0 %v901
    %v903 = vand.u32 %v347, 4294901760
    %904 = vmatpush.msra.mxu0 %v903
    %v905 = vand.u32 %v346, 4294901760
    %906 = vmatpush.msra.mxu0 %v905
    %v907 = vand.u32 %v345, 4294901760
    %908 = vmatpush.msra.mxu0 %v907
    %v909 = vand.u32 %v344, 4294901760
    %910 = vmatpush.msra.mxu0 %v909
    %v911 = vand.u32 %v343, 4294901760
    %912 = vmatpush.msra.mxu0 %v911
    %v913 = vand.u32 %v342, 4294901760
    %914 = vmatpush.msra.mxu0 %v913
    %v915 = vand.u32 %v341, 4294901760
    %916 = vmatpush.msra.mxu0 %v915
    %v917 = vand.u32 %v340, 4294901760
    %918 = vmatpush.msra.mxu0 %v917
    %v919 = vand.u32 %v339, 4294901760
    %920 = vmatpush.msra.mxu0 %v919
    %v921 = vand.u32 %v338, 4294901760
    %922 = vmatpush.msra.mxu0 %v921
    %v923 = vand.u32 %v337, 4294901760
    %924 = vmatpush.msra.mxu0 %v923
    %v925 = vand.u32 %v336, 4294901760
    %926 = vmatpush.msra.mxu0 %v925
    %v927 = vand.u32 %v335, 4294901760
    %928 = vmatpush.msra.mxu0 %v927
    %v929 = vand.u32 %v334, 4294901760
    %930 = vmatpush.msra.mxu0 %v929
    %v931 = vand.u32 %v304, 4294901760
    %v932 = vsub.f32 %v304, %v931
    %v933 = vand.u32 %v932, 4294901760
    %v934 = vsub.f32 %v932, %v933
    %v935 = vand.u32 %v934, 4294901760
    %936 = vmatmul.f32.gmra.mxu0 %v935
    %v937 = vpop.f32.mrf.mxu0
    %v938 = vadd.f32 %v897, %v937
    %939 = vdwg.mxu0
    %v940 = vand.u32 %v349, 4294901760
    %v941 = vsub.f32 %v349, %v940
    %v942 = vand.u32 %v941, 4294901760
    %v943 = vsub.f32 %v941, %v942
    %v944 = vand.u32 %v943, 4294901760
    %945 = vmatpush.msra.mxu0 %v944
    %v946 = vand.u32 %v348, 4294901760
    %v947 = vsub.f32 %v348, %v946
    %v948 = vand.u32 %v947, 4294901760
    %v949 = vsub.f32 %v947, %v948
    %v950 = vand.u32 %v949, 4294901760
    %951 = vmatpush.msra.mxu0 %v950
    %v952 = vand.u32 %v347, 4294901760
    %v953 = vsub.f32 %v347, %v952
    %v954 = vand.u32 %v953, 4294901760
    %v955 = vsub.f32 %v953, %v954
    %v956 = vand.u32 %v955, 4294901760
    %957 = vmatpush.msra.mxu0 %v956
    %v958 = vand.u32 %v346, 4294901760
    %v959 = vsub.f32 %v346, %v958
    %v960 = vand.u32 %v959, 4294901760
    %v961 = vsub.f32 %v959, %v960
    %v962 = vand.u32 %v961, 4294901760
    %963 = vmatpush.msra.mxu0 %v962
    %v964 = vand.u32 %v345, 4294901760
    %v965 = vsub.f32 %v345, %v964
    %v966 = vand.u32 %v965, 4294901760
    %v967 = vsub.f32 %v965, %v966
    %v968 = vand.u32 %v967, 4294901760
    %969 = vmatpush.msra.mxu0 %v968
    %v970 = vand.u32 %v344, 4294901760
    %v971 = vsub.f32 %v344, %v970
    %v972 = vand.u32 %v971, 4294901760
    %v973 = vsub.f32 %v971, %v972
    %v974 = vand.u32 %v973, 4294901760
    %975 = vmatpush.msra.mxu0 %v974
    %v976 = vand.u32 %v343, 4294901760
    %v977 = vsub.f32 %v343, %v976
    %v978 = vand.u32 %v977, 4294901760
    %v979 = vsub.f32 %v977, %v978
    %v980 = vand.u32 %v979, 4294901760
    %981 = vmatpush.msra.mxu0 %v980
    %v982 = vand.u32 %v342, 4294901760
    %v983 = vsub.f32 %v342, %v982
    %v984 = vand.u32 %v983, 4294901760
    %v985 = vsub.f32 %v983, %v984
    %v986 = vand.u32 %v985, 4294901760
    %987 = vmatpush.msra.mxu0 %v986
    %v988 = vand.u32 %v341, 4294901760
    %v989 = vsub.f32 %v341, %v988
    %v990 = vand.u32 %v989, 4294901760
    %v991 = vsub.f32 %v989, %v990
    %v992 = vand.u32 %v991, 4294901760
    %993 = vmatpush.msra.mxu0 %v992
    %v994 = vand.u32 %v340, 4294901760
    %v995 = vsub.f32 %v340, %v994
    %v996 = vand.u32 %v995, 4294901760
    %v997 = vsub.f32 %v995, %v996
    %v998 = vand.u32 %v997, 4294901760
    %999 = vmatpush.msra.mxu0 %v998
    %v1000 = vand.u32 %v339, 4294901760
    %v1001 = vsub.f32 %v339, %v1000
    %v1002 = vand.u32 %v1001, 4294901760
    %v1003 = vsub.f32 %v1001, %v1002
    %v1004 = vand.u32 %v1003, 4294901760
    %1005 = vmatpush.msra.mxu0 %v1004
    %v1006 = vand.u32 %v338, 4294901760
    %v1007 = vsub.f32 %v338, %v1006
    %v1008 = vand.u32 %v1007, 4294901760
    %v1009 = vsub.f32 %v1007, %v1008
    %v1010 = vand.u32 %v1009, 4294901760
    %1011 = vmatpush.msra.mxu0 %v1010
    %v1012 = vand.u32 %v337, 4294901760
    %v1013 = vsub.f32 %v337, %v1012
    %v1014 = vand.u32 %v1013, 4294901760
    %v1015 = vsub.f32 %v1013, %v1014
    %v1016 = vand.u32 %v1015, 4294901760
    %1017 = vmatpush.msra.mxu0 %v1016
    %v1018 = vand.u32 %v336, 4294901760
    %v1019 = vsub.f32 %v336, %v1018
    %v1020 = vand.u32 %v1019, 4294901760
    %v1021 = vsub.f32 %v1019, %v1020
    %v1022 = vand.u32 %v1021, 4294901760
    %1023 = vmatpush.msra.mxu0 %v1022
    %v1024 = vand.u32 %v335, 4294901760
    %v1025 = vsub.f32 %v335, %v1024
    %v1026 = vand.u32 %v1025, 4294901760
    %v1027 = vsub.f32 %v1025, %v1026
    %v1028 = vand.u32 %v1027, 4294901760
    %1029 = vmatpush.msra.mxu0 %v1028
    %v1030 = vand.u32 %v334, 4294901760
    %v1031 = vsub.f32 %v334, %v1030
    %v1032 = vand.u32 %v1031, 4294901760
    %v1033 = vsub.f32 %v1031, %v1032
    %v1034 = vand.u32 %v1033, 4294901760
    %1035 = vmatpush.msra.mxu0 %v1034
    %v1036 = vand.u32 %v304, 4294901760
    %1037 = vmatmul.f32.gmra.mxu0 %v1036
    %v1038 = vpop.f32.mrf.mxu0
    %v1039 = vadd.f32 %v938, %v1038
    %1040 = vdwg.mxu0
    %v1041 = vand.u32 %v349, 4294901760
    %v1042 = vsub.f32 %v349, %v1041
    %1043 = vmatpush.msra.mxu0 %v1042
    %v1044 = vand.u32 %v348, 4294901760
    %v1045 = vsub.f32 %v348, %v1044
    %1046 = vmatpush.msra.mxu0 %v1045
    %v1047 = vand.u32 %v347, 4294901760
    %v1048 = vsub.f32 %v347, %v1047
    %1049 = vmatpush.msra.mxu0 %v1048
    %v1050 = vand.u32 %v346, 4294901760
    %v1051 = vsub.f32 %v346, %v1050
    %1052 = vmatpush.msra.mxu0 %v1051
    %v1053 = vand.u32 %v345, 4294901760
    %v1054 = vsub.f32 %v345, %v1053
    %1055 = vmatpush.msra.mxu0 %v1054
    %v1056 = vand.u32 %v344, 4294901760
    %v1057 = vsub.f32 %v344, %v1056
    %1058 = vmatpush.msra.mxu0 %v1057
    %v1059 = vand.u32 %v343, 4294901760
    %v1060 = vsub.f32 %v343, %v1059
    %1061 = vmatpush.msra.mxu0 %v1060
    %v1062 = vand.u32 %v342, 4294901760
    %v1063 = vsub.f32 %v342, %v1062
    %1064 = vmatpush.msra.mxu0 %v1063
    %v1065 = vand.u32 %v341, 4294901760
    %v1066 = vsub.f32 %v341, %v1065
    %1067 = vmatpush.msra.mxu0 %v1066
    %v1068 = vand.u32 %v340, 4294901760
    %v1069 = vsub.f32 %v340, %v1068
    %1070 = vmatpush.msra.mxu0 %v1069
    %v1071 = vand.u32 %v339, 4294901760
    %v1072 = vsub.f32 %v339, %v1071
    %1073 = vmatpush.msra.mxu0 %v1072
    %v1074 = vand.u32 %v338, 4294901760
    %v1075 = vsub.f32 %v338, %v1074
    %1076 = vmatpush.msra.mxu0 %v1075
    %v1077 = vand.u32 %v337, 4294901760
    %v1078 = vsub.f32 %v337, %v1077
    %1079 = vmatpush.msra.mxu0 %v1078
    %v1080 = vand.u32 %v336, 4294901760
    %v1081 = vsub.f32 %v336, %v1080
    %1082 = vmatpush.msra.mxu0 %v1081
    %v1083 = vand.u32 %v335, 4294901760
    %v1084 = vsub.f32 %v335, %v1083
    %1085 = vmatpush.msra.mxu0 %v1084
    %v1086 = vand.u32 %v334, 4294901760
    %v1087 = vsub.f32 %v334, %v1086
    %1088 = vmatpush.msra.mxu0 %v1087
    %v1089 = vand.u32 %v304, 4294901760
    %v1090 = vsub.f32 %v304, %v1089
    %1091 = vmatmul.f32.gmra.mxu0 %v1090
    %v1092 = vpop.f32.mrf.mxu0
    %v1093 = vadd.f32 %v1039, %v1092
    %1094 = vdwg.mxu0
    %v1095 = vand.u32 %v349, 4294901760
    %1096 = vmatpush.msra.mxu0 %v1095
    %v1097 = vand.u32 %v348, 4294901760
    %1098 = vmatpush.msra.mxu0 %v1097
    %v1099 = vand.u32 %v347, 4294901760
    %1100 = vmatpush.msra.mxu0 %v1099
    %v1101 = vand.u32 %v346, 4294901760
    %1102 = vmatpush.msra.mxu0 %v1101
    %v1103 = vand.u32 %v345, 4294901760
    %1104 = vmatpush.msra.mxu0 %v1103
    %v1105 = vand.u32 %v344, 4294901760
    %1106 = vmatpush.msra.mxu0 %v1105
    %v1107 = vand.u32 %v343, 4294901760
    %1108 = vmatpush.msra.mxu0 %v1107
    %v1109 = vand.u32 %v342, 4294901760
    %1110 = vmatpush.msra.mxu0 %v1109
    %v1111 = vand.u32 %v341, 4294901760
    %1112 = vmatpush.msra.mxu0 %v1111
    %v1113 = vand.u32 %v340, 4294901760
    %1114 = vmatpush.msra.mxu0 %v1113
    %v1115 = vand.u32 %v339, 4294901760
    %1116 = vmatpush.msra.mxu0 %v1115
    %v1117 = vand.u32 %v338, 4294901760
    %1118 = vmatpush.msra.mxu0 %v1117
    %v1119 = vand.u32 %v337, 4294901760
    %1120 = vmatpush.msra.mxu0 %v1119
    %v1121 = vand.u32 %v336, 4294901760
    %1122 = vmatpush.msra.mxu0 %v1121
    %v1123 = vand.u32 %v335, 4294901760
    %1124 = vmatpush.msra.mxu0 %v1123
    %v1125 = vand.u32 %v334, 4294901760
    %1126 = vmatpush.msra.mxu0 %v1125
    %v1127 = vand.u32 %v304, 4294901760
    %v1128 = vsub.f32 %v304, %v1127
    %v1129 = vand.u32 %v1128, 4294901760
    %1130 = vmatmul.f32.gmra.mxu0 %v1129
    %v1131 = vpop.f32.mrf.mxu0
    %v1132 = vadd.f32 %v1093, %v1131
    %1133 = vdwg.mxu0
    %v1134 = vand.u32 %v349, 4294901760
    %v1135 = vsub.f32 %v349, %v1134
    %v1136 = vand.u32 %v1135, 4294901760
    %1137 = vmatpush.msra.mxu0 %v1136
    %v1138 = vand.u32 %v348, 4294901760
    %v1139 = vsub.f32 %v348, %v1138
    %v1140 = vand.u32 %v1139, 4294901760
    %1141 = vmatpush.msra.mxu0 %v1140
    %v1142 = vand.u32 %v347, 4294901760
    %v1143 = vsub.f32 %v347, %v1142
    %v1144 = vand.u32 %v1143, 4294901760
    %1145 = vmatpush.msra.mxu0 %v1144
    %v1146 = vand.u32 %v346, 4294901760
    %v1147 = vsub.f32 %v346, %v1146
    %v1148 = vand.u32 %v1147, 4294901760
    %1149 = vmatpush.msra.mxu0 %v1148
    %v1150 = vand.u32 %v345, 4294901760
    %v1151 = vsub.f32 %v345, %v1150
    %v1152 = vand.u32 %v1151, 4294901760
    %1153 = vmatpush.msra.mxu0 %v1152
    %v1154 = vand.u32 %v344, 4294901760
    %v1155 = vsub.f32 %v344, %v1154
    %v1156 = vand.u32 %v1155, 4294901760
    %1157 = vmatpush.msra.mxu0 %v1156
    %v1158 = vand.u32 %v343, 4294901760
    %v1159 = vsub.f32 %v343, %v1158
    %v1160 = vand.u32 %v1159, 4294901760
    %1161 = vmatpush.msra.mxu0 %v1160
    %v1162 = vand.u32 %v342, 4294901760
    %v1163 = vsub.f32 %v342, %v1162
    %v1164 = vand.u32 %v1163, 4294901760
    %1165 = vmatpush.msra.mxu0 %v1164
    %v1166 = vand.u32 %v341, 4294901760
    %v1167 = vsub.f32 %v341, %v1166
    %v1168 = vand.u32 %v1167, 4294901760
    %1169 = vmatpush.msra.mxu0 %v1168
    %v1170 = vand.u32 %v340, 4294901760
    %v1171 = vsub.f32 %v340, %v1170
    %v1172 = vand.u32 %v1171, 4294901760
    %1173 = vmatpush.msra.mxu0 %v1172
    %v1174 = vand.u32 %v339, 4294901760
    %v1175 = vsub.f32 %v339, %v1174
    %v1176 = vand.u32 %v1175, 4294901760
    %1177 = vmatpush.msra.mxu0 %v1176
    %v1178 = vand.u32 %v338, 4294901760
    %v1179 = vsub.f32 %v338, %v1178
    %v1180 = vand.u32 %v1179, 4294901760
    %1181 = vmatpush.msra.mxu0 %v1180
    %v1182 = vand.u32 %v337, 4294901760
    %v1183 = vsub.f32 %v337, %v1182
    %v1184 = vand.u32 %v1183, 4294901760
    %1185 = vmatpush.msra.mxu0 %v1184
    %v1186 = vand.u32 %v336, 4294901760
    %v1187 = vsub.f32 %v336, %v1186
    %v1188 = vand.u32 %v1187, 4294901760
    %1189 = vmatpush.msra.mxu0 %v1188
    %v1190 = vand.u32 %v335, 4294901760
    %v1191 = vsub.f32 %v335, %v1190
    %v1192 = vand.u32 %v1191, 4294901760
    %1193 = vmatpush.msra.mxu0 %v1192
    %v1194 = vand.u32 %v334, 4294901760
    %v1195 = vsub.f32 %v334, %v1194
    %v1196 = vand.u32 %v1195, 4294901760
    %1197 = vmatpush.msra.mxu0 %v1196
    %v1198 = vand.u32 %v304, 4294901760
    %1199 = vmatmul.f32.gmra.mxu0 %v1198
    %v1200 = vpop.f32.mrf.mxu0
    %v1201 = vadd.f32 %v1132, %v1200
    %1202 = vdwg.mxu0
    %v1203 = vand.u32 %v349, 4294901760
    %1204 = vmatpush.msra.mxu0 %v1203
    %v1205 = vand.u32 %v348, 4294901760
    %1206 = vmatpush.msra.mxu0 %v1205
    %v1207 = vand.u32 %v347, 4294901760
    %1208 = vmatpush.msra.mxu0 %v1207
    %v1209 = vand.u32 %v346, 4294901760
    %1210 = vmatpush.msra.mxu0 %v1209
    %v1211 = vand.u32 %v345, 4294901760
    %1212 = vmatpush.msra.mxu0 %v1211
    %v1213 = vand.u32 %v344, 4294901760
    %1214 = vmatpush.msra.mxu0 %v1213
    %v1215 = vand.u32 %v343, 4294901760
    %1216 = vmatpush.msra.mxu0 %v1215
    %v1217 = vand.u32 %v342, 4294901760
    %1218 = vmatpush.msra.mxu0 %v1217
    %v1219 = vand.u32 %v341, 4294901760
    %1220 = vmatpush.msra.mxu0 %v1219
    %v1221 = vand.u32 %v340, 4294901760
    %1222 = vmatpush.msra.mxu0 %v1221
    %v1223 = vand.u32 %v339, 4294901760
    %1224 = vmatpush.msra.mxu0 %v1223
    %v1225 = vand.u32 %v338, 4294901760
    %1226 = vmatpush.msra.mxu0 %v1225
    %v1227 = vand.u32 %v337, 4294901760
    %1228 = vmatpush.msra.mxu0 %v1227
    %v1229 = vand.u32 %v336, 4294901760
    %1230 = vmatpush.msra.mxu0 %v1229
    %v1231 = vand.u32 %v335, 4294901760
    %1232 = vmatpush.msra.mxu0 %v1231
    %v1233 = vand.u32 %v334, 4294901760
    %1234 = vmatpush.msra.mxu0 %v1233
    %v1235 = vand.u32 %v304, 4294901760
    %1236 = vmatmul.f32.gmra.mxu0 %v1235
    %v1237 = vpop.f32.mrf.mxu0
    %v1238 = vadd.f32 %v1201, %v1237
    %1239 = vdwg.mxu0
    %v1240 = vand.u32 %v365, 4294901760
    %1241 = vmatpush.msra.mxu0 %v1240
    %v1242 = vand.u32 %v364, 4294901760
    %1243 = vmatpush.msra.mxu0 %v1242
    %v1244 = vand.u32 %v363, 4294901760
    %1245 = vmatpush.msra.mxu0 %v1244
    %v1246 = vand.u32 %v362, 4294901760
    %1247 = vmatpush.msra.mxu0 %v1246
    %v1248 = vand.u32 %v361, 4294901760
    %1249 = vmatpush.msra.mxu0 %v1248
    %v1250 = vand.u32 %v360, 4294901760
    %1251 = vmatpush.msra.mxu0 %v1250
    %v1252 = vand.u32 %v359, 4294901760
    %1253 = vmatpush.msra.mxu0 %v1252
    %v1254 = vand.u32 %v358, 4294901760
    %1255 = vmatpush.msra.mxu0 %v1254
    %v1256 = vand.u32 %v357, 4294901760
    %1257 = vmatpush.msra.mxu0 %v1256
    %v1258 = vand.u32 %v356, 4294901760
    %1259 = vmatpush.msra.mxu0 %v1258
    %v1260 = vand.u32 %v355, 4294901760
    %1261 = vmatpush.msra.mxu0 %v1260
    %v1262 = vand.u32 %v354, 4294901760
    %1263 = vmatpush.msra.mxu0 %v1262
    %v1264 = vand.u32 %v353, 4294901760
    %1265 = vmatpush.msra.mxu0 %v1264
    %v1266 = vand.u32 %v352, 4294901760
    %1267 = vmatpush.msra.mxu0 %v1266
    %v1268 = vand.u32 %v351, 4294901760
    %1269 = vmatpush.msra.mxu0 %v1268
    %v1270 = vand.u32 %v350, 4294901760
    %1271 = vmatpush.msra.mxu0 %v1270
    %v1272 = vand.u32 %v305, 4294901760
    %v1273 = vsub.f32 %v305, %v1272
    %v1274 = vand.u32 %v1273, 4294901760
    %v1275 = vsub.f32 %v1273, %v1274
    %v1276 = vand.u32 %v1275, 4294901760
    %1277 = vmatmul.f32.gmra.mxu0 %v1276
    %v1278 = vpop.f32.mrf.mxu0
    %v1279 = vadd.f32 %v1238, %v1278
    %1280 = vdwg.mxu0
    %v1281 = vand.u32 %v365, 4294901760
    %v1282 = vsub.f32 %v365, %v1281
    %v1283 = vand.u32 %v1282, 4294901760
    %v1284 = vsub.f32 %v1282, %v1283
    %v1285 = vand.u32 %v1284, 4294901760
    %1286 = vmatpush.msra.mxu0 %v1285
    %v1287 = vand.u32 %v364, 4294901760
    %v1288 = vsub.f32 %v364, %v1287
    %v1289 = vand.u32 %v1288, 4294901760
    %v1290 = vsub.f32 %v1288, %v1289
    %v1291 = vand.u32 %v1290, 4294901760
    %1292 = vmatpush.msra.mxu0 %v1291
    %v1293 = vand.u32 %v363, 4294901760
    %v1294 = vsub.f32 %v363, %v1293
    %v1295 = vand.u32 %v1294, 4294901760
    %v1296 = vsub.f32 %v1294, %v1295
    %v1297 = vand.u32 %v1296, 4294901760
    %1298 = vmatpush.msra.mxu0 %v1297
    %v1299 = vand.u32 %v362, 4294901760
    %v1300 = vsub.f32 %v362, %v1299
    %v1301 = vand.u32 %v1300, 4294901760
    %v1302 = vsub.f32 %v1300, %v1301
    %v1303 = vand.u32 %v1302, 4294901760
    %1304 = vmatpush.msra.mxu0 %v1303
    %v1305 = vand.u32 %v361, 4294901760
    %v1306 = vsub.f32 %v361, %v1305
    %v1307 = vand.u32 %v1306, 4294901760
    %v1308 = vsub.f32 %v1306, %v1307
    %v1309 = vand.u32 %v1308, 4294901760
    %1310 = vmatpush.msra.mxu0 %v1309
    %v1311 = vand.u32 %v360, 4294901760
    %v1312 = vsub.f32 %v360, %v1311
    %v1313 = vand.u32 %v1312, 4294901760
    %v1314 = vsub.f32 %v1312, %v1313
    %v1315 = vand.u32 %v1314, 4294901760
    %1316 = vmatpush.msra.mxu0 %v1315
    %v1317 = vand.u32 %v359, 4294901760
    %v1318 = vsub.f32 %v359, %v1317
    %v1319 = vand.u32 %v1318, 4294901760
    %v1320 = vsub.f32 %v1318, %v1319
    %v1321 = vand.u32 %v1320, 4294901760
    %1322 = vmatpush.msra.mxu0 %v1321
    %v1323 = vand.u32 %v358, 4294901760
    %v1324 = vsub.f32 %v358, %v1323
    %v1325 = vand.u32 %v1324, 4294901760
    %v1326 = vsub.f32 %v1324, %v1325
    %v1327 = vand.u32 %v1326, 4294901760
    %1328 = vmatpush.msra.mxu0 %v1327
    %v1329 = vand.u32 %v357, 4294901760
    %v1330 = vsub.f32 %v357, %v1329
    %v1331 = vand.u32 %v1330, 4294901760
    %v1332 = vsub.f32 %v1330, %v1331
    %v1333 = vand.u32 %v1332, 4294901760
    %1334 = vmatpush.msra.mxu0 %v1333
    %v1335 = vand.u32 %v356, 4294901760
    %v1336 = vsub.f32 %v356, %v1335
    %v1337 = vand.u32 %v1336, 4294901760
    %v1338 = vsub.f32 %v1336, %v1337
    %v1339 = vand.u32 %v1338, 4294901760
    %1340 = vmatpush.msra.mxu0 %v1339
    %v1341 = vand.u32 %v355, 4294901760
    %v1342 = vsub.f32 %v355, %v1341
    %v1343 = vand.u32 %v1342, 4294901760
    %v1344 = vsub.f32 %v1342, %v1343
    %v1345 = vand.u32 %v1344, 4294901760
    %1346 = vmatpush.msra.mxu0 %v1345
    %v1347 = vand.u32 %v354, 4294901760
    %v1348 = vsub.f32 %v354, %v1347
    %v1349 = vand.u32 %v1348, 4294901760
    %v1350 = vsub.f32 %v1348, %v1349
    %v1351 = vand.u32 %v1350, 4294901760
    %1352 = vmatpush.msra.mxu0 %v1351
    %v1353 = vand.u32 %v353, 4294901760
    %v1354 = vsub.f32 %v353, %v1353
    %v1355 = vand.u32 %v1354, 4294901760
    %v1356 = vsub.f32 %v1354, %v1355
    %v1357 = vand.u32 %v1356, 4294901760
    %1358 = vmatpush.msra.mxu0 %v1357
    %v1359 = vand.u32 %v352, 4294901760
    %v1360 = vsub.f32 %v352, %v1359
    %v1361 = vand.u32 %v1360, 4294901760
    %v1362 = vsub.f32 %v1360, %v1361
    %v1363 = vand.u32 %v1362, 4294901760
    %1364 = vmatpush.msra.mxu0 %v1363
    %v1365 = vand.u32 %v351, 4294901760
    %v1366 = vsub.f32 %v351, %v1365
    %v1367 = vand.u32 %v1366, 4294901760
    %v1368 = vsub.f32 %v1366, %v1367
    %v1369 = vand.u32 %v1368, 4294901760
    %1370 = vmatpush.msra.mxu0 %v1369
    %v1371 = vand.u32 %v350, 4294901760
    %v1372 = vsub.f32 %v350, %v1371
    %v1373 = vand.u32 %v1372, 4294901760
    %v1374 = vsub.f32 %v1372, %v1373
    %v1375 = vand.u32 %v1374, 4294901760
    %1376 = vmatpush.msra.mxu0 %v1375
    %v1377 = vand.u32 %v305, 4294901760
    %1378 = vmatmul.f32.gmra.mxu0 %v1377
    %v1379 = vpop.f32.mrf.mxu0
    %v1380 = vadd.f32 %v1279, %v1379
    %1381 = vdwg.mxu0
    %v1382 = vand.u32 %v365, 4294901760
    %v1383 = vsub.f32 %v365, %v1382
    %1384 = vmatpush.msra.mxu0 %v1383
    %v1385 = vand.u32 %v364, 4294901760
    %v1386 = vsub.f32 %v364, %v1385
    %1387 = vmatpush.msra.mxu0 %v1386
    %v1388 = vand.u32 %v363, 4294901760
    %v1389 = vsub.f32 %v363, %v1388
    %1390 = vmatpush.msra.mxu0 %v1389
    %v1391 = vand.u32 %v362, 4294901760
    %v1392 = vsub.f32 %v362, %v1391
    %1393 = vmatpush.msra.mxu0 %v1392
    %v1394 = vand.u32 %v361, 4294901760
    %v1395 = vsub.f32 %v361, %v1394
    %1396 = vmatpush.msra.mxu0 %v1395
    %v1397 = vand.u32 %v360, 4294901760
    %v1398 = vsub.f32 %v360, %v1397
    %1399 = vmatpush.msra.mxu0 %v1398
    %v1400 = vand.u32 %v359, 4294901760
    %v1401 = vsub.f32 %v359, %v1400
    %1402 = vmatpush.msra.mxu0 %v1401
    %v1403 = vand.u32 %v358, 4294901760
    %v1404 = vsub.f32 %v358, %v1403
    %1405 = vmatpush.msra.mxu0 %v1404
    %v1406 = vand.u32 %v357, 4294901760
    %v1407 = vsub.f32 %v357, %v1406
    %1408 = vmatpush.msra.mxu0 %v1407
    %v1409 = vand.u32 %v356, 4294901760
    %v1410 = vsub.f32 %v356, %v1409
    %1411 = vmatpush.msra.mxu0 %v1410
    %v1412 = vand.u32 %v355, 4294901760
    %v1413 = vsub.f32 %v355, %v1412
    %1414 = vmatpush.msra.mxu0 %v1413
    %v1415 = vand.u32 %v354, 4294901760
    %v1416 = vsub.f32 %v354, %v1415
    %1417 = vmatpush.msra.mxu0 %v1416
    %v1418 = vand.u32 %v353, 4294901760
    %v1419 = vsub.f32 %v353, %v1418
    %1420 = vmatpush.msra.mxu0 %v1419
    %v1421 = vand.u32 %v352, 4294901760
    %v1422 = vsub.f32 %v352, %v1421
    %1423 = vmatpush.msra.mxu0 %v1422
    %v1424 = vand.u32 %v351, 4294901760
    %v1425 = vsub.f32 %v351, %v1424
    %1426 = vmatpush.msra.mxu0 %v1425
    %v1427 = vand.u32 %v350, 4294901760
    %v1428 = vsub.f32 %v350, %v1427
    %1429 = vmatpush.msra.mxu0 %v1428
    %v1430 = vand.u32 %v305, 4294901760
    %v1431 = vsub.f32 %v305, %v1430
    %1432 = vmatmul.f32.gmra.mxu0 %v1431
    %v1433 = vpop.f32.mrf.mxu0
    %v1434 = vadd.f32 %v1380, %v1433
    %1435 = vdwg.mxu0
    %v1436 = vand.u32 %v365, 4294901760
    %1437 = vmatpush.msra.mxu0 %v1436
    %v1438 = vand.u32 %v364, 4294901760
    %1439 = vmatpush.msra.mxu0 %v1438
    %v1440 = vand.u32 %v363, 4294901760
    %1441 = vmatpush.msra.mxu0 %v1440
    %v1442 = vand.u32 %v362, 4294901760
    %1443 = vmatpush.msra.mxu0 %v1442
    %v1444 = vand.u32 %v361, 4294901760
    %1445 = vmatpush.msra.mxu0 %v1444
    %v1446 = vand.u32 %v360, 4294901760
    %1447 = vmatpush.msra.mxu0 %v1446
    %v1448 = vand.u32 %v359, 4294901760
    %1449 = vmatpush.msra.mxu0 %v1448
    %v1450 = vand.u32 %v358, 4294901760
    %1451 = vmatpush.msra.mxu0 %v1450
    %v1452 = vand.u32 %v357, 4294901760
    %1453 = vmatpush.msra.mxu0 %v1452
    %v1454 = vand.u32 %v356, 4294901760
    %1455 = vmatpush.msra.mxu0 %v1454
    %v1456 = vand.u32 %v355, 4294901760
    %1457 = vmatpush.msra.mxu0 %v1456
    %v1458 = vand.u32 %v354, 4294901760
    %1459 = vmatpush.msra.mxu0 %v1458
    %v1460 = vand.u32 %v353, 4294901760
    %1461 = vmatpush.msra.mxu0 %v1460
    %v1462 = vand.u32 %v352, 4294901760
    %1463 = vmatpush.msra.mxu0 %v1462
    %v1464 = vand.u32 %v351, 4294901760
    %1465 = vmatpush.msra.mxu0 %v1464
    %v1466 = vand.u32 %v350, 4294901760
    %1467 = vmatpush.msra.mxu0 %v1466
    %v1468 = vand.u32 %v305, 4294901760
    %v1469 = vsub.f32 %v305, %v1468
    %v1470 = vand.u32 %v1469, 4294901760
    %1471 = vmatmul.f32.gmra.mxu0 %v1470
    %v1472 = vpop.f32.mrf.mxu0
    %v1473 = vadd.f32 %v1434, %v1472
    %1474 = vdwg.mxu0
    %v1475 = vand.u32 %v365, 4294901760
    %v1476 = vsub.f32 %v365, %v1475
    %v1477 = vand.u32 %v1476, 4294901760
    %1478 = vmatpush.msra.mxu0 %v1477
    %v1479 = vand.u32 %v364, 4294901760
    %v1480 = vsub.f32 %v364, %v1479
    %v1481 = vand.u32 %v1480, 4294901760
    %1482 = vmatpush.msra.mxu0 %v1481
    %v1483 = vand.u32 %v363, 4294901760
    %v1484 = vsub.f32 %v363, %v1483
    %v1485 = vand.u32 %v1484, 4294901760
    %1486 = vmatpush.msra.mxu0 %v1485
    %v1487 = vand.u32 %v362, 4294901760
    %v1488 = vsub.f32 %v362, %v1487
    %v1489 = vand.u32 %v1488, 4294901760
    %1490 = vmatpush.msra.mxu0 %v1489
    %v1491 = vand.u32 %v361, 4294901760
    %v1492 = vsub.f32 %v361, %v1491
    %v1493 = vand.u32 %v1492, 4294901760
    %1494 = vmatpush.msra.mxu0 %v1493
    %v1495 = vand.u32 %v360, 4294901760
    %v1496 = vsub.f32 %v360, %v1495
    %v1497 = vand.u32 %v1496, 4294901760
    %1498 = vmatpush.msra.mxu0 %v1497
    %v1499 = vand.u32 %v359, 4294901760
    %v1500 = vsub.f32 %v359, %v1499
    %v1501 = vand.u32 %v1500, 4294901760
    %1502 = vmatpush.msra.mxu0 %v1501
    %v1503 = vand.u32 %v358, 4294901760
    %v1504 = vsub.f32 %v358, %v1503
    %v1505 = vand.u32 %v1504, 4294901760
    %1506 = vmatpush.msra.mxu0 %v1505
    %v1507 = vand.u32 %v357, 4294901760
    %v1508 = vsub.f32 %v357, %v1507
    %v1509 = vand.u32 %v1508, 4294901760
    %1510 = vmatpush.msra.mxu0 %v1509
    %v1511 = vand.u32 %v356, 4294901760
    %v1512 = vsub.f32 %v356, %v1511
    %v1513 = vand.u32 %v1512, 4294901760
    %1514 = vmatpush.msra.mxu0 %v1513
    %v1515 = vand.u32 %v355, 4294901760
    %v1516 = vsub.f32 %v355, %v1515
    %v1517 = vand.u32 %v1516, 4294901760
    %1518 = vmatpush.msra.mxu0 %v1517
    %v1519 = vand.u32 %v354, 4294901760
    %v1520 = vsub.f32 %v354, %v1519
    %v1521 = vand.u32 %v1520, 4294901760
    %1522 = vmatpush.msra.mxu0 %v1521
    %v1523 = vand.u32 %v353, 4294901760
    %v1524 = vsub.f32 %v353, %v1523
    %v1525 = vand.u32 %v1524, 4294901760
    %1526 = vmatpush.msra.mxu0 %v1525
    %v1527 = vand.u32 %v352, 4294901760
    %v1528 = vsub.f32 %v352, %v1527
    %v1529 = vand.u32 %v1528, 4294901760
    %1530 = vmatpush.msra.mxu0 %v1529
    %v1531 = vand.u32 %v351, 4294901760
    %v1532 = vsub.f32 %v351, %v1531
    %v1533 = vand.u32 %v1532, 4294901760
    %1534 = vmatpush.msra.mxu0 %v1533
    %v1535 = vand.u32 %v350, 4294901760
    %v1536 = vsub.f32 %v350, %v1535
    %v1537 = vand.u32 %v1536, 4294901760
    %1538 = vmatpush.msra.mxu0 %v1537
    %v1539 = vand.u32 %v305, 4294901760
    %1540 = vmatmul.f32.gmra.mxu0 %v1539
    %v1541 = vpop.f32.mrf.mxu0
    %v1542 = vadd.f32 %v1473, %v1541
    %1543 = vdwg.mxu0
    %v1544 = vand.u32 %v365, 4294901760
    %1545 = vmatpush.msra.mxu0 %v1544
    %v1546 = vand.u32 %v364, 4294901760
    %1547 = vmatpush.msra.mxu0 %v1546
    %v1548 = vand.u32 %v363, 4294901760
    %1549 = vmatpush.msra.mxu0 %v1548
    %v1550 = vand.u32 %v362, 4294901760
    %1551 = vmatpush.msra.mxu0 %v1550
    %v1552 = vand.u32 %v361, 4294901760
    %1553 = vmatpush.msra.mxu0 %v1552
    %v1554 = vand.u32 %v360, 4294901760
    %1555 = vmatpush.msra.mxu0 %v1554
    %v1556 = vand.u32 %v359, 4294901760
    %1557 = vmatpush.msra.mxu0 %v1556
    %v1558 = vand.u32 %v358, 4294901760
    %1559 = vmatpush.msra.mxu0 %v1558
    %v1560 = vand.u32 %v357, 4294901760
    %1561 = vmatpush.msra.mxu0 %v1560
    %v1562 = vand.u32 %v356, 4294901760
    %1563 = vmatpush.msra.mxu0 %v1562
    %v1564 = vand.u32 %v355, 4294901760
    %1565 = vmatpush.msra.mxu0 %v1564
    %v1566 = vand.u32 %v354, 4294901760
    %1567 = vmatpush.msra.mxu0 %v1566
    %v1568 = vand.u32 %v353, 4294901760
    %1569 = vmatpush.msra.mxu0 %v1568
    %v1570 = vand.u32 %v352, 4294901760
    %1571 = vmatpush.msra.mxu0 %v1570
    %v1572 = vand.u32 %v351, 4294901760
    %1573 = vmatpush.msra.mxu0 %v1572
    %v1574 = vand.u32 %v350, 4294901760
    %1575 = vmatpush.msra.mxu0 %v1574
    %v1576 = vand.u32 %v305, 4294901760
    %1577 = vmatmul.f32.gmra.mxu0 %v1576
    %v1578 = vpop.f32.mrf.mxu0
    %v1579 = vadd.f32 %v1542, %v1578
    %1580 = vdwg.mxu0
    %v1581 = vand.u32 %v381, 4294901760
    %1582 = vmatpush.msra.mxu0 %v1581
    %v1583 = vand.u32 %v380, 4294901760
    %1584 = vmatpush.msra.mxu0 %v1583
    %v1585 = vand.u32 %v379, 4294901760
    %1586 = vmatpush.msra.mxu0 %v1585
    %v1587 = vand.u32 %v378, 4294901760
    %1588 = vmatpush.msra.mxu0 %v1587
    %v1589 = vand.u32 %v377, 4294901760
    %1590 = vmatpush.msra.mxu0 %v1589
    %v1591 = vand.u32 %v376, 4294901760
    %1592 = vmatpush.msra.mxu0 %v1591
    %v1593 = vand.u32 %v375, 4294901760
    %1594 = vmatpush.msra.mxu0 %v1593
    %v1595 = vand.u32 %v374, 4294901760
    %1596 = vmatpush.msra.mxu0 %v1595
    %v1597 = vand.u32 %v373, 4294901760
    %1598 = vmatpush.msra.mxu0 %v1597
    %v1599 = vand.u32 %v372, 4294901760
    %1600 = vmatpush.msra.mxu0 %v1599
    %v1601 = vand.u32 %v371, 4294901760
    %1602 = vmatpush.msra.mxu0 %v1601
    %v1603 = vand.u32 %v370, 4294901760
    %1604 = vmatpush.msra.mxu0 %v1603
    %v1605 = vand.u32 %v369, 4294901760
    %1606 = vmatpush.msra.mxu0 %v1605
    %v1607 = vand.u32 %v368, 4294901760
    %1608 = vmatpush.msra.mxu0 %v1607
    %v1609 = vand.u32 %v367, 4294901760
    %1610 = vmatpush.msra.mxu0 %v1609
    %v1611 = vand.u32 %v366, 4294901760
    %1612 = vmatpush.msra.mxu0 %v1611
    %v1613 = vand.u32 %v306, 4294901760
    %v1614 = vsub.f32 %v306, %v1613
    %v1615 = vand.u32 %v1614, 4294901760
    %v1616 = vsub.f32 %v1614, %v1615
    %v1617 = vand.u32 %v1616, 4294901760
    %1618 = vmatmul.f32.gmra.mxu0 %v1617
    %v1619 = vpop.f32.mrf.mxu0
    %v1620 = vadd.f32 %v1579, %v1619
    %1621 = vdwg.mxu0
    %v1622 = vand.u32 %v381, 4294901760
    %v1623 = vsub.f32 %v381, %v1622
    %v1624 = vand.u32 %v1623, 4294901760
    %v1625 = vsub.f32 %v1623, %v1624
    %v1626 = vand.u32 %v1625, 4294901760
    %1627 = vmatpush.msra.mxu0 %v1626
    %v1628 = vand.u32 %v380, 4294901760
    %v1629 = vsub.f32 %v380, %v1628
    %v1630 = vand.u32 %v1629, 4294901760
    %v1631 = vsub.f32 %v1629, %v1630
    %v1632 = vand.u32 %v1631, 4294901760
    %1633 = vmatpush.msra.mxu0 %v1632
    %v1634 = vand.u32 %v379, 4294901760
    %v1635 = vsub.f32 %v379, %v1634
    %v1636 = vand.u32 %v1635, 4294901760
    %v1637 = vsub.f32 %v1635, %v1636
    %v1638 = vand.u32 %v1637, 4294901760
    %1639 = vmatpush.msra.mxu0 %v1638
    %v1640 = vand.u32 %v378, 4294901760
    %v1641 = vsub.f32 %v378, %v1640
    %v1642 = vand.u32 %v1641, 4294901760
    %v1643 = vsub.f32 %v1641, %v1642
    %v1644 = vand.u32 %v1643, 4294901760
    %1645 = vmatpush.msra.mxu0 %v1644
    %v1646 = vand.u32 %v377, 4294901760
    %v1647 = vsub.f32 %v377, %v1646
    %v1648 = vand.u32 %v1647, 4294901760
    %v1649 = vsub.f32 %v1647, %v1648
    %v1650 = vand.u32 %v1649, 4294901760
    %1651 = vmatpush.msra.mxu0 %v1650
    %v1652 = vand.u32 %v376, 4294901760
    %v1653 = vsub.f32 %v376, %v1652
    %v1654 = vand.u32 %v1653, 4294901760
    %v1655 = vsub.f32 %v1653, %v1654
    %v1656 = vand.u32 %v1655, 4294901760
    %1657 = vmatpush.msra.mxu0 %v1656
    %v1658 = vand.u32 %v375, 4294901760
    %v1659 = vsub.f32 %v375, %v1658
    %v1660 = vand.u32 %v1659, 4294901760
    %v1661 = vsub.f32 %v1659, %v1660
    %v1662 = vand.u32 %v1661, 4294901760
    %1663 = vmatpush.msra.mxu0 %v1662
    %v1664 = vand.u32 %v374, 4294901760
    %v1665 = vsub.f32 %v374, %v1664
    %v1666 = vand.u32 %v1665, 4294901760
    %v1667 = vsub.f32 %v1665, %v1666
    %v1668 = vand.u32 %v1667, 4294901760
    %1669 = vmatpush.msra.mxu0 %v1668
    %v1670 = vand.u32 %v373, 4294901760
    %v1671 = vsub.f32 %v373, %v1670
    %v1672 = vand.u32 %v1671, 4294901760
    %v1673 = vsub.f32 %v1671, %v1672
    %v1674 = vand.u32 %v1673, 4294901760
    %1675 = vmatpush.msra.mxu0 %v1674
    %v1676 = vand.u32 %v372, 4294901760
    %v1677 = vsub.f32 %v372, %v1676
    %v1678 = vand.u32 %v1677, 4294901760
    %v1679 = vsub.f32 %v1677, %v1678
    %v1680 = vand.u32 %v1679, 4294901760
    %1681 = vmatpush.msra.mxu0 %v1680
    %v1682 = vand.u32 %v371, 4294901760
    %v1683 = vsub.f32 %v371, %v1682
    %v1684 = vand.u32 %v1683, 4294901760
    %v1685 = vsub.f32 %v1683, %v1684
    %v1686 = vand.u32 %v1685, 4294901760
    %1687 = vmatpush.msra.mxu0 %v1686
    %v1688 = vand.u32 %v370, 4294901760
    %v1689 = vsub.f32 %v370, %v1688
    %v1690 = vand.u32 %v1689, 4294901760
    %v1691 = vsub.f32 %v1689, %v1690
    %v1692 = vand.u32 %v1691, 4294901760
    %1693 = vmatpush.msra.mxu0 %v1692
    %v1694 = vand.u32 %v369, 4294901760
    %v1695 = vsub.f32 %v369, %v1694
    %v1696 = vand.u32 %v1695, 4294901760
    %v1697 = vsub.f32 %v1695, %v1696
    %v1698 = vand.u32 %v1697, 4294901760
    %1699 = vmatpush.msra.mxu0 %v1698
    %v1700 = vand.u32 %v368, 4294901760
    %v1701 = vsub.f32 %v368, %v1700
    %v1702 = vand.u32 %v1701, 4294901760
    %v1703 = vsub.f32 %v1701, %v1702
    %v1704 = vand.u32 %v1703, 4294901760
    %1705 = vmatpush.msra.mxu0 %v1704
    %v1706 = vand.u32 %v367, 4294901760
    %v1707 = vsub.f32 %v367, %v1706
    %v1708 = vand.u32 %v1707, 4294901760
    %v1709 = vsub.f32 %v1707, %v1708
    %v1710 = vand.u32 %v1709, 4294901760
    %1711 = vmatpush.msra.mxu0 %v1710
    %v1712 = vand.u32 %v366, 4294901760
    %v1713 = vsub.f32 %v366, %v1712
    %v1714 = vand.u32 %v1713, 4294901760
    %v1715 = vsub.f32 %v1713, %v1714
    %v1716 = vand.u32 %v1715, 4294901760
    %1717 = vmatpush.msra.mxu0 %v1716
    %v1718 = vand.u32 %v306, 4294901760
    %1719 = vmatmul.f32.gmra.mxu0 %v1718
    %v1720 = vpop.f32.mrf.mxu0
    %v1721 = vadd.f32 %v1620, %v1720
    %1722 = vdwg.mxu0
    %v1723 = vand.u32 %v381, 4294901760
    %v1724 = vsub.f32 %v381, %v1723
    %1725 = vmatpush.msra.mxu0 %v1724
    %v1726 = vand.u32 %v380, 4294901760
    %v1727 = vsub.f32 %v380, %v1726
    %1728 = vmatpush.msra.mxu0 %v1727
    %v1729 = vand.u32 %v379, 4294901760
    %v1730 = vsub.f32 %v379, %v1729
    %1731 = vmatpush.msra.mxu0 %v1730
    %v1732 = vand.u32 %v378, 4294901760
    %v1733 = vsub.f32 %v378, %v1732
    %1734 = vmatpush.msra.mxu0 %v1733
    %v1735 = vand.u32 %v377, 4294901760
    %v1736 = vsub.f32 %v377, %v1735
    %1737 = vmatpush.msra.mxu0 %v1736
    %v1738 = vand.u32 %v376, 4294901760
    %v1739 = vsub.f32 %v376, %v1738
    %1740 = vmatpush.msra.mxu0 %v1739
    %v1741 = vand.u32 %v375, 4294901760
    %v1742 = vsub.f32 %v375, %v1741
    %1743 = vmatpush.msra.mxu0 %v1742
    %v1744 = vand.u32 %v374, 4294901760
    %v1745 = vsub.f32 %v374, %v1744
    %1746 = vmatpush.msra.mxu0 %v1745
    %v1747 = vand.u32 %v373, 4294901760
    %v1748 = vsub.f32 %v373, %v1747
    %1749 = vmatpush.msra.mxu0 %v1748
    %v1750 = vand.u32 %v372, 4294901760
    %v1751 = vsub.f32 %v372, %v1750
    %1752 = vmatpush.msra.mxu0 %v1751
    %v1753 = vand.u32 %v371, 4294901760
    %v1754 = vsub.f32 %v371, %v1753
    %1755 = vmatpush.msra.mxu0 %v1754
    %v1756 = vand.u32 %v370, 4294901760
    %v1757 = vsub.f32 %v370, %v1756
    %1758 = vmatpush.msra.mxu0 %v1757
    %v1759 = vand.u32 %v369, 4294901760
    %v1760 = vsub.f32 %v369, %v1759
    %1761 = vmatpush.msra.mxu0 %v1760
    %v1762 = vand.u32 %v368, 4294901760
    %v1763 = vsub.f32 %v368, %v1762
    %1764 = vmatpush.msra.mxu0 %v1763
    %v1765 = vand.u32 %v367, 4294901760
    %v1766 = vsub.f32 %v367, %v1765
    %1767 = vmatpush.msra.mxu0 %v1766
    %v1768 = vand.u32 %v366, 4294901760
    %v1769 = vsub.f32 %v366, %v1768
    %1770 = vmatpush.msra.mxu0 %v1769
    %v1771 = vand.u32 %v306, 4294901760
    %v1772 = vsub.f32 %v306, %v1771
    %1773 = vmatmul.f32.gmra.mxu0 %v1772
    %v1774 = vpop.f32.mrf.mxu0
    %v1775 = vadd.f32 %v1721, %v1774
    %1776 = vdwg.mxu0
    %v1777 = vand.u32 %v381, 4294901760
    %1778 = vmatpush.msra.mxu0 %v1777
    %v1779 = vand.u32 %v380, 4294901760
    %1780 = vmatpush.msra.mxu0 %v1779
    %v1781 = vand.u32 %v379, 4294901760
    %1782 = vmatpush.msra.mxu0 %v1781
    %v1783 = vand.u32 %v378, 4294901760
    %1784 = vmatpush.msra.mxu0 %v1783
    %v1785 = vand.u32 %v377, 4294901760
    %1786 = vmatpush.msra.mxu0 %v1785
    %v1787 = vand.u32 %v376, 4294901760
    %1788 = vmatpush.msra.mxu0 %v1787
    %v1789 = vand.u32 %v375, 4294901760
    %1790 = vmatpush.msra.mxu0 %v1789
    %v1791 = vand.u32 %v374, 4294901760
    %1792 = vmatpush.msra.mxu0 %v1791
    %v1793 = vand.u32 %v373, 4294901760
    %1794 = vmatpush.msra.mxu0 %v1793
    %v1795 = vand.u32 %v372, 4294901760
    %1796 = vmatpush.msra.mxu0 %v1795
    %v1797 = vand.u32 %v371, 4294901760
    %1798 = vmatpush.msra.mxu0 %v1797
    %v1799 = vand.u32 %v370, 4294901760
    %1800 = vmatpush.msra.mxu0 %v1799
    %v1801 = vand.u32 %v369, 4294901760
    %1802 = vmatpush.msra.mxu0 %v1801
    %v1803 = vand.u32 %v368, 4294901760
    %1804 = vmatpush.msra.mxu0 %v1803
    %v1805 = vand.u32 %v367, 4294901760
    %1806 = vmatpush.msra.mxu0 %v1805
    %v1807 = vand.u32 %v366, 4294901760
    %1808 = vmatpush.msra.mxu0 %v1807
    %v1809 = vand.u32 %v306, 4294901760
    %v1810 = vsub.f32 %v306, %v1809
    %v1811 = vand.u32 %v1810, 4294901760
    %1812 = vmatmul.f32.gmra.mxu0 %v1811
    %v1813 = vpop.f32.mrf.mxu0
    %v1814 = vadd.f32 %v1775, %v1813
    %1815 = vdwg.mxu0
    %v1816 = vand.u32 %v381, 4294901760
    %v1817 = vsub.f32 %v381, %v1816
    %v1818 = vand.u32 %v1817, 4294901760
    %1819 = vmatpush.msra.mxu0 %v1818
    %v1820 = vand.u32 %v380, 4294901760
    %v1821 = vsub.f32 %v380, %v1820
    %v1822 = vand.u32 %v1821, 4294901760
    %1823 = vmatpush.msra.mxu0 %v1822
    %v1824 = vand.u32 %v379, 4294901760
    %v1825 = vsub.f32 %v379, %v1824
    %v1826 = vand.u32 %v1825, 4294901760
    %1827 = vmatpush.msra.mxu0 %v1826
    %v1828 = vand.u32 %v378, 4294901760
    %v1829 = vsub.f32 %v378, %v1828
    %v1830 = vand.u32 %v1829, 4294901760
    %1831 = vmatpush.msra.mxu0 %v1830
    %v1832 = vand.u32 %v377, 4294901760
    %v1833 = vsub.f32 %v377, %v1832
    %v1834 = vand.u32 %v1833, 4294901760
    %1835 = vmatpush.msra.mxu0 %v1834
    %v1836 = vand.u32 %v376, 4294901760
    %v1837 = vsub.f32 %v376, %v1836
    %v1838 = vand.u32 %v1837, 4294901760
    %1839 = vmatpush.msra.mxu0 %v1838
    %v1840 = vand.u32 %v375, 4294901760
    %v1841 = vsub.f32 %v375, %v1840
    %v1842 = vand.u32 %v1841, 4294901760
    %1843 = vmatpush.msra.mxu0 %v1842
    %v1844 = vand.u32 %v374, 4294901760
    %v1845 = vsub.f32 %v374, %v1844
    %v1846 = vand.u32 %v1845, 4294901760
    %1847 = vmatpush.msra.mxu0 %v1846
    %v1848 = vand.u32 %v373, 4294901760
    %v1849 = vsub.f32 %v373, %v1848
    %v1850 = vand.u32 %v1849, 4294901760
    %1851 = vmatpush.msra.mxu0 %v1850
    %v1852 = vand.u32 %v372, 4294901760
    %v1853 = vsub.f32 %v372, %v1852
    %v1854 = vand.u32 %v1853, 4294901760
    %1855 = vmatpush.msra.mxu0 %v1854
    %v1856 = vand.u32 %v371, 4294901760
    %v1857 = vsub.f32 %v371, %v1856
    %v1858 = vand.u32 %v1857, 4294901760
    %1859 = vmatpush.msra.mxu0 %v1858
    %v1860 = vand.u32 %v370, 4294901760
    %v1861 = vsub.f32 %v370, %v1860
    %v1862 = vand.u32 %v1861, 4294901760
    %1863 = vmatpush.msra.mxu0 %v1862
    %v1864 = vand.u32 %v369, 4294901760
    %v1865 = vsub.f32 %v369, %v1864
    %v1866 = vand.u32 %v1865, 4294901760
    %1867 = vmatpush.msra.mxu0 %v1866
    %v1868 = vand.u32 %v368, 4294901760
    %v1869 = vsub.f32 %v368, %v1868
    %v1870 = vand.u32 %v1869, 4294901760
    %1871 = vmatpush.msra.mxu0 %v1870
    %v1872 = vand.u32 %v367, 4294901760
    %v1873 = vsub.f32 %v367, %v1872
    %v1874 = vand.u32 %v1873, 4294901760
    %1875 = vmatpush.msra.mxu0 %v1874
    %v1876 = vand.u32 %v366, 4294901760
    %v1877 = vsub.f32 %v366, %v1876
    %v1878 = vand.u32 %v1877, 4294901760
    %1879 = vmatpush.msra.mxu0 %v1878
    %v1880 = vand.u32 %v306, 4294901760
    %1881 = vmatmul.f32.gmra.mxu0 %v1880
    %v1882 = vpop.f32.mrf.mxu0
    %v1883 = vadd.f32 %v1814, %v1882
    %1884 = vdwg.mxu0
    %v1885 = vand.u32 %v381, 4294901760
    %1886 = vmatpush.msra.mxu0 %v1885
    %v1887 = vand.u32 %v380, 4294901760
    %1888 = vmatpush.msra.mxu0 %v1887
    %v1889 = vand.u32 %v379, 4294901760
    %1890 = vmatpush.msra.mxu0 %v1889
    %v1891 = vand.u32 %v378, 4294901760
    %1892 = vmatpush.msra.mxu0 %v1891
    %v1893 = vand.u32 %v377, 4294901760
    %1894 = vmatpush.msra.mxu0 %v1893
    %v1895 = vand.u32 %v376, 4294901760
    %1896 = vmatpush.msra.mxu0 %v1895
    %v1897 = vand.u32 %v375, 4294901760
    %1898 = vmatpush.msra.mxu0 %v1897
    %v1899 = vand.u32 %v374, 4294901760
    %1900 = vmatpush.msra.mxu0 %v1899
    %v1901 = vand.u32 %v373, 4294901760
    %1902 = vmatpush.msra.mxu0 %v1901
    %v1903 = vand.u32 %v372, 4294901760
    %1904 = vmatpush.msra.mxu0 %v1903
    %v1905 = vand.u32 %v371, 4294901760
    %1906 = vmatpush.msra.mxu0 %v1905
    %v1907 = vand.u32 %v370, 4294901760
    %1908 = vmatpush.msra.mxu0 %v1907
    %v1909 = vand.u32 %v369, 4294901760
    %1910 = vmatpush.msra.mxu0 %v1909
    %v1911 = vand.u32 %v368, 4294901760
    %1912 = vmatpush.msra.mxu0 %v1911
    %v1913 = vand.u32 %v367, 4294901760
    %1914 = vmatpush.msra.mxu0 %v1913
    %v1915 = vand.u32 %v366, 4294901760
    %1916 = vmatpush.msra.mxu0 %v1915
    %v1917 = vand.u32 %v306, 4294901760
    %1918 = vmatmul.f32.gmra.mxu0 %v1917
    %v1919 = vpop.f32.mrf.mxu0
    %v1920 = vadd.f32 %v1883, %v1919
    %1921 = vdwg.mxu0
    %v1922 = vand.u32 %v397, 4294901760
    %1923 = vmatpush.msra.mxu0 %v1922
    %v1924 = vand.u32 %v396, 4294901760
    %1925 = vmatpush.msra.mxu0 %v1924
    %v1926 = vand.u32 %v395, 4294901760
    %1927 = vmatpush.msra.mxu0 %v1926
    %v1928 = vand.u32 %v394, 4294901760
    %1929 = vmatpush.msra.mxu0 %v1928
    %v1930 = vand.u32 %v393, 4294901760
    %1931 = vmatpush.msra.mxu0 %v1930
    %v1932 = vand.u32 %v392, 4294901760
    %1933 = vmatpush.msra.mxu0 %v1932
    %v1934 = vand.u32 %v391, 4294901760
    %1935 = vmatpush.msra.mxu0 %v1934
    %v1936 = vand.u32 %v390, 4294901760
    %1937 = vmatpush.msra.mxu0 %v1936
    %v1938 = vand.u32 %v389, 4294901760
    %1939 = vmatpush.msra.mxu0 %v1938
    %v1940 = vand.u32 %v388, 4294901760
    %1941 = vmatpush.msra.mxu0 %v1940
    %v1942 = vand.u32 %v387, 4294901760
    %1943 = vmatpush.msra.mxu0 %v1942
    %v1944 = vand.u32 %v386, 4294901760
    %1945 = vmatpush.msra.mxu0 %v1944
    %v1946 = vand.u32 %v385, 4294901760
    %1947 = vmatpush.msra.mxu0 %v1946
    %v1948 = vand.u32 %v384, 4294901760
    %1949 = vmatpush.msra.mxu0 %v1948
    %v1950 = vand.u32 %v383, 4294901760
    %1951 = vmatpush.msra.mxu0 %v1950
    %v1952 = vand.u32 %v382, 4294901760
    %1953 = vmatpush.msra.mxu0 %v1952
    %v1954 = vand.u32 %v307, 4294901760
    %v1955 = vsub.f32 %v307, %v1954
    %v1956 = vand.u32 %v1955, 4294901760
    %v1957 = vsub.f32 %v1955, %v1956
    %v1958 = vand.u32 %v1957, 4294901760
    %1959 = vmatmul.f32.gmra.mxu0 %v1958
    %v1960 = vpop.f32.mrf.mxu0
    %v1961 = vadd.f32 %v1920, %v1960
    %1962 = vdwg.mxu0
    %v1963 = vand.u32 %v397, 4294901760
    %v1964 = vsub.f32 %v397, %v1963
    %v1965 = vand.u32 %v1964, 4294901760
    %v1966 = vsub.f32 %v1964, %v1965
    %v1967 = vand.u32 %v1966, 4294901760
    %1968 = vmatpush.msra.mxu0 %v1967
    %v1969 = vand.u32 %v396, 4294901760
    %v1970 = vsub.f32 %v396, %v1969
    %v1971 = vand.u32 %v1970, 4294901760
    %v1972 = vsub.f32 %v1970, %v1971
    %v1973 = vand.u32 %v1972, 4294901760
    %1974 = vmatpush.msra.mxu0 %v1973
    %v1975 = vand.u32 %v395, 4294901760
    %v1976 = vsub.f32 %v395, %v1975
    %v1977 = vand.u32 %v1976, 4294901760
    %v1978 = vsub.f32 %v1976, %v1977
    %v1979 = vand.u32 %v1978, 4294901760
    %1980 = vmatpush.msra.mxu0 %v1979
    %v1981 = vand.u32 %v394, 4294901760
    %v1982 = vsub.f32 %v394, %v1981
    %v1983 = vand.u32 %v1982, 4294901760
    %v1984 = vsub.f32 %v1982, %v1983
    %v1985 = vand.u32 %v1984, 4294901760
    %1986 = vmatpush.msra.mxu0 %v1985
    %v1987 = vand.u32 %v393, 4294901760
    %v1988 = vsub.f32 %v393, %v1987
    %v1989 = vand.u32 %v1988, 4294901760
    %v1990 = vsub.f32 %v1988, %v1989
    %v1991 = vand.u32 %v1990, 4294901760
    %1992 = vmatpush.msra.mxu0 %v1991
    %v1993 = vand.u32 %v392, 4294901760
    %v1994 = vsub.f32 %v392, %v1993
    %v1995 = vand.u32 %v1994, 4294901760
    %v1996 = vsub.f32 %v1994, %v1995
    %v1997 = vand.u32 %v1996, 4294901760
    %1998 = vmatpush.msra.mxu0 %v1997
    %v1999 = vand.u32 %v391, 4294901760
    %v2000 = vsub.f32 %v391, %v1999
    %v2001 = vand.u32 %v2000, 4294901760
    %v2002 = vsub.f32 %v2000, %v2001
    %v2003 = vand.u32 %v2002, 4294901760
    %2004 = vmatpush.msra.mxu0 %v2003
    %v2005 = vand.u32 %v390, 4294901760
    %v2006 = vsub.f32 %v390, %v2005
    %v2007 = vand.u32 %v2006, 4294901760
    %v2008 = vsub.f32 %v2006, %v2007
    %v2009 = vand.u32 %v2008, 4294901760
    %2010 = vmatpush.msra.mxu0 %v2009
    %v2011 = vand.u32 %v389, 4294901760
    %v2012 = vsub.f32 %v389, %v2011
    %v2013 = vand.u32 %v2012, 4294901760
    %v2014 = vsub.f32 %v2012, %v2013
    %v2015 = vand.u32 %v2014, 4294901760
    %2016 = vmatpush.msra.mxu0 %v2015
    %v2017 = vand.u32 %v388, 4294901760
    %v2018 = vsub.f32 %v388, %v2017
    %v2019 = vand.u32 %v2018, 4294901760
    %v2020 = vsub.f32 %v2018, %v2019
    %v2021 = vand.u32 %v2020, 4294901760
    %2022 = vmatpush.msra.mxu0 %v2021
    %v2023 = vand.u32 %v387, 4294901760
    %v2024 = vsub.f32 %v387, %v2023
    %v2025 = vand.u32 %v2024, 4294901760
    %v2026 = vsub.f32 %v2024, %v2025
    %v2027 = vand.u32 %v2026, 4294901760
    %2028 = vmatpush.msra.mxu0 %v2027
    %v2029 = vand.u32 %v386, 4294901760
    %v2030 = vsub.f32 %v386, %v2029
    %v2031 = vand.u32 %v2030, 4294901760
    %v2032 = vsub.f32 %v2030, %v2031
    %v2033 = vand.u32 %v2032, 4294901760
    %2034 = vmatpush.msra.mxu0 %v2033
    %v2035 = vand.u32 %v385, 4294901760
    %v2036 = vsub.f32 %v385, %v2035
    %v2037 = vand.u32 %v2036, 4294901760
    %v2038 = vsub.f32 %v2036, %v2037
    %v2039 = vand.u32 %v2038, 4294901760
    %2040 = vmatpush.msra.mxu0 %v2039
    %v2041 = vand.u32 %v384, 4294901760
    %v2042 = vsub.f32 %v384, %v2041
    %v2043 = vand.u32 %v2042, 4294901760
    %v2044 = vsub.f32 %v2042, %v2043
    %v2045 = vand.u32 %v2044, 4294901760
    %2046 = vmatpush.msra.mxu0 %v2045
    %v2047 = vand.u32 %v383, 4294901760
    %v2048 = vsub.f32 %v383, %v2047
    %v2049 = vand.u32 %v2048, 4294901760
    %v2050 = vsub.f32 %v2048, %v2049
    %v2051 = vand.u32 %v2050, 4294901760
    %2052 = vmatpush.msra.mxu0 %v2051
    %v2053 = vand.u32 %v382, 4294901760
    %v2054 = vsub.f32 %v382, %v2053
    %v2055 = vand.u32 %v2054, 4294901760
    %v2056 = vsub.f32 %v2054, %v2055
    %v2057 = vand.u32 %v2056, 4294901760
    %2058 = vmatpush.msra.mxu0 %v2057
    %v2059 = vand.u32 %v307, 4294901760
    %2060 = vmatmul.f32.gmra.mxu0 %v2059
    %v2061 = vpop.f32.mrf.mxu0
    %v2062 = vadd.f32 %v1961, %v2061
    %2063 = vdwg.mxu0
    %v2064 = vand.u32 %v397, 4294901760
    %v2065 = vsub.f32 %v397, %v2064
    %2066 = vmatpush.msra.mxu0 %v2065
    %v2067 = vand.u32 %v396, 4294901760
    %v2068 = vsub.f32 %v396, %v2067
    %2069 = vmatpush.msra.mxu0 %v2068
    %v2070 = vand.u32 %v395, 4294901760
    %v2071 = vsub.f32 %v395, %v2070
    %2072 = vmatpush.msra.mxu0 %v2071
    %v2073 = vand.u32 %v394, 4294901760
    %v2074 = vsub.f32 %v394, %v2073
    %2075 = vmatpush.msra.mxu0 %v2074
    %v2076 = vand.u32 %v393, 4294901760
    %v2077 = vsub.f32 %v393, %v2076
    %2078 = vmatpush.msra.mxu0 %v2077
    %v2079 = vand.u32 %v392, 4294901760
    %v2080 = vsub.f32 %v392, %v2079
    %2081 = vmatpush.msra.mxu0 %v2080
    %v2082 = vand.u32 %v391, 4294901760
    %v2083 = vsub.f32 %v391, %v2082
    %2084 = vmatpush.msra.mxu0 %v2083
    %v2085 = vand.u32 %v390, 4294901760
    %v2086 = vsub.f32 %v390, %v2085
    %2087 = vmatpush.msra.mxu0 %v2086
    %v2088 = vand.u32 %v389, 4294901760
    %v2089 = vsub.f32 %v389, %v2088
    %2090 = vmatpush.msra.mxu0 %v2089
    %v2091 = vand.u32 %v388, 4294901760
    %v2092 = vsub.f32 %v388, %v2091
    %2093 = vmatpush.msra.mxu0 %v2092
    %v2094 = vand.u32 %v387, 4294901760
    %v2095 = vsub.f32 %v387, %v2094
    %2096 = vmatpush.msra.mxu0 %v2095
    %v2097 = vand.u32 %v386, 4294901760
    %v2098 = vsub.f32 %v386, %v2097
    %2099 = vmatpush.msra.mxu0 %v2098
    %v2100 = vand.u32 %v385, 4294901760
    %v2101 = vsub.f32 %v385, %v2100
    %2102 = vmatpush.msra.mxu0 %v2101
    %v2103 = vand.u32 %v384, 4294901760
    %v2104 = vsub.f32 %v384, %v2103
    %2105 = vmatpush.msra.mxu0 %v2104
    %v2106 = vand.u32 %v383, 4294901760
    %v2107 = vsub.f32 %v383, %v2106
    %2108 = vmatpush.msra.mxu0 %v2107
    %v2109 = vand.u32 %v382, 4294901760
    %v2110 = vsub.f32 %v382, %v2109
    %2111 = vmatpush.msra.mxu0 %v2110
    %v2112 = vand.u32 %v307, 4294901760
    %v2113 = vsub.f32 %v307, %v2112
    %2114 = vmatmul.f32.gmra.mxu0 %v2113
    %v2115 = vpop.f32.mrf.mxu0
    %v2116 = vadd.f32 %v2062, %v2115
    %2117 = vdwg.mxu0
    %v2118 = vand.u32 %v397, 4294901760
    %2119 = vmatpush.msra.mxu0 %v2118
    %v2120 = vand.u32 %v396, 4294901760
    %2121 = vmatpush.msra.mxu0 %v2120
    %v2122 = vand.u32 %v395, 4294901760
    %2123 = vmatpush.msra.mxu0 %v2122
    %v2124 = vand.u32 %v394, 4294901760
    %2125 = vmatpush.msra.mxu0 %v2124
    %v2126 = vand.u32 %v393, 4294901760
    %2127 = vmatpush.msra.mxu0 %v2126
    %v2128 = vand.u32 %v392, 4294901760
    %2129 = vmatpush.msra.mxu0 %v2128
    %v2130 = vand.u32 %v391, 4294901760
    %2131 = vmatpush.msra.mxu0 %v2130
    %v2132 = vand.u32 %v390, 4294901760
    %2133 = vmatpush.msra.mxu0 %v2132
    %v2134 = vand.u32 %v389, 4294901760
    %2135 = vmatpush.msra.mxu0 %v2134
    %v2136 = vand.u32 %v388, 4294901760
    %2137 = vmatpush.msra.mxu0 %v2136
    %v2138 = vand.u32 %v387, 4294901760
    %2139 = vmatpush.msra.mxu0 %v2138
    %v2140 = vand.u32 %v386, 4294901760
    %2141 = vmatpush.msra.mxu0 %v2140
    %v2142 = vand.u32 %v385, 4294901760
    %2143 = vmatpush.msra.mxu0 %v2142
    %v2144 = vand.u32 %v384, 4294901760
    %2145 = vmatpush.msra.mxu0 %v2144
    %v2146 = vand.u32 %v383, 4294901760
    %2147 = vmatpush.msra.mxu0 %v2146
    %v2148 = vand.u32 %v382, 4294901760
    %2149 = vmatpush.msra.mxu0 %v2148
    %v2150 = vand.u32 %v307, 4294901760
    %v2151 = vsub.f32 %v307, %v2150
    %v2152 = vand.u32 %v2151, 4294901760
    %2153 = vmatmul.f32.gmra.mxu0 %v2152
    %v2154 = vpop.f32.mrf.mxu0
    %v2155 = vadd.f32 %v2116, %v2154
    %2156 = vdwg.mxu0
    %v2157 = vand.u32 %v397, 4294901760
    %v2158 = vsub.f32 %v397, %v2157
    %v2159 = vand.u32 %v2158, 4294901760
    %2160 = vmatpush.msra.mxu0 %v2159
    %v2161 = vand.u32 %v396, 4294901760
    %v2162 = vsub.f32 %v396, %v2161
    %v2163 = vand.u32 %v2162, 4294901760
    %2164 = vmatpush.msra.mxu0 %v2163
    %v2165 = vand.u32 %v395, 4294901760
    %v2166 = vsub.f32 %v395, %v2165
    %v2167 = vand.u32 %v2166, 4294901760
    %2168 = vmatpush.msra.mxu0 %v2167
    %v2169 = vand.u32 %v394, 4294901760
    %v2170 = vsub.f32 %v394, %v2169
    %v2171 = vand.u32 %v2170, 4294901760
    %2172 = vmatpush.msra.mxu0 %v2171
    %v2173 = vand.u32 %v393, 4294901760
    %v2174 = vsub.f32 %v393, %v2173
    %v2175 = vand.u32 %v2174, 4294901760
    %2176 = vmatpush.msra.mxu0 %v2175
    %v2177 = vand.u32 %v392, 4294901760
    %v2178 = vsub.f32 %v392, %v2177
    %v2179 = vand.u32 %v2178, 4294901760
    %2180 = vmatpush.msra.mxu0 %v2179
    %v2181 = vand.u32 %v391, 4294901760
    %v2182 = vsub.f32 %v391, %v2181
    %v2183 = vand.u32 %v2182, 4294901760
    %2184 = vmatpush.msra.mxu0 %v2183
    %v2185 = vand.u32 %v390, 4294901760
    %v2186 = vsub.f32 %v390, %v2185
    %v2187 = vand.u32 %v2186, 4294901760
    %2188 = vmatpush.msra.mxu0 %v2187
    %v2189 = vand.u32 %v389, 4294901760
    %v2190 = vsub.f32 %v389, %v2189
    %v2191 = vand.u32 %v2190, 4294901760
    %2192 = vmatpush.msra.mxu0 %v2191
    %v2193 = vand.u32 %v388, 4294901760
    %v2194 = vsub.f32 %v388, %v2193
    %v2195 = vand.u32 %v2194, 4294901760
    %2196 = vmatpush.msra.mxu0 %v2195
    %v2197 = vand.u32 %v387, 4294901760
    %v2198 = vsub.f32 %v387, %v2197
    %v2199 = vand.u32 %v2198, 4294901760
    %2200 = vmatpush.msra.mxu0 %v2199
    %v2201 = vand.u32 %v386, 4294901760
    %v2202 = vsub.f32 %v386, %v2201
    %v2203 = vand.u32 %v2202, 4294901760
    %2204 = vmatpush.msra.mxu0 %v2203
    %v2205 = vand.u32 %v385, 4294901760
    %v2206 = vsub.f32 %v385, %v2205
    %v2207 = vand.u32 %v2206, 4294901760
    %2208 = vmatpush.msra.mxu0 %v2207
    %v2209 = vand.u32 %v384, 4294901760
    %v2210 = vsub.f32 %v384, %v2209
    %v2211 = vand.u32 %v2210, 4294901760
    %2212 = vmatpush.msra.mxu0 %v2211
    %v2213 = vand.u32 %v383, 4294901760
    %v2214 = vsub.f32 %v383, %v2213
    %v2215 = vand.u32 %v2214, 4294901760
    %2216 = vmatpush.msra.mxu0 %v2215
    %v2217 = vand.u32 %v382, 4294901760
    %v2218 = vsub.f32 %v382, %v2217
    %v2219 = vand.u32 %v2218, 4294901760
    %2220 = vmatpush.msra.mxu0 %v2219
    %v2221 = vand.u32 %v307, 4294901760
    %2222 = vmatmul.f32.gmra.mxu0 %v2221
    %v2223 = vpop.f32.mrf.mxu0
    %v2224 = vadd.f32 %v2155, %v2223
    %2225 = vdwg.mxu0
    %v2226 = vand.u32 %v397, 4294901760
    %2227 = vmatpush.msra.mxu0 %v2226
    %v2228 = vand.u32 %v396, 4294901760
    %2229 = vmatpush.msra.mxu0 %v2228
    %v2230 = vand.u32 %v395, 4294901760
    %2231 = vmatpush.msra.mxu0 %v2230
    %v2232 = vand.u32 %v394, 4294901760
    %2233 = vmatpush.msra.mxu0 %v2232
    %v2234 = vand.u32 %v393, 4294901760
    %2235 = vmatpush.msra.mxu0 %v2234
    %v2236 = vand.u32 %v392, 4294901760
    %2237 = vmatpush.msra.mxu0 %v2236
    %v2238 = vand.u32 %v391, 4294901760
    %2239 = vmatpush.msra.mxu0 %v2238
    %v2240 = vand.u32 %v390, 4294901760
    %2241 = vmatpush.msra.mxu0 %v2240
    %v2242 = vand.u32 %v389, 4294901760
    %2243 = vmatpush.msra.mxu0 %v2242
    %v2244 = vand.u32 %v388, 4294901760
    %2245 = vmatpush.msra.mxu0 %v2244
    %v2246 = vand.u32 %v387, 4294901760
    %2247 = vmatpush.msra.mxu0 %v2246
    %v2248 = vand.u32 %v386, 4294901760
    %2249 = vmatpush.msra.mxu0 %v2248
    %v2250 = vand.u32 %v385, 4294901760
    %2251 = vmatpush.msra.mxu0 %v2250
    %v2252 = vand.u32 %v384, 4294901760
    %2253 = vmatpush.msra.mxu0 %v2252
    %v2254 = vand.u32 %v383, 4294901760
    %2255 = vmatpush.msra.mxu0 %v2254
    %v2256 = vand.u32 %v382, 4294901760
    %2257 = vmatpush.msra.mxu0 %v2256
    %v2258 = vand.u32 %v307, 4294901760
    %2259 = vmatmul.f32.gmra.mxu0 %v2258
    %v2260 = vpop.f32.mrf.mxu0
    %v2261 = vadd.f32 %v2224, %v2260
    %2262 = vdwg.mxu0
    %v2263 = vand.u32 %v413, 4294901760
    %2264 = vmatpush.msra.mxu0 %v2263
    %v2265 = vand.u32 %v412, 4294901760
    %2266 = vmatpush.msra.mxu0 %v2265
    %v2267 = vand.u32 %v411, 4294901760
    %2268 = vmatpush.msra.mxu0 %v2267
    %v2269 = vand.u32 %v410, 4294901760
    %2270 = vmatpush.msra.mxu0 %v2269
    %v2271 = vand.u32 %v409, 4294901760
    %2272 = vmatpush.msra.mxu0 %v2271
    %v2273 = vand.u32 %v408, 4294901760
    %2274 = vmatpush.msra.mxu0 %v2273
    %v2275 = vand.u32 %v407, 4294901760
    %2276 = vmatpush.msra.mxu0 %v2275
    %v2277 = vand.u32 %v406, 4294901760
    %2278 = vmatpush.msra.mxu0 %v2277
    %v2279 = vand.u32 %v405, 4294901760
    %2280 = vmatpush.msra.mxu0 %v2279
    %v2281 = vand.u32 %v404, 4294901760
    %2282 = vmatpush.msra.mxu0 %v2281
    %v2283 = vand.u32 %v403, 4294901760
    %2284 = vmatpush.msra.mxu0 %v2283
    %v2285 = vand.u32 %v402, 4294901760
    %2286 = vmatpush.msra.mxu0 %v2285
    %v2287 = vand.u32 %v401, 4294901760
    %2288 = vmatpush.msra.mxu0 %v2287
    %v2289 = vand.u32 %v400, 4294901760
    %2290 = vmatpush.msra.mxu0 %v2289
    %v2291 = vand.u32 %v399, 4294901760
    %2292 = vmatpush.msra.mxu0 %v2291
    %v2293 = vand.u32 %v398, 4294901760
    %2294 = vmatpush.msra.mxu0 %v2293
    %v2295 = vand.u32 %v308, 4294901760
    %v2296 = vsub.f32 %v308, %v2295
    %v2297 = vand.u32 %v2296, 4294901760
    %v2298 = vsub.f32 %v2296, %v2297
    %v2299 = vand.u32 %v2298, 4294901760
    %2300 = vmatmul.f32.gmra.mxu0 %v2299
    %v2301 = vpop.f32.mrf.mxu0
    %v2302 = vadd.f32 %v2261, %v2301
    %2303 = vdwg.mxu0
    %v2304 = vand.u32 %v413, 4294901760
    %v2305 = vsub.f32 %v413, %v2304
    %v2306 = vand.u32 %v2305, 4294901760
    %v2307 = vsub.f32 %v2305, %v2306
    %v2308 = vand.u32 %v2307, 4294901760
    %2309 = vmatpush.msra.mxu0 %v2308
    %v2310 = vand.u32 %v412, 4294901760
    %v2311 = vsub.f32 %v412, %v2310
    %v2312 = vand.u32 %v2311, 4294901760
    %v2313 = vsub.f32 %v2311, %v2312
    %v2314 = vand.u32 %v2313, 4294901760
    %2315 = vmatpush.msra.mxu0 %v2314
    %v2316 = vand.u32 %v411, 4294901760
    %v2317 = vsub.f32 %v411, %v2316
    %v2318 = vand.u32 %v2317, 4294901760
    %v2319 = vsub.f32 %v2317, %v2318
    %v2320 = vand.u32 %v2319, 4294901760
    %2321 = vmatpush.msra.mxu0 %v2320
    %v2322 = vand.u32 %v410, 4294901760
    %v2323 = vsub.f32 %v410, %v2322
    %v2324 = vand.u32 %v2323, 4294901760
    %v2325 = vsub.f32 %v2323, %v2324
    %v2326 = vand.u32 %v2325, 4294901760
    %2327 = vmatpush.msra.mxu0 %v2326
    %v2328 = vand.u32 %v409, 4294901760
    %v2329 = vsub.f32 %v409, %v2328
    %v2330 = vand.u32 %v2329, 4294901760
    %v2331 = vsub.f32 %v2329, %v2330
    %v2332 = vand.u32 %v2331, 4294901760
    %2333 = vmatpush.msra.mxu0 %v2332
    %v2334 = vand.u32 %v408, 4294901760
    %v2335 = vsub.f32 %v408, %v2334
    %v2336 = vand.u32 %v2335, 4294901760
    %v2337 = vsub.f32 %v2335, %v2336
    %v2338 = vand.u32 %v2337, 4294901760
    %2339 = vmatpush.msra.mxu0 %v2338
    %v2340 = vand.u32 %v407, 4294901760
    %v2341 = vsub.f32 %v407, %v2340
    %v2342 = vand.u32 %v2341, 4294901760
    %v2343 = vsub.f32 %v2341, %v2342
    %v2344 = vand.u32 %v2343, 4294901760
    %2345 = vmatpush.msra.mxu0 %v2344
    %v2346 = vand.u32 %v406, 4294901760
    %v2347 = vsub.f32 %v406, %v2346
    %v2348 = vand.u32 %v2347, 4294901760
    %v2349 = vsub.f32 %v2347, %v2348
    %v2350 = vand.u32 %v2349, 4294901760
    %2351 = vmatpush.msra.mxu0 %v2350
    %v2352 = vand.u32 %v405, 4294901760
    %v2353 = vsub.f32 %v405, %v2352
    %v2354 = vand.u32 %v2353, 4294901760
    %v2355 = vsub.f32 %v2353, %v2354
    %v2356 = vand.u32 %v2355, 4294901760
    %2357 = vmatpush.msra.mxu0 %v2356
    %v2358 = vand.u32 %v404, 4294901760
    %v2359 = vsub.f32 %v404, %v2358
    %v2360 = vand.u32 %v2359, 4294901760
    %v2361 = vsub.f32 %v2359, %v2360
    %v2362 = vand.u32 %v2361, 4294901760
    %2363 = vmatpush.msra.mxu0 %v2362
    %v2364 = vand.u32 %v403, 4294901760
    %v2365 = vsub.f32 %v403, %v2364
    %v2366 = vand.u32 %v2365, 4294901760
    %v2367 = vsub.f32 %v2365, %v2366
    %v2368 = vand.u32 %v2367, 4294901760
    %2369 = vmatpush.msra.mxu0 %v2368
    %v2370 = vand.u32 %v402, 4294901760
    %v2371 = vsub.f32 %v402, %v2370
    %v2372 = vand.u32 %v2371, 4294901760
    %v2373 = vsub.f32 %v2371, %v2372
    %v2374 = vand.u32 %v2373, 4294901760
    %2375 = vmatpush.msra.mxu0 %v2374
    %v2376 = vand.u32 %v401, 4294901760
    %v2377 = vsub.f32 %v401, %v2376
    %v2378 = vand.u32 %v2377, 4294901760
    %v2379 = vsub.f32 %v2377, %v2378
    %v2380 = vand.u32 %v2379, 4294901760
    %2381 = vmatpush.msra.mxu0 %v2380
    %v2382 = vand.u32 %v400, 4294901760
    %v2383 = vsub.f32 %v400, %v2382
    %v2384 = vand.u32 %v2383, 4294901760
    %v2385 = vsub.f32 %v2383, %v2384
    %v2386 = vand.u32 %v2385, 4294901760
    %2387 = vmatpush.msra.mxu0 %v2386
    %v2388 = vand.u32 %v399, 4294901760
    %v2389 = vsub.f32 %v399, %v2388
    %v2390 = vand.u32 %v2389, 4294901760
    %v2391 = vsub.f32 %v2389, %v2390
    %v2392 = vand.u32 %v2391, 4294901760
    %2393 = vmatpush.msra.mxu0 %v2392
    %v2394 = vand.u32 %v398, 4294901760
    %v2395 = vsub.f32 %v398, %v2394
    %v2396 = vand.u32 %v2395, 4294901760
    %v2397 = vsub.f32 %v2395, %v2396
    %v2398 = vand.u32 %v2397, 4294901760
    %2399 = vmatpush.msra.mxu0 %v2398
    %v2400 = vand.u32 %v308, 4294901760
    %2401 = vmatmul.f32.gmra.mxu0 %v2400
    %v2402 = vpop.f32.mrf.mxu0
    %v2403 = vadd.f32 %v2302, %v2402
    %2404 = vdwg.mxu0
    %v2405 = vand.u32 %v413, 4294901760
    %v2406 = vsub.f32 %v413, %v2405
    %2407 = vmatpush.msra.mxu0 %v2406
    %v2408 = vand.u32 %v412, 4294901760
    %v2409 = vsub.f32 %v412, %v2408
    %2410 = vmatpush.msra.mxu0 %v2409
    %v2411 = vand.u32 %v411, 4294901760
    %v2412 = vsub.f32 %v411, %v2411
    %2413 = vmatpush.msra.mxu0 %v2412
    %v2414 = vand.u32 %v410, 4294901760
    %v2415 = vsub.f32 %v410, %v2414
    %2416 = vmatpush.msra.mxu0 %v2415
    %v2417 = vand.u32 %v409, 4294901760
    %v2418 = vsub.f32 %v409, %v2417
    %2419 = vmatpush.msra.mxu0 %v2418
    %v2420 = vand.u32 %v408, 4294901760
    %v2421 = vsub.f32 %v408, %v2420
    %2422 = vmatpush.msra.mxu0 %v2421
    %v2423 = vand.u32 %v407, 4294901760
    %v2424 = vsub.f32 %v407, %v2423
    %2425 = vmatpush.msra.mxu0 %v2424
    %v2426 = vand.u32 %v406, 4294901760
    %v2427 = vsub.f32 %v406, %v2426
    %2428 = vmatpush.msra.mxu0 %v2427
    %v2429 = vand.u32 %v405, 4294901760
    %v2430 = vsub.f32 %v405, %v2429
    %2431 = vmatpush.msra.mxu0 %v2430
    %v2432 = vand.u32 %v404, 4294901760
    %v2433 = vsub.f32 %v404, %v2432
    %2434 = vmatpush.msra.mxu0 %v2433
    %v2435 = vand.u32 %v403, 4294901760
    %v2436 = vsub.f32 %v403, %v2435
    %2437 = vmatpush.msra.mxu0 %v2436
    %v2438 = vand.u32 %v402, 4294901760
    %v2439 = vsub.f32 %v402, %v2438
    %2440 = vmatpush.msra.mxu0 %v2439
    %v2441 = vand.u32 %v401, 4294901760
    %v2442 = vsub.f32 %v401, %v2441
    %2443 = vmatpush.msra.mxu0 %v2442
    %v2444 = vand.u32 %v400, 4294901760
    %v2445 = vsub.f32 %v400, %v2444
    %2446 = vmatpush.msra.mxu0 %v2445
    %v2447 = vand.u32 %v399, 4294901760
    %v2448 = vsub.f32 %v399, %v2447
    %2449 = vmatpush.msra.mxu0 %v2448
    %v2450 = vand.u32 %v398, 4294901760
    %v2451 = vsub.f32 %v398, %v2450
    %2452 = vmatpush.msra.mxu0 %v2451
    %v2453 = vand.u32 %v308, 4294901760
    %v2454 = vsub.f32 %v308, %v2453
    %2455 = vmatmul.f32.gmra.mxu0 %v2454
    %v2456 = vpop.f32.mrf.mxu0
    %v2457 = vadd.f32 %v2403, %v2456
    %2458 = vdwg.mxu0
    %v2459 = vand.u32 %v413, 4294901760
    %2460 = vmatpush.msra.mxu0 %v2459
    %v2461 = vand.u32 %v412, 4294901760
    %2462 = vmatpush.msra.mxu0 %v2461
    %v2463 = vand.u32 %v411, 4294901760
    %2464 = vmatpush.msra.mxu0 %v2463
    %v2465 = vand.u32 %v410, 4294901760
    %2466 = vmatpush.msra.mxu0 %v2465
    %v2467 = vand.u32 %v409, 4294901760
    %2468 = vmatpush.msra.mxu0 %v2467
    %v2469 = vand.u32 %v408, 4294901760
    %2470 = vmatpush.msra.mxu0 %v2469
    %v2471 = vand.u32 %v407, 4294901760
    %2472 = vmatpush.msra.mxu0 %v2471
    %v2473 = vand.u32 %v406, 4294901760
    %2474 = vmatpush.msra.mxu0 %v2473
    %v2475 = vand.u32 %v405, 4294901760
    %2476 = vmatpush.msra.mxu0 %v2475
    %v2477 = vand.u32 %v404, 4294901760
    %2478 = vmatpush.msra.mxu0 %v2477
    %v2479 = vand.u32 %v403, 4294901760
    %2480 = vmatpush.msra.mxu0 %v2479
    %v2481 = vand.u32 %v402, 4294901760
    %2482 = vmatpush.msra.mxu0 %v2481
    %v2483 = vand.u32 %v401, 4294901760
    %2484 = vmatpush.msra.mxu0 %v2483
    %v2485 = vand.u32 %v400, 4294901760
    %2486 = vmatpush.msra.mxu0 %v2485
    %v2487 = vand.u32 %v399, 4294901760
    %2488 = vmatpush.msra.mxu0 %v2487
    %v2489 = vand.u32 %v398, 4294901760
    %2490 = vmatpush.msra.mxu0 %v2489
    %v2491 = vand.u32 %v308, 4294901760
    %v2492 = vsub.f32 %v308, %v2491
    %v2493 = vand.u32 %v2492, 4294901760
    %2494 = vmatmul.f32.gmra.mxu0 %v2493
    %v2495 = vpop.f32.mrf.mxu0
    %v2496 = vadd.f32 %v2457, %v2495
    %2497 = vdwg.mxu0
    %v2498 = vand.u32 %v413, 4294901760
    %v2499 = vsub.f32 %v413, %v2498
    %v2500 = vand.u32 %v2499, 4294901760
    %2501 = vmatpush.msra.mxu0 %v2500
    %v2502 = vand.u32 %v412, 4294901760
    %v2503 = vsub.f32 %v412, %v2502
    %v2504 = vand.u32 %v2503, 4294901760
    %2505 = vmatpush.msra.mxu0 %v2504
    %v2506 = vand.u32 %v411, 4294901760
    %v2507 = vsub.f32 %v411, %v2506
    %v2508 = vand.u32 %v2507, 4294901760
    %2509 = vmatpush.msra.mxu0 %v2508
    %v2510 = vand.u32 %v410, 4294901760
    %v2511 = vsub.f32 %v410, %v2510
    %v2512 = vand.u32 %v2511, 4294901760
    %2513 = vmatpush.msra.mxu0 %v2512
    %v2514 = vand.u32 %v409, 4294901760
    %v2515 = vsub.f32 %v409, %v2514
    %v2516 = vand.u32 %v2515, 4294901760
    %2517 = vmatpush.msra.mxu0 %v2516
    %v2518 = vand.u32 %v408, 4294901760
    %v2519 = vsub.f32 %v408, %v2518
    %v2520 = vand.u32 %v2519, 4294901760
    %2521 = vmatpush.msra.mxu0 %v2520
    %v2522 = vand.u32 %v407, 4294901760
    %v2523 = vsub.f32 %v407, %v2522
    %v2524 = vand.u32 %v2523, 4294901760
    %2525 = vmatpush.msra.mxu0 %v2524
    %v2526 = vand.u32 %v406, 4294901760
    %v2527 = vsub.f32 %v406, %v2526
    %v2528 = vand.u32 %v2527, 4294901760
    %2529 = vmatpush.msra.mxu0 %v2528
    %v2530 = vand.u32 %v405, 4294901760
    %v2531 = vsub.f32 %v405, %v2530
    %v2532 = vand.u32 %v2531, 4294901760
    %2533 = vmatpush.msra.mxu0 %v2532
    %v2534 = vand.u32 %v404, 4294901760
    %v2535 = vsub.f32 %v404, %v2534
    %v2536 = vand.u32 %v2535, 4294901760
    %2537 = vmatpush.msra.mxu0 %v2536
    %v2538 = vand.u32 %v403, 4294901760
    %v2539 = vsub.f32 %v403, %v2538
    %v2540 = vand.u32 %v2539, 4294901760
    %2541 = vmatpush.msra.mxu0 %v2540
    %v2542 = vand.u32 %v402, 4294901760
    %v2543 = vsub.f32 %v402, %v2542
    %v2544 = vand.u32 %v2543, 4294901760
    %2545 = vmatpush.msra.mxu0 %v2544
    %v2546 = vand.u32 %v401, 4294901760
    %v2547 = vsub.f32 %v401, %v2546
    %v2548 = vand.u32 %v2547, 4294901760
    %2549 = vmatpush.msra.mxu0 %v2548
    %v2550 = vand.u32 %v400, 4294901760
    %v2551 = vsub.f32 %v400, %v2550
    %v2552 = vand.u32 %v2551, 4294901760
    %2553 = vmatpush.msra.mxu0 %v2552
    %v2554 = vand.u32 %v399, 4294901760
    %v2555 = vsub.f32 %v399, %v2554
    %v2556 = vand.u32 %v2555, 4294901760
    %2557 = vmatpush.msra.mxu0 %v2556
    %v2558 = vand.u32 %v398, 4294901760
    %v2559 = vsub.f32 %v398, %v2558
    %v2560 = vand.u32 %v2559, 4294901760
    %2561 = vmatpush.msra.mxu0 %v2560
    %v2562 = vand.u32 %v308, 4294901760
    %2563 = vmatmul.f32.gmra.mxu0 %v2562
    %v2564 = vpop.f32.mrf.mxu0
    %v2565 = vadd.f32 %v2496, %v2564
    %2566 = vdwg.mxu0
    %v2567 = vand.u32 %v413, 4294901760
    %2568 = vmatpush.msra.mxu0 %v2567
    %v2569 = vand.u32 %v412, 4294901760
    %2570 = vmatpush.msra.mxu0 %v2569
    %v2571 = vand.u32 %v411, 4294901760
    %2572 = vmatpush.msra.mxu0 %v2571
    %v2573 = vand.u32 %v410, 4294901760
    %2574 = vmatpush.msra.mxu0 %v2573
    %v2575 = vand.u32 %v409, 4294901760
    %2576 = vmatpush.msra.mxu0 %v2575
    %v2577 = vand.u32 %v408, 4294901760
    %2578 = vmatpush.msra.mxu0 %v2577
    %v2579 = vand.u32 %v407, 4294901760
    %2580 = vmatpush.msra.mxu0 %v2579
    %v2581 = vand.u32 %v406, 4294901760
    %2582 = vmatpush.msra.mxu0 %v2581
    %v2583 = vand.u32 %v405, 4294901760
    %2584 = vmatpush.msra.mxu0 %v2583
    %v2585 = vand.u32 %v404, 4294901760
    %2586 = vmatpush.msra.mxu0 %v2585
    %v2587 = vand.u32 %v403, 4294901760
    %2588 = vmatpush.msra.mxu0 %v2587
    %v2589 = vand.u32 %v402, 4294901760
    %2590 = vmatpush.msra.mxu0 %v2589
    %v2591 = vand.u32 %v401, 4294901760
    %2592 = vmatpush.msra.mxu0 %v2591
    %v2593 = vand.u32 %v400, 4294901760
    %2594 = vmatpush.msra.mxu0 %v2593
    %v2595 = vand.u32 %v399, 4294901760
    %2596 = vmatpush.msra.mxu0 %v2595
    %v2597 = vand.u32 %v398, 4294901760
    %2598 = vmatpush.msra.mxu0 %v2597
    %v2599 = vand.u32 %v308, 4294901760
    %2600 = vmatmul.f32.gmra.mxu0 %v2599
    %v2601 = vpop.f32.mrf.mxu0
    %v2602 = vadd.f32 %v2565, %v2601
    %2603 = vdwg.mxu0
    %v2604 = vand.u32 %v429, 4294901760
    %2605 = vmatpush.msra.mxu0 %v2604
    %v2606 = vand.u32 %v428, 4294901760
    %2607 = vmatpush.msra.mxu0 %v2606
    %v2608 = vand.u32 %v427, 4294901760
    %2609 = vmatpush.msra.mxu0 %v2608
    %v2610 = vand.u32 %v426, 4294901760
    %2611 = vmatpush.msra.mxu0 %v2610
    %v2612 = vand.u32 %v425, 4294901760
    %2613 = vmatpush.msra.mxu0 %v2612
    %v2614 = vand.u32 %v424, 4294901760
    %2615 = vmatpush.msra.mxu0 %v2614
    %v2616 = vand.u32 %v423, 4294901760
    %2617 = vmatpush.msra.mxu0 %v2616
    %v2618 = vand.u32 %v422, 4294901760
    %2619 = vmatpush.msra.mxu0 %v2618
    %v2620 = vand.u32 %v421, 4294901760
    %2621 = vmatpush.msra.mxu0 %v2620
    %v2622 = vand.u32 %v420, 4294901760
    %2623 = vmatpush.msra.mxu0 %v2622
    %v2624 = vand.u32 %v419, 4294901760
    %2625 = vmatpush.msra.mxu0 %v2624
    %v2626 = vand.u32 %v418, 4294901760
    %2627 = vmatpush.msra.mxu0 %v2626
    %v2628 = vand.u32 %v417, 4294901760
    %2629 = vmatpush.msra.mxu0 %v2628
    %v2630 = vand.u32 %v416, 4294901760
    %2631 = vmatpush.msra.mxu0 %v2630
    %v2632 = vand.u32 %v415, 4294901760
    %2633 = vmatpush.msra.mxu0 %v2632
    %v2634 = vand.u32 %v414, 4294901760
    %2635 = vmatpush.msra.mxu0 %v2634
    %v2636 = vand.u32 %v309, 4294901760
    %v2637 = vsub.f32 %v309, %v2636
    %v2638 = vand.u32 %v2637, 4294901760
    %v2639 = vsub.f32 %v2637, %v2638
    %v2640 = vand.u32 %v2639, 4294901760
    %2641 = vmatmul.f32.gmra.mxu0 %v2640
    %v2642 = vpop.f32.mrf.mxu0
    %v2643 = vadd.f32 %v2602, %v2642
    %2644 = vdwg.mxu0
    %v2645 = vand.u32 %v429, 4294901760
    %v2646 = vsub.f32 %v429, %v2645
    %v2647 = vand.u32 %v2646, 4294901760
    %v2648 = vsub.f32 %v2646, %v2647
    %v2649 = vand.u32 %v2648, 4294901760
    %2650 = vmatpush.msra.mxu0 %v2649
    %v2651 = vand.u32 %v428, 4294901760
    %v2652 = vsub.f32 %v428, %v2651
    %v2653 = vand.u32 %v2652, 4294901760
    %v2654 = vsub.f32 %v2652, %v2653
    %v2655 = vand.u32 %v2654, 4294901760
    %2656 = vmatpush.msra.mxu0 %v2655
    %v2657 = vand.u32 %v427, 4294901760
    %v2658 = vsub.f32 %v427, %v2657
    %v2659 = vand.u32 %v2658, 4294901760
    %v2660 = vsub.f32 %v2658, %v2659
    %v2661 = vand.u32 %v2660, 4294901760
    %2662 = vmatpush.msra.mxu0 %v2661
    %v2663 = vand.u32 %v426, 4294901760
    %v2664 = vsub.f32 %v426, %v2663
    %v2665 = vand.u32 %v2664, 4294901760
    %v2666 = vsub.f32 %v2664, %v2665
    %v2667 = vand.u32 %v2666, 4294901760
    %2668 = vmatpush.msra.mxu0 %v2667
    %v2669 = vand.u32 %v425, 4294901760
    %v2670 = vsub.f32 %v425, %v2669
    %v2671 = vand.u32 %v2670, 4294901760
    %v2672 = vsub.f32 %v2670, %v2671
    %v2673 = vand.u32 %v2672, 4294901760
    %2674 = vmatpush.msra.mxu0 %v2673
    %v2675 = vand.u32 %v424, 4294901760
    %v2676 = vsub.f32 %v424, %v2675
    %v2677 = vand.u32 %v2676, 4294901760
    %v2678 = vsub.f32 %v2676, %v2677
    %v2679 = vand.u32 %v2678, 4294901760
    %2680 = vmatpush.msra.mxu0 %v2679
    %v2681 = vand.u32 %v423, 4294901760
    %v2682 = vsub.f32 %v423, %v2681
    %v2683 = vand.u32 %v2682, 4294901760
    %v2684 = vsub.f32 %v2682, %v2683
    %v2685 = vand.u32 %v2684, 4294901760
    %2686 = vmatpush.msra.mxu0 %v2685
    %v2687 = vand.u32 %v422, 4294901760
    %v2688 = vsub.f32 %v422, %v2687
    %v2689 = vand.u32 %v2688, 4294901760
    %v2690 = vsub.f32 %v2688, %v2689
    %v2691 = vand.u32 %v2690, 4294901760
    %2692 = vmatpush.msra.mxu0 %v2691
    %v2693 = vand.u32 %v421, 4294901760
    %v2694 = vsub.f32 %v421, %v2693
    %v2695 = vand.u32 %v2694, 4294901760
    %v2696 = vsub.f32 %v2694, %v2695
    %v2697 = vand.u32 %v2696, 4294901760
    %2698 = vmatpush.msra.mxu0 %v2697
    %v2699 = vand.u32 %v420, 4294901760
    %v2700 = vsub.f32 %v420, %v2699
    %v2701 = vand.u32 %v2700, 4294901760
    %v2702 = vsub.f32 %v2700, %v2701
    %v2703 = vand.u32 %v2702, 4294901760
    %2704 = vmatpush.msra.mxu0 %v2703
    %v2705 = vand.u32 %v419, 4294901760
    %v2706 = vsub.f32 %v419, %v2705
    %v2707 = vand.u32 %v2706, 4294901760
    %v2708 = vsub.f32 %v2706, %v2707
    %v2709 = vand.u32 %v2708, 4294901760
    %2710 = vmatpush.msra.mxu0 %v2709
    %v2711 = vand.u32 %v418, 4294901760
    %v2712 = vsub.f32 %v418, %v2711
    %v2713 = vand.u32 %v2712, 4294901760
    %v2714 = vsub.f32 %v2712, %v2713
    %v2715 = vand.u32 %v2714, 4294901760
    %2716 = vmatpush.msra.mxu0 %v2715
    %v2717 = vand.u32 %v417, 4294901760
    %v2718 = vsub.f32 %v417, %v2717
    %v2719 = vand.u32 %v2718, 4294901760
    %v2720 = vsub.f32 %v2718, %v2719
    %v2721 = vand.u32 %v2720, 4294901760
    %2722 = vmatpush.msra.mxu0 %v2721
    %v2723 = vand.u32 %v416, 4294901760
    %v2724 = vsub.f32 %v416, %v2723
    %v2725 = vand.u32 %v2724, 4294901760
    %v2726 = vsub.f32 %v2724, %v2725
    %v2727 = vand.u32 %v2726, 4294901760
    %2728 = vmatpush.msra.mxu0 %v2727
    %v2729 = vand.u32 %v415, 4294901760
    %v2730 = vsub.f32 %v415, %v2729
    %v2731 = vand.u32 %v2730, 4294901760
    %v2732 = vsub.f32 %v2730, %v2731
    %v2733 = vand.u32 %v2732, 4294901760
    %2734 = vmatpush.msra.mxu0 %v2733
    %v2735 = vand.u32 %v414, 4294901760
    %v2736 = vsub.f32 %v414, %v2735
    %v2737 = vand.u32 %v2736, 4294901760
    %v2738 = vsub.f32 %v2736, %v2737
    %v2739 = vand.u32 %v2738, 4294901760
    %2740 = vmatpush.msra.mxu0 %v2739
    %v2741 = vand.u32 %v309, 4294901760
    %2742 = vmatmul.f32.gmra.mxu0 %v2741
    %v2743 = vpop.f32.mrf.mxu0
    %v2744 = vadd.f32 %v2643, %v2743
    %2745 = vdwg.mxu0
    %v2746 = vand.u32 %v429, 4294901760
    %v2747 = vsub.f32 %v429, %v2746
    %2748 = vmatpush.msra.mxu0 %v2747
    %v2749 = vand.u32 %v428, 4294901760
    %v2750 = vsub.f32 %v428, %v2749
    %2751 = vmatpush.msra.mxu0 %v2750
    %v2752 = vand.u32 %v427, 4294901760
    %v2753 = vsub.f32 %v427, %v2752
    %2754 = vmatpush.msra.mxu0 %v2753
    %v2755 = vand.u32 %v426, 4294901760
    %v2756 = vsub.f32 %v426, %v2755
    %2757 = vmatpush.msra.mxu0 %v2756
    %v2758 = vand.u32 %v425, 4294901760
    %v2759 = vsub.f32 %v425, %v2758
    %2760 = vmatpush.msra.mxu0 %v2759
    %v2761 = vand.u32 %v424, 4294901760
    %v2762 = vsub.f32 %v424, %v2761
    %2763 = vmatpush.msra.mxu0 %v2762
    %v2764 = vand.u32 %v423, 4294901760
    %v2765 = vsub.f32 %v423, %v2764
    %2766 = vmatpush.msra.mxu0 %v2765
    %v2767 = vand.u32 %v422, 4294901760
    %v2768 = vsub.f32 %v422, %v2767
    %2769 = vmatpush.msra.mxu0 %v2768
    %v2770 = vand.u32 %v421, 4294901760
    %v2771 = vsub.f32 %v421, %v2770
    %2772 = vmatpush.msra.mxu0 %v2771
    %v2773 = vand.u32 %v420, 4294901760
    %v2774 = vsub.f32 %v420, %v2773
    %2775 = vmatpush.msra.mxu0 %v2774
    %v2776 = vand.u32 %v419, 4294901760
    %v2777 = vsub.f32 %v419, %v2776
    %2778 = vmatpush.msra.mxu0 %v2777
    %v2779 = vand.u32 %v418, 4294901760
    %v2780 = vsub.f32 %v418, %v2779
    %2781 = vmatpush.msra.mxu0 %v2780
    %v2782 = vand.u32 %v417, 4294901760
    %v2783 = vsub.f32 %v417, %v2782
    %2784 = vmatpush.msra.mxu0 %v2783
    %v2785 = vand.u32 %v416, 4294901760
    %v2786 = vsub.f32 %v416, %v2785
    %2787 = vmatpush.msra.mxu0 %v2786
    %v2788 = vand.u32 %v415, 4294901760
    %v2789 = vsub.f32 %v415, %v2788
    %2790 = vmatpush.msra.mxu0 %v2789
    %v2791 = vand.u32 %v414, 4294901760
    %v2792 = vsub.f32 %v414, %v2791
    %2793 = vmatpush.msra.mxu0 %v2792
    %v2794 = vand.u32 %v309, 4294901760
    %v2795 = vsub.f32 %v309, %v2794
    %2796 = vmatmul.f32.gmra.mxu0 %v2795
    %v2797 = vpop.f32.mrf.mxu0
    %v2798 = vadd.f32 %v2744, %v2797
    %2799 = vdwg.mxu0
    %v2800 = vand.u32 %v429, 4294901760
    %2801 = vmatpush.msra.mxu0 %v2800
    %v2802 = vand.u32 %v428, 4294901760
    %2803 = vmatpush.msra.mxu0 %v2802
    %v2804 = vand.u32 %v427, 4294901760
    %2805 = vmatpush.msra.mxu0 %v2804
    %v2806 = vand.u32 %v426, 4294901760
    %2807 = vmatpush.msra.mxu0 %v2806
    %v2808 = vand.u32 %v425, 4294901760
    %2809 = vmatpush.msra.mxu0 %v2808
    %v2810 = vand.u32 %v424, 4294901760
    %2811 = vmatpush.msra.mxu0 %v2810
    %v2812 = vand.u32 %v423, 4294901760
    %2813 = vmatpush.msra.mxu0 %v2812
    %v2814 = vand.u32 %v422, 4294901760
    %2815 = vmatpush.msra.mxu0 %v2814
    %v2816 = vand.u32 %v421, 4294901760
    %2817 = vmatpush.msra.mxu0 %v2816
    %v2818 = vand.u32 %v420, 4294901760
    %2819 = vmatpush.msra.mxu0 %v2818
    %v2820 = vand.u32 %v419, 4294901760
    %2821 = vmatpush.msra.mxu0 %v2820
    %v2822 = vand.u32 %v418, 4294901760
    %2823 = vmatpush.msra.mxu0 %v2822
    %v2824 = vand.u32 %v417, 4294901760
    %2825 = vmatpush.msra.mxu0 %v2824
    %v2826 = vand.u32 %v416, 4294901760
    %2827 = vmatpush.msra.mxu0 %v2826
    %v2828 = vand.u32 %v415, 4294901760
    %2829 = vmatpush.msra.mxu0 %v2828
    %v2830 = vand.u32 %v414, 4294901760
    %2831 = vmatpush.msra.mxu0 %v2830
    %v2832 = vand.u32 %v309, 4294901760
    %v2833 = vsub.f32 %v309, %v2832
    %v2834 = vand.u32 %v2833, 4294901760
    %2835 = vmatmul.f32.gmra.mxu0 %v2834
    %v2836 = vpop.f32.mrf.mxu0
    %v2837 = vadd.f32 %v2798, %v2836
    %2838 = vdwg.mxu0
    %v2839 = vand.u32 %v429, 4294901760
    %v2840 = vsub.f32 %v429, %v2839
    %v2841 = vand.u32 %v2840, 4294901760
    %2842 = vmatpush.msra.mxu0 %v2841
    %v2843 = vand.u32 %v428, 4294901760
    %v2844 = vsub.f32 %v428, %v2843
    %v2845 = vand.u32 %v2844, 4294901760
    %2846 = vmatpush.msra.mxu0 %v2845
    %v2847 = vand.u32 %v427, 4294901760
    %v2848 = vsub.f32 %v427, %v2847
    %v2849 = vand.u32 %v2848, 4294901760
    %2850 = vmatpush.msra.mxu0 %v2849
    %v2851 = vand.u32 %v426, 4294901760
    %v2852 = vsub.f32 %v426, %v2851
    %v2853 = vand.u32 %v2852, 4294901760
    %2854 = vmatpush.msra.mxu0 %v2853
    %v2855 = vand.u32 %v425, 4294901760
    %v2856 = vsub.f32 %v425, %v2855
    %v2857 = vand.u32 %v2856, 4294901760
    %2858 = vmatpush.msra.mxu0 %v2857
    %v2859 = vand.u32 %v424, 4294901760
    %v2860 = vsub.f32 %v424, %v2859
    %v2861 = vand.u32 %v2860, 4294901760
    %2862 = vmatpush.msra.mxu0 %v2861
    %v2863 = vand.u32 %v423, 4294901760
    %v2864 = vsub.f32 %v423, %v2863
    %v2865 = vand.u32 %v2864, 4294901760
    %2866 = vmatpush.msra.mxu0 %v2865
    %v2867 = vand.u32 %v422, 4294901760
    %v2868 = vsub.f32 %v422, %v2867
    %v2869 = vand.u32 %v2868, 4294901760
    %2870 = vmatpush.msra.mxu0 %v2869
    %v2871 = vand.u32 %v421, 4294901760
    %v2872 = vsub.f32 %v421, %v2871
    %v2873 = vand.u32 %v2872, 4294901760
    %2874 = vmatpush.msra.mxu0 %v2873
    %v2875 = vand.u32 %v420, 4294901760
    %v2876 = vsub.f32 %v420, %v2875
    %v2877 = vand.u32 %v2876, 4294901760
    %2878 = vmatpush.msra.mxu0 %v2877
    %v2879 = vand.u32 %v419, 4294901760
    %v2880 = vsub.f32 %v419, %v2879
    %v2881 = vand.u32 %v2880, 4294901760
    %2882 = vmatpush.msra.mxu0 %v2881
    %v2883 = vand.u32 %v418, 4294901760
    %v2884 = vsub.f32 %v418, %v2883
    %v2885 = vand.u32 %v2884, 4294901760
    %2886 = vmatpush.msra.mxu0 %v2885
    %v2887 = vand.u32 %v417, 4294901760
    %v2888 = vsub.f32 %v417, %v2887
    %v2889 = vand.u32 %v2888, 4294901760
    %2890 = vmatpush.msra.mxu0 %v2889
    %v2891 = vand.u32 %v416, 4294901760
    %v2892 = vsub.f32 %v416, %v2891
    %v2893 = vand.u32 %v2892, 4294901760
    %2894 = vmatpush.msra.mxu0 %v2893
    %v2895 = vand.u32 %v415, 4294901760
    %v2896 = vsub.f32 %v415, %v2895
    %v2897 = vand.u32 %v2896, 4294901760
    %2898 = vmatpush.msra.mxu0 %v2897
    %v2899 = vand.u32 %v414, 4294901760
    %v2900 = vsub.f32 %v414, %v2899
    %v2901 = vand.u32 %v2900, 4294901760
    %2902 = vmatpush.msra.mxu0 %v2901
    %v2903 = vand.u32 %v309, 4294901760
    %2904 = vmatmul.f32.gmra.mxu0 %v2903
    %v2905 = vpop.f32.mrf.mxu0
    %v2906 = vadd.f32 %v2837, %v2905
    %2907 = vdwg.mxu0
    %v2908 = vand.u32 %v429, 4294901760
    %2909 = vmatpush.msra.mxu0 %v2908
    %v2910 = vand.u32 %v428, 4294901760
    %2911 = vmatpush.msra.mxu0 %v2910
    %v2912 = vand.u32 %v427, 4294901760
    %2913 = vmatpush.msra.mxu0 %v2912
    %v2914 = vand.u32 %v426, 4294901760
    %2915 = vmatpush.msra.mxu0 %v2914
    %v2916 = vand.u32 %v425, 4294901760
    %2917 = vmatpush.msra.mxu0 %v2916
    %v2918 = vand.u32 %v424, 4294901760
    %2919 = vmatpush.msra.mxu0 %v2918
    %v2920 = vand.u32 %v423, 4294901760
    %2921 = vmatpush.msra.mxu0 %v2920
    %v2922 = vand.u32 %v422, 4294901760
    %2923 = vmatpush.msra.mxu0 %v2922
    %v2924 = vand.u32 %v421, 4294901760
    %2925 = vmatpush.msra.mxu0 %v2924
    %v2926 = vand.u32 %v420, 4294901760
    %2927 = vmatpush.msra.mxu0 %v2926
    %v2928 = vand.u32 %v419, 4294901760
    %2929 = vmatpush.msra.mxu0 %v2928
    %v2930 = vand.u32 %v418, 4294901760
    %2931 = vmatpush.msra.mxu0 %v2930
    %v2932 = vand.u32 %v417, 4294901760
    %2933 = vmatpush.msra.mxu0 %v2932
    %v2934 = vand.u32 %v416, 4294901760
    %2935 = vmatpush.msra.mxu0 %v2934
    %v2936 = vand.u32 %v415, 4294901760
    %2937 = vmatpush.msra.mxu0 %v2936
    %v2938 = vand.u32 %v414, 4294901760
    %2939 = vmatpush.msra.mxu0 %v2938
    %v2940 = vand.u32 %v309, 4294901760
    %2941 = vmatmul.f32.gmra.mxu0 %v2940
    %v2942 = vpop.f32.mrf.mxu0
    %v2943 = vadd.f32 %v2906, %v2942
    %2944 = vdwg.mxu0
    %v2945 = vand.u32 %v445, 4294901760
    %2946 = vmatpush.msra.mxu0 %v2945
    %v2947 = vand.u32 %v444, 4294901760
    %2948 = vmatpush.msra.mxu0 %v2947
    %v2949 = vand.u32 %v443, 4294901760
    %2950 = vmatpush.msra.mxu0 %v2949
    %v2951 = vand.u32 %v442, 4294901760
    %2952 = vmatpush.msra.mxu0 %v2951
    %v2953 = vand.u32 %v441, 4294901760
    %2954 = vmatpush.msra.mxu0 %v2953
    %v2955 = vand.u32 %v440, 4294901760
    %2956 = vmatpush.msra.mxu0 %v2955
    %v2957 = vand.u32 %v439, 4294901760
    %2958 = vmatpush.msra.mxu0 %v2957
    %v2959 = vand.u32 %v438, 4294901760
    %2960 = vmatpush.msra.mxu0 %v2959
    %v2961 = vand.u32 %v437, 4294901760
    %2962 = vmatpush.msra.mxu0 %v2961
    %v2963 = vand.u32 %v436, 4294901760
    %2964 = vmatpush.msra.mxu0 %v2963
    %v2965 = vand.u32 %v435, 4294901760
    %2966 = vmatpush.msra.mxu0 %v2965
    %v2967 = vand.u32 %v434, 4294901760
    %2968 = vmatpush.msra.mxu0 %v2967
    %v2969 = vand.u32 %v433, 4294901760
    %2970 = vmatpush.msra.mxu0 %v2969
    %v2971 = vand.u32 %v432, 4294901760
    %2972 = vmatpush.msra.mxu0 %v2971
    %v2973 = vand.u32 %v431, 4294901760
    %2974 = vmatpush.msra.mxu0 %v2973
    %v2975 = vand.u32 %v430, 4294901760
    %2976 = vmatpush.msra.mxu0 %v2975
    %v2977 = vand.u32 %v310, 4294901760
    %v2978 = vsub.f32 %v310, %v2977
    %v2979 = vand.u32 %v2978, 4294901760
    %v2980 = vsub.f32 %v2978, %v2979
    %v2981 = vand.u32 %v2980, 4294901760
    %2982 = vmatmul.f32.gmra.mxu0 %v2981
    %v2983 = vpop.f32.mrf.mxu0
    %v2984 = vadd.f32 %v2943, %v2983
    %2985 = vdwg.mxu0
    %v2986 = vand.u32 %v445, 4294901760
    %v2987 = vsub.f32 %v445, %v2986
    %v2988 = vand.u32 %v2987, 4294901760
    %v2989 = vsub.f32 %v2987, %v2988
    %v2990 = vand.u32 %v2989, 4294901760
    %2991 = vmatpush.msra.mxu0 %v2990
    %v2992 = vand.u32 %v444, 4294901760
    %v2993 = vsub.f32 %v444, %v2992
    %v2994 = vand.u32 %v2993, 4294901760
    %v2995 = vsub.f32 %v2993, %v2994
    %v2996 = vand.u32 %v2995, 4294901760
    %2997 = vmatpush.msra.mxu0 %v2996
    %v2998 = vand.u32 %v443, 4294901760
    %v2999 = vsub.f32 %v443, %v2998
    %v3000 = vand.u32 %v2999, 4294901760
    %v3001 = vsub.f32 %v2999, %v3000
    %v3002 = vand.u32 %v3001, 4294901760
    %3003 = vmatpush.msra.mxu0 %v3002
    %v3004 = vand.u32 %v442, 4294901760
    %v3005 = vsub.f32 %v442, %v3004
    %v3006 = vand.u32 %v3005, 4294901760
    %v3007 = vsub.f32 %v3005, %v3006
    %v3008 = vand.u32 %v3007, 4294901760
    %3009 = vmatpush.msra.mxu0 %v3008
    %v3010 = vand.u32 %v441, 4294901760
    %v3011 = vsub.f32 %v441, %v3010
    %v3012 = vand.u32 %v3011, 4294901760
    %v3013 = vsub.f32 %v3011, %v3012
    %v3014 = vand.u32 %v3013, 4294901760
    %3015 = vmatpush.msra.mxu0 %v3014
    %v3016 = vand.u32 %v440, 4294901760
    %v3017 = vsub.f32 %v440, %v3016
    %v3018 = vand.u32 %v3017, 4294901760
    %v3019 = vsub.f32 %v3017, %v3018
    %v3020 = vand.u32 %v3019, 4294901760
    %3021 = vmatpush.msra.mxu0 %v3020
    %v3022 = vand.u32 %v439, 4294901760
    %v3023 = vsub.f32 %v439, %v3022
    %v3024 = vand.u32 %v3023, 4294901760
    %v3025 = vsub.f32 %v3023, %v3024
    %v3026 = vand.u32 %v3025, 4294901760
    %3027 = vmatpush.msra.mxu0 %v3026
    %v3028 = vand.u32 %v438, 4294901760
    %v3029 = vsub.f32 %v438, %v3028
    %v3030 = vand.u32 %v3029, 4294901760
    %v3031 = vsub.f32 %v3029, %v3030
    %v3032 = vand.u32 %v3031, 4294901760
    %3033 = vmatpush.msra.mxu0 %v3032
    %v3034 = vand.u32 %v437, 4294901760
    %v3035 = vsub.f32 %v437, %v3034
    %v3036 = vand.u32 %v3035, 4294901760
    %v3037 = vsub.f32 %v3035, %v3036
    %v3038 = vand.u32 %v3037, 4294901760
    %3039 = vmatpush.msra.mxu0 %v3038
    %v3040 = vand.u32 %v436, 4294901760
    %v3041 = vsub.f32 %v436, %v3040
    %v3042 = vand.u32 %v3041, 4294901760
    %v3043 = vsub.f32 %v3041, %v3042
    %v3044 = vand.u32 %v3043, 4294901760
    %3045 = vmatpush.msra.mxu0 %v3044
    %v3046 = vand.u32 %v435, 4294901760
    %v3047 = vsub.f32 %v435, %v3046
    %v3048 = vand.u32 %v3047, 4294901760
    %v3049 = vsub.f32 %v3047, %v3048
    %v3050 = vand.u32 %v3049, 4294901760
    %3051 = vmatpush.msra.mxu0 %v3050
    %v3052 = vand.u32 %v434, 4294901760
    %v3053 = vsub.f32 %v434, %v3052
    %v3054 = vand.u32 %v3053, 4294901760
    %v3055 = vsub.f32 %v3053, %v3054
    %v3056 = vand.u32 %v3055, 4294901760
    %3057 = vmatpush.msra.mxu0 %v3056
    %v3058 = vand.u32 %v433, 4294901760
    %v3059 = vsub.f32 %v433, %v3058
    %v3060 = vand.u32 %v3059, 4294901760
    %v3061 = vsub.f32 %v3059, %v3060
    %v3062 = vand.u32 %v3061, 4294901760
    %3063 = vmatpush.msra.mxu0 %v3062
    %v3064 = vand.u32 %v432, 4294901760
    %v3065 = vsub.f32 %v432, %v3064
    %v3066 = vand.u32 %v3065, 4294901760
    %v3067 = vsub.f32 %v3065, %v3066
    %v3068 = vand.u32 %v3067, 4294901760
    %3069 = vmatpush.msra.mxu0 %v3068
    %v3070 = vand.u32 %v431, 4294901760
    %v3071 = vsub.f32 %v431, %v3070
    %v3072 = vand.u32 %v3071, 4294901760
    %v3073 = vsub.f32 %v3071, %v3072
    %v3074 = vand.u32 %v3073, 4294901760
    %3075 = vmatpush.msra.mxu0 %v3074
    %v3076 = vand.u32 %v430, 4294901760
    %v3077 = vsub.f32 %v430, %v3076
    %v3078 = vand.u32 %v3077, 4294901760
    %v3079 = vsub.f32 %v3077, %v3078
    %v3080 = vand.u32 %v3079, 4294901760
    %3081 = vmatpush.msra.mxu0 %v3080
    %v3082 = vand.u32 %v310, 4294901760
    %3083 = vmatmul.f32.gmra.mxu0 %v3082
    %v3084 = vpop.f32.mrf.mxu0
    %v3085 = vadd.f32 %v2984, %v3084
    %3086 = vdwg.mxu0
    %v3087 = vand.u32 %v445, 4294901760
    %v3088 = vsub.f32 %v445, %v3087
    %3089 = vmatpush.msra.mxu0 %v3088
    %v3090 = vand.u32 %v444, 4294901760
    %v3091 = vsub.f32 %v444, %v3090
    %3092 = vmatpush.msra.mxu0 %v3091
    %v3093 = vand.u32 %v443, 4294901760
    %v3094 = vsub.f32 %v443, %v3093
    %3095 = vmatpush.msra.mxu0 %v3094
    %v3096 = vand.u32 %v442, 4294901760
    %v3097 = vsub.f32 %v442, %v3096
    %3098 = vmatpush.msra.mxu0 %v3097
    %v3099 = vand.u32 %v441, 4294901760
    %v3100 = vsub.f32 %v441, %v3099
    %3101 = vmatpush.msra.mxu0 %v3100
    %v3102 = vand.u32 %v440, 4294901760
    %v3103 = vsub.f32 %v440, %v3102
    %3104 = vmatpush.msra.mxu0 %v3103
    %v3105 = vand.u32 %v439, 4294901760
    %v3106 = vsub.f32 %v439, %v3105
    %3107 = vmatpush.msra.mxu0 %v3106
    %v3108 = vand.u32 %v438, 4294901760
    %v3109 = vsub.f32 %v438, %v3108
    %3110 = vmatpush.msra.mxu0 %v3109
    %v3111 = vand.u32 %v437, 4294901760
    %v3112 = vsub.f32 %v437, %v3111
    %3113 = vmatpush.msra.mxu0 %v3112
    %v3114 = vand.u32 %v436, 4294901760
    %v3115 = vsub.f32 %v436, %v3114
    %3116 = vmatpush.msra.mxu0 %v3115
    %v3117 = vand.u32 %v435, 4294901760
    %v3118 = vsub.f32 %v435, %v3117
    %3119 = vmatpush.msra.mxu0 %v3118
    %v3120 = vand.u32 %v434, 4294901760
    %v3121 = vsub.f32 %v434, %v3120
    %3122 = vmatpush.msra.mxu0 %v3121
    %v3123 = vand.u32 %v433, 4294901760
    %v3124 = vsub.f32 %v433, %v3123
    %3125 = vmatpush.msra.mxu0 %v3124
    %v3126 = vand.u32 %v432, 4294901760
    %v3127 = vsub.f32 %v432, %v3126
    %3128 = vmatpush.msra.mxu0 %v3127
    %v3129 = vand.u32 %v431, 4294901760
    %v3130 = vsub.f32 %v431, %v3129
    %3131 = vmatpush.msra.mxu0 %v3130
    %v3132 = vand.u32 %v430, 4294901760
    %v3133 = vsub.f32 %v430, %v3132
    %3134 = vmatpush.msra.mxu0 %v3133
    %v3135 = vand.u32 %v310, 4294901760
    %v3136 = vsub.f32 %v310, %v3135
    %3137 = vmatmul.f32.gmra.mxu0 %v3136
    %v3138 = vpop.f32.mrf.mxu0
    %v3139 = vadd.f32 %v3085, %v3138
    %3140 = vdwg.mxu0
    %v3141 = vand.u32 %v445, 4294901760
    %3142 = vmatpush.msra.mxu0 %v3141
    %v3143 = vand.u32 %v444, 4294901760
    %3144 = vmatpush.msra.mxu0 %v3143
    %v3145 = vand.u32 %v443, 4294901760
    %3146 = vmatpush.msra.mxu0 %v3145
    %v3147 = vand.u32 %v442, 4294901760
    %3148 = vmatpush.msra.mxu0 %v3147
    %v3149 = vand.u32 %v441, 4294901760
    %3150 = vmatpush.msra.mxu0 %v3149
    %v3151 = vand.u32 %v440, 4294901760
    %3152 = vmatpush.msra.mxu0 %v3151
    %v3153 = vand.u32 %v439, 4294901760
    %3154 = vmatpush.msra.mxu0 %v3153
    %v3155 = vand.u32 %v438, 4294901760
    %3156 = vmatpush.msra.mxu0 %v3155
    %v3157 = vand.u32 %v437, 4294901760
    %3158 = vmatpush.msra.mxu0 %v3157
    %v3159 = vand.u32 %v436, 4294901760
    %3160 = vmatpush.msra.mxu0 %v3159
    %v3161 = vand.u32 %v435, 4294901760
    %3162 = vmatpush.msra.mxu0 %v3161
    %v3163 = vand.u32 %v434, 4294901760
    %3164 = vmatpush.msra.mxu0 %v3163
    %v3165 = vand.u32 %v433, 4294901760
    %3166 = vmatpush.msra.mxu0 %v3165
    %v3167 = vand.u32 %v432, 4294901760
    %3168 = vmatpush.msra.mxu0 %v3167
    %v3169 = vand.u32 %v431, 4294901760
    %3170 = vmatpush.msra.mxu0 %v3169
    %v3171 = vand.u32 %v430, 4294901760
    %3172 = vmatpush.msra.mxu0 %v3171
    %v3173 = vand.u32 %v310, 4294901760
    %v3174 = vsub.f32 %v310, %v3173
    %v3175 = vand.u32 %v3174, 4294901760
    %3176 = vmatmul.f32.gmra.mxu0 %v3175
    %v3177 = vpop.f32.mrf.mxu0
    %v3178 = vadd.f32 %v3139, %v3177
    %3179 = vdwg.mxu0
    %v3180 = vand.u32 %v445, 4294901760
    %v3181 = vsub.f32 %v445, %v3180
    %v3182 = vand.u32 %v3181, 4294901760
    %3183 = vmatpush.msra.mxu0 %v3182
    %v3184 = vand.u32 %v444, 4294901760
    %v3185 = vsub.f32 %v444, %v3184
    %v3186 = vand.u32 %v3185, 4294901760
    %3187 = vmatpush.msra.mxu0 %v3186
    %v3188 = vand.u32 %v443, 4294901760
    %v3189 = vsub.f32 %v443, %v3188
    %v3190 = vand.u32 %v3189, 4294901760
    %3191 = vmatpush.msra.mxu0 %v3190
    %v3192 = vand.u32 %v442, 4294901760
    %v3193 = vsub.f32 %v442, %v3192
    %v3194 = vand.u32 %v3193, 4294901760
    %3195 = vmatpush.msra.mxu0 %v3194
    %v3196 = vand.u32 %v441, 4294901760
    %v3197 = vsub.f32 %v441, %v3196
    %v3198 = vand.u32 %v3197, 4294901760
    %3199 = vmatpush.msra.mxu0 %v3198
    %v3200 = vand.u32 %v440, 4294901760
    %v3201 = vsub.f32 %v440, %v3200
    %v3202 = vand.u32 %v3201, 4294901760
    %3203 = vmatpush.msra.mxu0 %v3202
    %v3204 = vand.u32 %v439, 4294901760
    %v3205 = vsub.f32 %v439, %v3204
    %v3206 = vand.u32 %v3205, 4294901760
    %3207 = vmatpush.msra.mxu0 %v3206
    %v3208 = vand.u32 %v438, 4294901760
    %v3209 = vsub.f32 %v438, %v3208
    %v3210 = vand.u32 %v3209, 4294901760
    %3211 = vmatpush.msra.mxu0 %v3210
    %v3212 = vand.u32 %v437, 4294901760
    %v3213 = vsub.f32 %v437, %v3212
    %v3214 = vand.u32 %v3213, 4294901760
    %3215 = vmatpush.msra.mxu0 %v3214
    %v3216 = vand.u32 %v436, 4294901760
    %v3217 = vsub.f32 %v436, %v3216
    %v3218 = vand.u32 %v3217, 4294901760
    %3219 = vmatpush.msra.mxu0 %v3218
    %v3220 = vand.u32 %v435, 4294901760
    %v3221 = vsub.f32 %v435, %v3220
    %v3222 = vand.u32 %v3221, 4294901760
    %3223 = vmatpush.msra.mxu0 %v3222
    %v3224 = vand.u32 %v434, 4294901760
    %v3225 = vsub.f32 %v434, %v3224
    %v3226 = vand.u32 %v3225, 4294901760
    %3227 = vmatpush.msra.mxu0 %v3226
    %v3228 = vand.u32 %v433, 4294901760
    %v3229 = vsub.f32 %v433, %v3228
    %v3230 = vand.u32 %v3229, 4294901760
    %3231 = vmatpush.msra.mxu0 %v3230
    %v3232 = vand.u32 %v432, 4294901760
    %v3233 = vsub.f32 %v432, %v3232
    %v3234 = vand.u32 %v3233, 4294901760
    %3235 = vmatpush.msra.mxu0 %v3234
    %v3236 = vand.u32 %v431, 4294901760
    %v3237 = vsub.f32 %v431, %v3236
    %v3238 = vand.u32 %v3237, 4294901760
    %3239 = vmatpush.msra.mxu0 %v3238
    %v3240 = vand.u32 %v430, 4294901760
    %v3241 = vsub.f32 %v430, %v3240
    %v3242 = vand.u32 %v3241, 4294901760
    %3243 = vmatpush.msra.mxu0 %v3242
    %v3244 = vand.u32 %v310, 4294901760
    %3245 = vmatmul.f32.gmra.mxu0 %v3244
    %v3246 = vpop.f32.mrf.mxu0
    %v3247 = vadd.f32 %v3178, %v3246
    %3248 = vdwg.mxu0
    %v3249 = vand.u32 %v445, 4294901760
    %3250 = vmatpush.msra.mxu0 %v3249
    %v3251 = vand.u32 %v444, 4294901760
    %3252 = vmatpush.msra.mxu0 %v3251
    %v3253 = vand.u32 %v443, 4294901760
    %3254 = vmatpush.msra.mxu0 %v3253
    %v3255 = vand.u32 %v442, 4294901760
    %3256 = vmatpush.msra.mxu0 %v3255
    %v3257 = vand.u32 %v441, 4294901760
    %3258 = vmatpush.msra.mxu0 %v3257
    %v3259 = vand.u32 %v440, 4294901760
    %3260 = vmatpush.msra.mxu0 %v3259
    %v3261 = vand.u32 %v439, 4294901760
    %3262 = vmatpush.msra.mxu0 %v3261
    %v3263 = vand.u32 %v438, 4294901760
    %3264 = vmatpush.msra.mxu0 %v3263
    %v3265 = vand.u32 %v437, 4294901760
    %3266 = vmatpush.msra.mxu0 %v3265
    %v3267 = vand.u32 %v436, 4294901760
    %3268 = vmatpush.msra.mxu0 %v3267
    %v3269 = vand.u32 %v435, 4294901760
    %3270 = vmatpush.msra.mxu0 %v3269
    %v3271 = vand.u32 %v434, 4294901760
    %3272 = vmatpush.msra.mxu0 %v3271
    %v3273 = vand.u32 %v433, 4294901760
    %3274 = vmatpush.msra.mxu0 %v3273
    %v3275 = vand.u32 %v432, 4294901760
    %3276 = vmatpush.msra.mxu0 %v3275
    %v3277 = vand.u32 %v431, 4294901760
    %3278 = vmatpush.msra.mxu0 %v3277
    %v3279 = vand.u32 %v430, 4294901760
    %3280 = vmatpush.msra.mxu0 %v3279
    %v3281 = vand.u32 %v310, 4294901760
    %3282 = vmatmul.f32.gmra.mxu0 %v3281
    %v3283 = vpop.f32.mrf.mxu0
    %v3284 = vadd.f32 %v3247, %v3283
    %3285 = vdwg.mxu0
    %v3286 = vand.u32 %v461, 4294901760
    %3287 = vmatpush.msra.mxu0 %v3286
    %v3288 = vand.u32 %v460, 4294901760
    %3289 = vmatpush.msra.mxu0 %v3288
    %v3290 = vand.u32 %v459, 4294901760
    %3291 = vmatpush.msra.mxu0 %v3290
    %v3292 = vand.u32 %v458, 4294901760
    %3293 = vmatpush.msra.mxu0 %v3292
    %v3294 = vand.u32 %v457, 4294901760
    %3295 = vmatpush.msra.mxu0 %v3294
    %v3296 = vand.u32 %v456, 4294901760
    %3297 = vmatpush.msra.mxu0 %v3296
    %v3298 = vand.u32 %v455, 4294901760
    %3299 = vmatpush.msra.mxu0 %v3298
    %v3300 = vand.u32 %v454, 4294901760
    %3301 = vmatpush.msra.mxu0 %v3300
    %v3302 = vand.u32 %v453, 4294901760
    %3303 = vmatpush.msra.mxu0 %v3302
    %v3304 = vand.u32 %v452, 4294901760
    %3305 = vmatpush.msra.mxu0 %v3304
    %v3306 = vand.u32 %v451, 4294901760
    %3307 = vmatpush.msra.mxu0 %v3306
    %v3308 = vand.u32 %v450, 4294901760
    %3309 = vmatpush.msra.mxu0 %v3308
    %v3310 = vand.u32 %v449, 4294901760
    %3311 = vmatpush.msra.mxu0 %v3310
    %v3312 = vand.u32 %v448, 4294901760
    %3313 = vmatpush.msra.mxu0 %v3312
    %v3314 = vand.u32 %v447, 4294901760
    %3315 = vmatpush.msra.mxu0 %v3314
    %v3316 = vand.u32 %v446, 4294901760
    %3317 = vmatpush.msra.mxu0 %v3316
    %v3318 = vand.u32 %v311, 4294901760
    %v3319 = vsub.f32 %v311, %v3318
    %v3320 = vand.u32 %v3319, 4294901760
    %v3321 = vsub.f32 %v3319, %v3320
    %v3322 = vand.u32 %v3321, 4294901760
    %3323 = vmatmul.f32.gmra.mxu0 %v3322
    %v3324 = vpop.f32.mrf.mxu0
    %v3325 = vadd.f32 %v3284, %v3324
    %3326 = vdwg.mxu0
    %v3327 = vand.u32 %v461, 4294901760
    %v3328 = vsub.f32 %v461, %v3327
    %v3329 = vand.u32 %v3328, 4294901760
    %v3330 = vsub.f32 %v3328, %v3329
    %v3331 = vand.u32 %v3330, 4294901760
    %3332 = vmatpush.msra.mxu0 %v3331
    %v3333 = vand.u32 %v460, 4294901760
    %v3334 = vsub.f32 %v460, %v3333
    %v3335 = vand.u32 %v3334, 4294901760
    %v3336 = vsub.f32 %v3334, %v3335
    %v3337 = vand.u32 %v3336, 4294901760
    %3338 = vmatpush.msra.mxu0 %v3337
    %v3339 = vand.u32 %v459, 4294901760
    %v3340 = vsub.f32 %v459, %v3339
    %v3341 = vand.u32 %v3340, 4294901760
    %v3342 = vsub.f32 %v3340, %v3341
    %v3343 = vand.u32 %v3342, 4294901760
    %3344 = vmatpush.msra.mxu0 %v3343
    %v3345 = vand.u32 %v458, 4294901760
    %v3346 = vsub.f32 %v458, %v3345
    %v3347 = vand.u32 %v3346, 4294901760
    %v3348 = vsub.f32 %v3346, %v3347
    %v3349 = vand.u32 %v3348, 4294901760
    %3350 = vmatpush.msra.mxu0 %v3349
    %v3351 = vand.u32 %v457, 4294901760
    %v3352 = vsub.f32 %v457, %v3351
    %v3353 = vand.u32 %v3352, 4294901760
    %v3354 = vsub.f32 %v3352, %v3353
    %v3355 = vand.u32 %v3354, 4294901760
    %3356 = vmatpush.msra.mxu0 %v3355
    %v3357 = vand.u32 %v456, 4294901760
    %v3358 = vsub.f32 %v456, %v3357
    %v3359 = vand.u32 %v3358, 4294901760
    %v3360 = vsub.f32 %v3358, %v3359
    %v3361 = vand.u32 %v3360, 4294901760
    %3362 = vmatpush.msra.mxu0 %v3361
    %v3363 = vand.u32 %v455, 4294901760
    %v3364 = vsub.f32 %v455, %v3363
    %v3365 = vand.u32 %v3364, 4294901760
    %v3366 = vsub.f32 %v3364, %v3365
    %v3367 = vand.u32 %v3366, 4294901760
    %3368 = vmatpush.msra.mxu0 %v3367
    %v3369 = vand.u32 %v454, 4294901760
    %v3370 = vsub.f32 %v454, %v3369
    %v3371 = vand.u32 %v3370, 4294901760
    %v3372 = vsub.f32 %v3370, %v3371
    %v3373 = vand.u32 %v3372, 4294901760
    %3374 = vmatpush.msra.mxu0 %v3373
    %v3375 = vand.u32 %v453, 4294901760
    %v3376 = vsub.f32 %v453, %v3375
    %v3377 = vand.u32 %v3376, 4294901760
    %v3378 = vsub.f32 %v3376, %v3377
    %v3379 = vand.u32 %v3378, 4294901760
    %3380 = vmatpush.msra.mxu0 %v3379
    %v3381 = vand.u32 %v452, 4294901760
    %v3382 = vsub.f32 %v452, %v3381
    %v3383 = vand.u32 %v3382, 4294901760
    %v3384 = vsub.f32 %v3382, %v3383
    %v3385 = vand.u32 %v3384, 4294901760
    %3386 = vmatpush.msra.mxu0 %v3385
    %v3387 = vand.u32 %v451, 4294901760
    %v3388 = vsub.f32 %v451, %v3387
    %v3389 = vand.u32 %v3388, 4294901760
    %v3390 = vsub.f32 %v3388, %v3389
    %v3391 = vand.u32 %v3390, 4294901760
    %3392 = vmatpush.msra.mxu0 %v3391
    %v3393 = vand.u32 %v450, 4294901760
    %v3394 = vsub.f32 %v450, %v3393
    %v3395 = vand.u32 %v3394, 4294901760
    %v3396 = vsub.f32 %v3394, %v3395
    %v3397 = vand.u32 %v3396, 4294901760
    %3398 = vmatpush.msra.mxu0 %v3397
    %v3399 = vand.u32 %v449, 4294901760
    %v3400 = vsub.f32 %v449, %v3399
    %v3401 = vand.u32 %v3400, 4294901760
    %v3402 = vsub.f32 %v3400, %v3401
    %v3403 = vand.u32 %v3402, 4294901760
    %3404 = vmatpush.msra.mxu0 %v3403
    %v3405 = vand.u32 %v448, 4294901760
    %v3406 = vsub.f32 %v448, %v3405
    %v3407 = vand.u32 %v3406, 4294901760
    %v3408 = vsub.f32 %v3406, %v3407
    %v3409 = vand.u32 %v3408, 4294901760
    %3410 = vmatpush.msra.mxu0 %v3409
    %v3411 = vand.u32 %v447, 4294901760
    %v3412 = vsub.f32 %v447, %v3411
    %v3413 = vand.u32 %v3412, 4294901760
    %v3414 = vsub.f32 %v3412, %v3413
    %v3415 = vand.u32 %v3414, 4294901760
    %3416 = vmatpush.msra.mxu0 %v3415
    %v3417 = vand.u32 %v446, 4294901760
    %v3418 = vsub.f32 %v446, %v3417
    %v3419 = vand.u32 %v3418, 4294901760
    %v3420 = vsub.f32 %v3418, %v3419
    %v3421 = vand.u32 %v3420, 4294901760
    %3422 = vmatpush.msra.mxu0 %v3421
    %v3423 = vand.u32 %v311, 4294901760
    %3424 = vmatmul.f32.gmra.mxu0 %v3423
    %v3425 = vpop.f32.mrf.mxu0
    %v3426 = vadd.f32 %v3325, %v3425
    %3427 = vdwg.mxu0
    %v3428 = vand.u32 %v461, 4294901760
    %v3429 = vsub.f32 %v461, %v3428
    %3430 = vmatpush.msra.mxu0 %v3429
    %v3431 = vand.u32 %v460, 4294901760
    %v3432 = vsub.f32 %v460, %v3431
    %3433 = vmatpush.msra.mxu0 %v3432
    %v3434 = vand.u32 %v459, 4294901760
    %v3435 = vsub.f32 %v459, %v3434
    %3436 = vmatpush.msra.mxu0 %v3435
    %v3437 = vand.u32 %v458, 4294901760
    %v3438 = vsub.f32 %v458, %v3437
    %3439 = vmatpush.msra.mxu0 %v3438
    %v3440 = vand.u32 %v457, 4294901760
    %v3441 = vsub.f32 %v457, %v3440
    %3442 = vmatpush.msra.mxu0 %v3441
    %v3443 = vand.u32 %v456, 4294901760
    %v3444 = vsub.f32 %v456, %v3443
    %3445 = vmatpush.msra.mxu0 %v3444
    %v3446 = vand.u32 %v455, 4294901760
    %v3447 = vsub.f32 %v455, %v3446
    %3448 = vmatpush.msra.mxu0 %v3447
    %v3449 = vand.u32 %v454, 4294901760
    %v3450 = vsub.f32 %v454, %v3449
    %3451 = vmatpush.msra.mxu0 %v3450
    %v3452 = vand.u32 %v453, 4294901760
    %v3453 = vsub.f32 %v453, %v3452
    %3454 = vmatpush.msra.mxu0 %v3453
    %v3455 = vand.u32 %v452, 4294901760
    %v3456 = vsub.f32 %v452, %v3455
    %3457 = vmatpush.msra.mxu0 %v3456
    %v3458 = vand.u32 %v451, 4294901760
    %v3459 = vsub.f32 %v451, %v3458
    %3460 = vmatpush.msra.mxu0 %v3459
    %v3461 = vand.u32 %v450, 4294901760
    %v3462 = vsub.f32 %v450, %v3461
    %3463 = vmatpush.msra.mxu0 %v3462
    %v3464 = vand.u32 %v449, 4294901760
    %v3465 = vsub.f32 %v449, %v3464
    %3466 = vmatpush.msra.mxu0 %v3465
    %v3467 = vand.u32 %v448, 4294901760
    %v3468 = vsub.f32 %v448, %v3467
    %3469 = vmatpush.msra.mxu0 %v3468
    %v3470 = vand.u32 %v447, 4294901760
    %v3471 = vsub.f32 %v447, %v3470
    %3472 = vmatpush.msra.mxu0 %v3471
    %v3473 = vand.u32 %v446, 4294901760
    %v3474 = vsub.f32 %v446, %v3473
    %3475 = vmatpush.msra.mxu0 %v3474
    %v3476 = vand.u32 %v311, 4294901760
    %v3477 = vsub.f32 %v311, %v3476
    %3478 = vmatmul.f32.gmra.mxu0 %v3477
    %v3479 = vpop.f32.mrf.mxu0
    %v3480 = vadd.f32 %v3426, %v3479
    %3481 = vdwg.mxu0
    %v3482 = vand.u32 %v461, 4294901760
    %3483 = vmatpush.msra.mxu0 %v3482
    %v3484 = vand.u32 %v460, 4294901760
    %3485 = vmatpush.msra.mxu0 %v3484
    %v3486 = vand.u32 %v459, 4294901760
    %3487 = vmatpush.msra.mxu0 %v3486
    %v3488 = vand.u32 %v458, 4294901760
    %3489 = vmatpush.msra.mxu0 %v3488
    %v3490 = vand.u32 %v457, 4294901760
    %3491 = vmatpush.msra.mxu0 %v3490
    %v3492 = vand.u32 %v456, 4294901760
    %3493 = vmatpush.msra.mxu0 %v3492
    %v3494 = vand.u32 %v455, 4294901760
    %3495 = vmatpush.msra.mxu0 %v3494
    %v3496 = vand.u32 %v454, 4294901760
    %3497 = vmatpush.msra.mxu0 %v3496
    %v3498 = vand.u32 %v453, 4294901760
    %3499 = vmatpush.msra.mxu0 %v3498
    %v3500 = vand.u32 %v452, 4294901760
    %3501 = vmatpush.msra.mxu0 %v3500
    %v3502 = vand.u32 %v451, 4294901760
    %3503 = vmatpush.msra.mxu0 %v3502
    %v3504 = vand.u32 %v450, 4294901760
    %3505 = vmatpush.msra.mxu0 %v3504
    %v3506 = vand.u32 %v449, 4294901760
    %3507 = vmatpush.msra.mxu0 %v3506
    %v3508 = vand.u32 %v448, 4294901760
    %3509 = vmatpush.msra.mxu0 %v3508
    %v3510 = vand.u32 %v447, 4294901760
    %3511 = vmatpush.msra.mxu0 %v3510
    %v3512 = vand.u32 %v446, 4294901760
    %3513 = vmatpush.msra.mxu0 %v3512
    %v3514 = vand.u32 %v311, 4294901760
    %v3515 = vsub.f32 %v311, %v3514
    %v3516 = vand.u32 %v3515, 4294901760
    %3517 = vmatmul.f32.gmra.mxu0 %v3516
    %v3518 = vpop.f32.mrf.mxu0
    %v3519 = vadd.f32 %v3480, %v3518
    %3520 = vdwg.mxu0
    %v3521 = vand.u32 %v461, 4294901760
    %v3522 = vsub.f32 %v461, %v3521
    %v3523 = vand.u32 %v3522, 4294901760
    %3524 = vmatpush.msra.mxu0 %v3523
    %v3525 = vand.u32 %v460, 4294901760
    %v3526 = vsub.f32 %v460, %v3525
    %v3527 = vand.u32 %v3526, 4294901760
    %3528 = vmatpush.msra.mxu0 %v3527
    %v3529 = vand.u32 %v459, 4294901760
    %v3530 = vsub.f32 %v459, %v3529
    %v3531 = vand.u32 %v3530, 4294901760
    %3532 = vmatpush.msra.mxu0 %v3531
    %v3533 = vand.u32 %v458, 4294901760
    %v3534 = vsub.f32 %v458, %v3533
    %v3535 = vand.u32 %v3534, 4294901760
    %3536 = vmatpush.msra.mxu0 %v3535
    %v3537 = vand.u32 %v457, 4294901760
    %v3538 = vsub.f32 %v457, %v3537
    %v3539 = vand.u32 %v3538, 4294901760
    %3540 = vmatpush.msra.mxu0 %v3539
    %v3541 = vand.u32 %v456, 4294901760
    %v3542 = vsub.f32 %v456, %v3541
    %v3543 = vand.u32 %v3542, 4294901760
    %3544 = vmatpush.msra.mxu0 %v3543
    %v3545 = vand.u32 %v455, 4294901760
    %v3546 = vsub.f32 %v455, %v3545
    %v3547 = vand.u32 %v3546, 4294901760
    %3548 = vmatpush.msra.mxu0 %v3547
    %v3549 = vand.u32 %v454, 4294901760
    %v3550 = vsub.f32 %v454, %v3549
    %v3551 = vand.u32 %v3550, 4294901760
    %3552 = vmatpush.msra.mxu0 %v3551
    %v3553 = vand.u32 %v453, 4294901760
    %v3554 = vsub.f32 %v453, %v3553
    %v3555 = vand.u32 %v3554, 4294901760
    %3556 = vmatpush.msra.mxu0 %v3555
    %v3557 = vand.u32 %v452, 4294901760
    %v3558 = vsub.f32 %v452, %v3557
    %v3559 = vand.u32 %v3558, 4294901760
    %3560 = vmatpush.msra.mxu0 %v3559
    %v3561 = vand.u32 %v451, 4294901760
    %v3562 = vsub.f32 %v451, %v3561
    %v3563 = vand.u32 %v3562, 4294901760
    %3564 = vmatpush.msra.mxu0 %v3563
    %v3565 = vand.u32 %v450, 4294901760
    %v3566 = vsub.f32 %v450, %v3565
    %v3567 = vand.u32 %v3566, 4294901760
    %3568 = vmatpush.msra.mxu0 %v3567
    %v3569 = vand.u32 %v449, 4294901760
    %v3570 = vsub.f32 %v449, %v3569
    %v3571 = vand.u32 %v3570, 4294901760
    %3572 = vmatpush.msra.mxu0 %v3571
    %v3573 = vand.u32 %v448, 4294901760
    %v3574 = vsub.f32 %v448, %v3573
    %v3575 = vand.u32 %v3574, 4294901760
    %3576 = vmatpush.msra.mxu0 %v3575
    %v3577 = vand.u32 %v447, 4294901760
    %v3578 = vsub.f32 %v447, %v3577
    %v3579 = vand.u32 %v3578, 4294901760
    %3580 = vmatpush.msra.mxu0 %v3579
    %v3581 = vand.u32 %v446, 4294901760
    %v3582 = vsub.f32 %v446, %v3581
    %v3583 = vand.u32 %v3582, 4294901760
    %3584 = vmatpush.msra.mxu0 %v3583
    %v3585 = vand.u32 %v311, 4294901760
    %3586 = vmatmul.f32.gmra.mxu0 %v3585
    %v3587 = vpop.f32.mrf.mxu0
    %v3588 = vadd.f32 %v3519, %v3587
    %3589 = vdwg.mxu0
    %v3590 = vand.u32 %v461, 4294901760
    %3591 = vmatpush.msra.mxu0 %v3590
    %v3592 = vand.u32 %v460, 4294901760
    %3593 = vmatpush.msra.mxu0 %v3592
    %v3594 = vand.u32 %v459, 4294901760
    %3595 = vmatpush.msra.mxu0 %v3594
    %v3596 = vand.u32 %v458, 4294901760
    %3597 = vmatpush.msra.mxu0 %v3596
    %v3598 = vand.u32 %v457, 4294901760
    %3599 = vmatpush.msra.mxu0 %v3598
    %v3600 = vand.u32 %v456, 4294901760
    %3601 = vmatpush.msra.mxu0 %v3600
    %v3602 = vand.u32 %v455, 4294901760
    %3603 = vmatpush.msra.mxu0 %v3602
    %v3604 = vand.u32 %v454, 4294901760
    %3605 = vmatpush.msra.mxu0 %v3604
    %v3606 = vand.u32 %v453, 4294901760
    %3607 = vmatpush.msra.mxu0 %v3606
    %v3608 = vand.u32 %v452, 4294901760
    %3609 = vmatpush.msra.mxu0 %v3608
    %v3610 = vand.u32 %v451, 4294901760
    %3611 = vmatpush.msra.mxu0 %v3610
    %v3612 = vand.u32 %v450, 4294901760
    %3613 = vmatpush.msra.mxu0 %v3612
    %v3614 = vand.u32 %v449, 4294901760
    %3615 = vmatpush.msra.mxu0 %v3614
    %v3616 = vand.u32 %v448, 4294901760
    %3617 = vmatpush.msra.mxu0 %v3616
    %v3618 = vand.u32 %v447, 4294901760
    %3619 = vmatpush.msra.mxu0 %v3618
    %v3620 = vand.u32 %v446, 4294901760
    %3621 = vmatpush.msra.mxu0 %v3620
    %v3622 = vand.u32 %v311, 4294901760
    %3623 = vmatmul.f32.gmra.mxu0 %v3622
    %v3624 = vpop.f32.mrf.mxu0
    %v3625 = vadd.f32 %v3588, %v3624
    %3626 = vdwg.mxu0
    %v3627 = vand.u32 %v477, 4294901760
    %3628 = vmatpush.msra.mxu0 %v3627
    %v3629 = vand.u32 %v476, 4294901760
    %3630 = vmatpush.msra.mxu0 %v3629
    %v3631 = vand.u32 %v475, 4294901760
    %3632 = vmatpush.msra.mxu0 %v3631
    %v3633 = vand.u32 %v474, 4294901760
    %3634 = vmatpush.msra.mxu0 %v3633
    %v3635 = vand.u32 %v473, 4294901760
    %3636 = vmatpush.msra.mxu0 %v3635
    %v3637 = vand.u32 %v472, 4294901760
    %3638 = vmatpush.msra.mxu0 %v3637
    %v3639 = vand.u32 %v471, 4294901760
    %3640 = vmatpush.msra.mxu0 %v3639
    %v3641 = vand.u32 %v470, 4294901760
    %3642 = vmatpush.msra.mxu0 %v3641
    %v3643 = vand.u32 %v469, 4294901760
    %3644 = vmatpush.msra.mxu0 %v3643
    %v3645 = vand.u32 %v468, 4294901760
    %3646 = vmatpush.msra.mxu0 %v3645
    %v3647 = vand.u32 %v467, 4294901760
    %3648 = vmatpush.msra.mxu0 %v3647
    %v3649 = vand.u32 %v466, 4294901760
    %3650 = vmatpush.msra.mxu0 %v3649
    %v3651 = vand.u32 %v465, 4294901760
    %3652 = vmatpush.msra.mxu0 %v3651
    %v3653 = vand.u32 %v464, 4294901760
    %3654 = vmatpush.msra.mxu0 %v3653
    %v3655 = vand.u32 %v463, 4294901760
    %3656 = vmatpush.msra.mxu0 %v3655
    %v3657 = vand.u32 %v462, 4294901760
    %3658 = vmatpush.msra.mxu0 %v3657
    %v3659 = vand.u32 %v312, 4294901760
    %v3660 = vsub.f32 %v312, %v3659
    %v3661 = vand.u32 %v3660, 4294901760
    %v3662 = vsub.f32 %v3660, %v3661
    %v3663 = vand.u32 %v3662, 4294901760
    %3664 = vmatmul.f32.gmra.mxu0 %v3663
    %v3665 = vpop.f32.mrf.mxu0
    %v3666 = vadd.f32 %v3625, %v3665
    %3667 = vdwg.mxu0
    %v3668 = vand.u32 %v477, 4294901760
    %v3669 = vsub.f32 %v477, %v3668
    %v3670 = vand.u32 %v3669, 4294901760
    %v3671 = vsub.f32 %v3669, %v3670
    %v3672 = vand.u32 %v3671, 4294901760
    %3673 = vmatpush.msra.mxu0 %v3672
    %v3674 = vand.u32 %v476, 4294901760
    %v3675 = vsub.f32 %v476, %v3674
    %v3676 = vand.u32 %v3675, 4294901760
    %v3677 = vsub.f32 %v3675, %v3676
    %v3678 = vand.u32 %v3677, 4294901760
    %3679 = vmatpush.msra.mxu0 %v3678
    %v3680 = vand.u32 %v475, 4294901760
    %v3681 = vsub.f32 %v475, %v3680
    %v3682 = vand.u32 %v3681, 4294901760
    %v3683 = vsub.f32 %v3681, %v3682
    %v3684 = vand.u32 %v3683, 4294901760
    %3685 = vmatpush.msra.mxu0 %v3684
    %v3686 = vand.u32 %v474, 4294901760
    %v3687 = vsub.f32 %v474, %v3686
    %v3688 = vand.u32 %v3687, 4294901760
    %v3689 = vsub.f32 %v3687, %v3688
    %v3690 = vand.u32 %v3689, 4294901760
    %3691 = vmatpush.msra.mxu0 %v3690
    %v3692 = vand.u32 %v473, 4294901760
    %v3693 = vsub.f32 %v473, %v3692
    %v3694 = vand.u32 %v3693, 4294901760
    %v3695 = vsub.f32 %v3693, %v3694
    %v3696 = vand.u32 %v3695, 4294901760
    %3697 = vmatpush.msra.mxu0 %v3696
    %v3698 = vand.u32 %v472, 4294901760
    %v3699 = vsub.f32 %v472, %v3698
    %v3700 = vand.u32 %v3699, 4294901760
    %v3701 = vsub.f32 %v3699, %v3700
    %v3702 = vand.u32 %v3701, 4294901760
    %3703 = vmatpush.msra.mxu0 %v3702
    %v3704 = vand.u32 %v471, 4294901760
    %v3705 = vsub.f32 %v471, %v3704
    %v3706 = vand.u32 %v3705, 4294901760
    %v3707 = vsub.f32 %v3705, %v3706
    %v3708 = vand.u32 %v3707, 4294901760
    %3709 = vmatpush.msra.mxu0 %v3708
    %v3710 = vand.u32 %v470, 4294901760
    %v3711 = vsub.f32 %v470, %v3710
    %v3712 = vand.u32 %v3711, 4294901760
    %v3713 = vsub.f32 %v3711, %v3712
    %v3714 = vand.u32 %v3713, 4294901760
    %3715 = vmatpush.msra.mxu0 %v3714
    %v3716 = vand.u32 %v469, 4294901760
    %v3717 = vsub.f32 %v469, %v3716
    %v3718 = vand.u32 %v3717, 4294901760
    %v3719 = vsub.f32 %v3717, %v3718
    %v3720 = vand.u32 %v3719, 4294901760
    %3721 = vmatpush.msra.mxu0 %v3720
    %v3722 = vand.u32 %v468, 4294901760
    %v3723 = vsub.f32 %v468, %v3722
    %v3724 = vand.u32 %v3723, 4294901760
    %v3725 = vsub.f32 %v3723, %v3724
    %v3726 = vand.u32 %v3725, 4294901760
    %3727 = vmatpush.msra.mxu0 %v3726
    %v3728 = vand.u32 %v467, 4294901760
    %v3729 = vsub.f32 %v467, %v3728
    %v3730 = vand.u32 %v3729, 4294901760
    %v3731 = vsub.f32 %v3729, %v3730
    %v3732 = vand.u32 %v3731, 4294901760
    %3733 = vmatpush.msra.mxu0 %v3732
    %v3734 = vand.u32 %v466, 4294901760
    %v3735 = vsub.f32 %v466, %v3734
    %v3736 = vand.u32 %v3735, 4294901760
    %v3737 = vsub.f32 %v3735, %v3736
    %v3738 = vand.u32 %v3737, 4294901760
    %3739 = vmatpush.msra.mxu0 %v3738
    %v3740 = vand.u32 %v465, 4294901760
    %v3741 = vsub.f32 %v465, %v3740
    %v3742 = vand.u32 %v3741, 4294901760
    %v3743 = vsub.f32 %v3741, %v3742
    %v3744 = vand.u32 %v3743, 4294901760
    %3745 = vmatpush.msra.mxu0 %v3744
    %v3746 = vand.u32 %v464, 4294901760
    %v3747 = vsub.f32 %v464, %v3746
    %v3748 = vand.u32 %v3747, 4294901760
    %v3749 = vsub.f32 %v3747, %v3748
    %v3750 = vand.u32 %v3749, 4294901760
    %3751 = vmatpush.msra.mxu0 %v3750
    %v3752 = vand.u32 %v463, 4294901760
    %v3753 = vsub.f32 %v463, %v3752
    %v3754 = vand.u32 %v3753, 4294901760
    %v3755 = vsub.f32 %v3753, %v3754
    %v3756 = vand.u32 %v3755, 4294901760
    %3757 = vmatpush.msra.mxu0 %v3756
    %v3758 = vand.u32 %v462, 4294901760
    %v3759 = vsub.f32 %v462, %v3758
    %v3760 = vand.u32 %v3759, 4294901760
    %v3761 = vsub.f32 %v3759, %v3760
    %v3762 = vand.u32 %v3761, 4294901760
    %3763 = vmatpush.msra.mxu0 %v3762
    %v3764 = vand.u32 %v312, 4294901760
    %3765 = vmatmul.f32.gmra.mxu0 %v3764
    %v3766 = vpop.f32.mrf.mxu0
    %v3767 = vadd.f32 %v3666, %v3766
    %3768 = vdwg.mxu0
    %v3769 = vand.u32 %v477, 4294901760
    %v3770 = vsub.f32 %v477, %v3769
    %3771 = vmatpush.msra.mxu0 %v3770
    %v3772 = vand.u32 %v476, 4294901760
    %v3773 = vsub.f32 %v476, %v3772
    %3774 = vmatpush.msra.mxu0 %v3773
    %v3775 = vand.u32 %v475, 4294901760
    %v3776 = vsub.f32 %v475, %v3775
    %3777 = vmatpush.msra.mxu0 %v3776
    %v3778 = vand.u32 %v474, 4294901760
    %v3779 = vsub.f32 %v474, %v3778
    %3780 = vmatpush.msra.mxu0 %v3779
    %v3781 = vand.u32 %v473, 4294901760
    %v3782 = vsub.f32 %v473, %v3781
    %3783 = vmatpush.msra.mxu0 %v3782
    %v3784 = vand.u32 %v472, 4294901760
    %v3785 = vsub.f32 %v472, %v3784
    %3786 = vmatpush.msra.mxu0 %v3785
    %v3787 = vand.u32 %v471, 4294901760
    %v3788 = vsub.f32 %v471, %v3787
    %3789 = vmatpush.msra.mxu0 %v3788
    %v3790 = vand.u32 %v470, 4294901760
    %v3791 = vsub.f32 %v470, %v3790
    %3792 = vmatpush.msra.mxu0 %v3791
    %v3793 = vand.u32 %v469, 4294901760
    %v3794 = vsub.f32 %v469, %v3793
    %3795 = vmatpush.msra.mxu0 %v3794
    %v3796 = vand.u32 %v468, 4294901760
    %v3797 = vsub.f32 %v468, %v3796
    %3798 = vmatpush.msra.mxu0 %v3797
    %v3799 = vand.u32 %v467, 4294901760
    %v3800 = vsub.f32 %v467, %v3799
    %3801 = vmatpush.msra.mxu0 %v3800
    %v3802 = vand.u32 %v466, 4294901760
    %v3803 = vsub.f32 %v466, %v3802
    %3804 = vmatpush.msra.mxu0 %v3803
    %v3805 = vand.u32 %v465, 4294901760
    %v3806 = vsub.f32 %v465, %v3805
    %3807 = vmatpush.msra.mxu0 %v3806
    %v3808 = vand.u32 %v464, 4294901760
    %v3809 = vsub.f32 %v464, %v3808
    %3810 = vmatpush.msra.mxu0 %v3809
    %v3811 = vand.u32 %v463, 4294901760
    %v3812 = vsub.f32 %v463, %v3811
    %3813 = vmatpush.msra.mxu0 %v3812
    %v3814 = vand.u32 %v462, 4294901760
    %v3815 = vsub.f32 %v462, %v3814
    %3816 = vmatpush.msra.mxu0 %v3815
    %v3817 = vand.u32 %v312, 4294901760
    %v3818 = vsub.f32 %v312, %v3817
    %3819 = vmatmul.f32.gmra.mxu0 %v3818
    %v3820 = vpop.f32.mrf.mxu0
    %v3821 = vadd.f32 %v3767, %v3820
    %3822 = vdwg.mxu0
    %v3823 = vand.u32 %v477, 4294901760
    %3824 = vmatpush.msra.mxu0 %v3823
    %v3825 = vand.u32 %v476, 4294901760
    %3826 = vmatpush.msra.mxu0 %v3825
    %v3827 = vand.u32 %v475, 4294901760
    %3828 = vmatpush.msra.mxu0 %v3827
    %v3829 = vand.u32 %v474, 4294901760
    %3830 = vmatpush.msra.mxu0 %v3829
    %v3831 = vand.u32 %v473, 4294901760
    %3832 = vmatpush.msra.mxu0 %v3831
    %v3833 = vand.u32 %v472, 4294901760
    %3834 = vmatpush.msra.mxu0 %v3833
    %v3835 = vand.u32 %v471, 4294901760
    %3836 = vmatpush.msra.mxu0 %v3835
    %v3837 = vand.u32 %v470, 4294901760
    %3838 = vmatpush.msra.mxu0 %v3837
    %v3839 = vand.u32 %v469, 4294901760
    %3840 = vmatpush.msra.mxu0 %v3839
    %v3841 = vand.u32 %v468, 4294901760
    %3842 = vmatpush.msra.mxu0 %v3841
    %v3843 = vand.u32 %v467, 4294901760
    %3844 = vmatpush.msra.mxu0 %v3843
    %v3845 = vand.u32 %v466, 4294901760
    %3846 = vmatpush.msra.mxu0 %v3845
    %v3847 = vand.u32 %v465, 4294901760
    %3848 = vmatpush.msra.mxu0 %v3847
    %v3849 = vand.u32 %v464, 4294901760
    %3850 = vmatpush.msra.mxu0 %v3849
    %v3851 = vand.u32 %v463, 4294901760
    %3852 = vmatpush.msra.mxu0 %v3851
    %v3853 = vand.u32 %v462, 4294901760
    %3854 = vmatpush.msra.mxu0 %v3853
    %v3855 = vand.u32 %v312, 4294901760
    %v3856 = vsub.f32 %v312, %v3855
    %v3857 = vand.u32 %v3856, 4294901760
    %3858 = vmatmul.f32.gmra.mxu0 %v3857
    %v3859 = vpop.f32.mrf.mxu0
    %v3860 = vadd.f32 %v3821, %v3859
    %3861 = vdwg.mxu0
    %v3862 = vand.u32 %v477, 4294901760
    %v3863 = vsub.f32 %v477, %v3862
    %v3864 = vand.u32 %v3863, 4294901760
    %3865 = vmatpush.msra.mxu0 %v3864
    %v3866 = vand.u32 %v476, 4294901760
    %v3867 = vsub.f32 %v476, %v3866
    %v3868 = vand.u32 %v3867, 4294901760
    %3869 = vmatpush.msra.mxu0 %v3868
    %v3870 = vand.u32 %v475, 4294901760
    %v3871 = vsub.f32 %v475, %v3870
    %v3872 = vand.u32 %v3871, 4294901760
    %3873 = vmatpush.msra.mxu0 %v3872
    %v3874 = vand.u32 %v474, 4294901760
    %v3875 = vsub.f32 %v474, %v3874
    %v3876 = vand.u32 %v3875, 4294901760
    %3877 = vmatpush.msra.mxu0 %v3876
    %v3878 = vand.u32 %v473, 4294901760
    %v3879 = vsub.f32 %v473, %v3878
    %v3880 = vand.u32 %v3879, 4294901760
    %3881 = vmatpush.msra.mxu0 %v3880
    %v3882 = vand.u32 %v472, 4294901760
    %v3883 = vsub.f32 %v472, %v3882
    %v3884 = vand.u32 %v3883, 4294901760
    %3885 = vmatpush.msra.mxu0 %v3884
    %v3886 = vand.u32 %v471, 4294901760
    %v3887 = vsub.f32 %v471, %v3886
    %v3888 = vand.u32 %v3887, 4294901760
    %3889 = vmatpush.msra.mxu0 %v3888
    %v3890 = vand.u32 %v470, 4294901760
    %v3891 = vsub.f32 %v470, %v3890
    %v3892 = vand.u32 %v3891, 4294901760
    %3893 = vmatpush.msra.mxu0 %v3892
    %v3894 = vand.u32 %v469, 4294901760
    %v3895 = vsub.f32 %v469, %v3894
    %v3896 = vand.u32 %v3895, 4294901760
    %3897 = vmatpush.msra.mxu0 %v3896
    %v3898 = vand.u32 %v468, 4294901760
    %v3899 = vsub.f32 %v468, %v3898
    %v3900 = vand.u32 %v3899, 4294901760
    %3901 = vmatpush.msra.mxu0 %v3900
    %v3902 = vand.u32 %v467, 4294901760
    %v3903 = vsub.f32 %v467, %v3902
    %v3904 = vand.u32 %v3903, 4294901760
    %3905 = vmatpush.msra.mxu0 %v3904
    %v3906 = vand.u32 %v466, 4294901760
    %v3907 = vsub.f32 %v466, %v3906
    %v3908 = vand.u32 %v3907, 4294901760
    %3909 = vmatpush.msra.mxu0 %v3908
    %v3910 = vand.u32 %v465, 4294901760
    %v3911 = vsub.f32 %v465, %v3910
    %v3912 = vand.u32 %v3911, 4294901760
    %3913 = vmatpush.msra.mxu0 %v3912
    %v3914 = vand.u32 %v464, 4294901760
    %v3915 = vsub.f32 %v464, %v3914
    %v3916 = vand.u32 %v3915, 4294901760
    %3917 = vmatpush.msra.mxu0 %v3916
    %v3918 = vand.u32 %v463, 4294901760
    %v3919 = vsub.f32 %v463, %v3918
    %v3920 = vand.u32 %v3919, 4294901760
    %3921 = vmatpush.msra.mxu0 %v3920
    %v3922 = vand.u32 %v462, 4294901760
    %v3923 = vsub.f32 %v462, %v3922
    %v3924 = vand.u32 %v3923, 4294901760
    %3925 = vmatpush.msra.mxu0 %v3924
    %v3926 = vand.u32 %v312, 4294901760
    %3927 = vmatmul.f32.gmra.mxu0 %v3926
    %v3928 = vpop.f32.mrf.mxu0
    %v3929 = vadd.f32 %v3860, %v3928
    %3930 = vdwg.mxu0
    %v3931 = vand.u32 %v477, 4294901760
    %3932 = vmatpush.msra.mxu0 %v3931
    %v3933 = vand.u32 %v476, 4294901760
    %3934 = vmatpush.msra.mxu0 %v3933
    %v3935 = vand.u32 %v475, 4294901760
    %3936 = vmatpush.msra.mxu0 %v3935
    %v3937 = vand.u32 %v474, 4294901760
    %3938 = vmatpush.msra.mxu0 %v3937
    %v3939 = vand.u32 %v473, 4294901760
    %3940 = vmatpush.msra.mxu0 %v3939
    %v3941 = vand.u32 %v472, 4294901760
    %3942 = vmatpush.msra.mxu0 %v3941
    %v3943 = vand.u32 %v471, 4294901760
    %3944 = vmatpush.msra.mxu0 %v3943
    %v3945 = vand.u32 %v470, 4294901760
    %3946 = vmatpush.msra.mxu0 %v3945
    %v3947 = vand.u32 %v469, 4294901760
    %3948 = vmatpush.msra.mxu0 %v3947
    %v3949 = vand.u32 %v468, 4294901760
    %3950 = vmatpush.msra.mxu0 %v3949
    %v3951 = vand.u32 %v467, 4294901760
    %3952 = vmatpush.msra.mxu0 %v3951
    %v3953 = vand.u32 %v466, 4294901760
    %3954 = vmatpush.msra.mxu0 %v3953
    %v3955 = vand.u32 %v465, 4294901760
    %3956 = vmatpush.msra.mxu0 %v3955
    %v3957 = vand.u32 %v464, 4294901760
    %3958 = vmatpush.msra.mxu0 %v3957
    %v3959 = vand.u32 %v463, 4294901760
    %3960 = vmatpush.msra.mxu0 %v3959
    %v3961 = vand.u32 %v462, 4294901760
    %3962 = vmatpush.msra.mxu0 %v3961
    %v3963 = vand.u32 %v312, 4294901760
    %3964 = vmatmul.f32.gmra.mxu0 %v3963
    %v3965 = vpop.f32.mrf.mxu0
    %v3966 = vadd.f32 %v3929, %v3965
    %3967 = vdwg.mxu0
    %v3968 = vand.u32 %v493, 4294901760
    %3969 = vmatpush.msra.mxu0 %v3968
    %v3970 = vand.u32 %v492, 4294901760
    %3971 = vmatpush.msra.mxu0 %v3970
    %v3972 = vand.u32 %v491, 4294901760
    %3973 = vmatpush.msra.mxu0 %v3972
    %v3974 = vand.u32 %v490, 4294901760
    %3975 = vmatpush.msra.mxu0 %v3974
    %v3976 = vand.u32 %v489, 4294901760
    %3977 = vmatpush.msra.mxu0 %v3976
    %v3978 = vand.u32 %v488, 4294901760
    %3979 = vmatpush.msra.mxu0 %v3978
    %v3980 = vand.u32 %v487, 4294901760
    %3981 = vmatpush.msra.mxu0 %v3980
    %v3982 = vand.u32 %v486, 4294901760
    %3983 = vmatpush.msra.mxu0 %v3982
    %v3984 = vand.u32 %v485, 4294901760
    %3985 = vmatpush.msra.mxu0 %v3984
    %v3986 = vand.u32 %v484, 4294901760
    %3987 = vmatpush.msra.mxu0 %v3986
    %v3988 = vand.u32 %v483, 4294901760
    %3989 = vmatpush.msra.mxu0 %v3988
    %v3990 = vand.u32 %v482, 4294901760
    %3991 = vmatpush.msra.mxu0 %v3990
    %v3992 = vand.u32 %v481, 4294901760
    %3993 = vmatpush.msra.mxu0 %v3992
    %v3994 = vand.u32 %v480, 4294901760
    %3995 = vmatpush.msra.mxu0 %v3994
    %v3996 = vand.u32 %v479, 4294901760
    %3997 = vmatpush.msra.mxu0 %v3996
    %v3998 = vand.u32 %v478, 4294901760
    %3999 = vmatpush.msra.mxu0 %v3998
    %v4000 = vand.u32 %v313, 4294901760
    %v4001 = vsub.f32 %v313, %v4000
    %v4002 = vand.u32 %v4001, 4294901760
    %v4003 = vsub.f32 %v4001, %v4002
    %v4004 = vand.u32 %v4003, 4294901760
    %4005 = vmatmul.f32.gmra.mxu0 %v4004
    %v4006 = vpop.f32.mrf.mxu0
    %v4007 = vadd.f32 %v3966, %v4006
    %4008 = vdwg.mxu0
    %v4009 = vand.u32 %v493, 4294901760
    %v4010 = vsub.f32 %v493, %v4009
    %v4011 = vand.u32 %v4010, 4294901760
    %v4012 = vsub.f32 %v4010, %v4011
    %v4013 = vand.u32 %v4012, 4294901760
    %4014 = vmatpush.msra.mxu0 %v4013
    %v4015 = vand.u32 %v492, 4294901760
    %v4016 = vsub.f32 %v492, %v4015
    %v4017 = vand.u32 %v4016, 4294901760
    %v4018 = vsub.f32 %v4016, %v4017
    %v4019 = vand.u32 %v4018, 4294901760
    %4020 = vmatpush.msra.mxu0 %v4019
    %v4021 = vand.u32 %v491, 4294901760
    %v4022 = vsub.f32 %v491, %v4021
    %v4023 = vand.u32 %v4022, 4294901760
    %v4024 = vsub.f32 %v4022, %v4023
    %v4025 = vand.u32 %v4024, 4294901760
    %4026 = vmatpush.msra.mxu0 %v4025
    %v4027 = vand.u32 %v490, 4294901760
    %v4028 = vsub.f32 %v490, %v4027
    %v4029 = vand.u32 %v4028, 4294901760
    %v4030 = vsub.f32 %v4028, %v4029
    %v4031 = vand.u32 %v4030, 4294901760
    %4032 = vmatpush.msra.mxu0 %v4031
    %v4033 = vand.u32 %v489, 4294901760
    %v4034 = vsub.f32 %v489, %v4033
    %v4035 = vand.u32 %v4034, 4294901760
    %v4036 = vsub.f32 %v4034, %v4035
    %v4037 = vand.u32 %v4036, 4294901760
    %4038 = vmatpush.msra.mxu0 %v4037
    %v4039 = vand.u32 %v488, 4294901760
    %v4040 = vsub.f32 %v488, %v4039
    %v4041 = vand.u32 %v4040, 4294901760
    %v4042 = vsub.f32 %v4040, %v4041
    %v4043 = vand.u32 %v4042, 4294901760
    %4044 = vmatpush.msra.mxu0 %v4043
    %v4045 = vand.u32 %v487, 4294901760
    %v4046 = vsub.f32 %v487, %v4045
    %v4047 = vand.u32 %v4046, 4294901760
    %v4048 = vsub.f32 %v4046, %v4047
    %v4049 = vand.u32 %v4048, 4294901760
    %4050 = vmatpush.msra.mxu0 %v4049
    %v4051 = vand.u32 %v486, 4294901760
    %v4052 = vsub.f32 %v486, %v4051
    %v4053 = vand.u32 %v4052, 4294901760
    %v4054 = vsub.f32 %v4052, %v4053
    %v4055 = vand.u32 %v4054, 4294901760
    %4056 = vmatpush.msra.mxu0 %v4055
    %v4057 = vand.u32 %v485, 4294901760
    %v4058 = vsub.f32 %v485, %v4057
    %v4059 = vand.u32 %v4058, 4294901760
    %v4060 = vsub.f32 %v4058, %v4059
    %v4061 = vand.u32 %v4060, 4294901760
    %4062 = vmatpush.msra.mxu0 %v4061
    %v4063 = vand.u32 %v484, 4294901760
    %v4064 = vsub.f32 %v484, %v4063
    %v4065 = vand.u32 %v4064, 4294901760
    %v4066 = vsub.f32 %v4064, %v4065
    %v4067 = vand.u32 %v4066, 4294901760
    %4068 = vmatpush.msra.mxu0 %v4067
    %v4069 = vand.u32 %v483, 4294901760
    %v4070 = vsub.f32 %v483, %v4069
    %v4071 = vand.u32 %v4070, 4294901760
    %v4072 = vsub.f32 %v4070, %v4071
    %v4073 = vand.u32 %v4072, 4294901760
    %4074 = vmatpush.msra.mxu0 %v4073
    %v4075 = vand.u32 %v482, 4294901760
    %v4076 = vsub.f32 %v482, %v4075
    %v4077 = vand.u32 %v4076, 4294901760
    %v4078 = vsub.f32 %v4076, %v4077
    %v4079 = vand.u32 %v4078, 4294901760
    %4080 = vmatpush.msra.mxu0 %v4079
    %v4081 = vand.u32 %v481, 4294901760
    %v4082 = vsub.f32 %v481, %v4081
    %v4083 = vand.u32 %v4082, 4294901760
    %v4084 = vsub.f32 %v4082, %v4083
    %v4085 = vand.u32 %v4084, 4294901760
    %4086 = vmatpush.msra.mxu0 %v4085
    %v4087 = vand.u32 %v480, 4294901760
    %v4088 = vsub.f32 %v480, %v4087
    %v4089 = vand.u32 %v4088, 4294901760
    %v4090 = vsub.f32 %v4088, %v4089
    %v4091 = vand.u32 %v4090, 4294901760
    %4092 = vmatpush.msra.mxu0 %v4091
    %v4093 = vand.u32 %v479, 4294901760
    %v4094 = vsub.f32 %v479, %v4093
    %v4095 = vand.u32 %v4094, 4294901760
    %v4096 = vsub.f32 %v4094, %v4095
    %v4097 = vand.u32 %v4096, 4294901760
    %4098 = vmatpush.msra.mxu0 %v4097
    %v4099 = vand.u32 %v478, 4294901760
    %v4100 = vsub.f32 %v478, %v4099
    %v4101 = vand.u32 %v4100, 4294901760
    %v4102 = vsub.f32 %v4100, %v4101
    %v4103 = vand.u32 %v4102, 4294901760
    %4104 = vmatpush.msra.mxu0 %v4103
    %v4105 = vand.u32 %v313, 4294901760
    %4106 = vmatmul.f32.gmra.mxu0 %v4105
    %v4107 = vpop.f32.mrf.mxu0
    %v4108 = vadd.f32 %v4007, %v4107
    %4109 = vdwg.mxu0
    %v4110 = vand.u32 %v493, 4294901760
    %v4111 = vsub.f32 %v493, %v4110
    %4112 = vmatpush.msra.mxu0 %v4111
    %v4113 = vand.u32 %v492, 4294901760
    %v4114 = vsub.f32 %v492, %v4113
    %4115 = vmatpush.msra.mxu0 %v4114
    %v4116 = vand.u32 %v491, 4294901760
    %v4117 = vsub.f32 %v491, %v4116
    %4118 = vmatpush.msra.mxu0 %v4117
    %v4119 = vand.u32 %v490, 4294901760
    %v4120 = vsub.f32 %v490, %v4119
    %4121 = vmatpush.msra.mxu0 %v4120
    %v4122 = vand.u32 %v489, 4294901760
    %v4123 = vsub.f32 %v489, %v4122
    %4124 = vmatpush.msra.mxu0 %v4123
    %v4125 = vand.u32 %v488, 4294901760
    %v4126 = vsub.f32 %v488, %v4125
    %4127 = vmatpush.msra.mxu0 %v4126
    %v4128 = vand.u32 %v487, 4294901760
    %v4129 = vsub.f32 %v487, %v4128
    %4130 = vmatpush.msra.mxu0 %v4129
    %v4131 = vand.u32 %v486, 4294901760
    %v4132 = vsub.f32 %v486, %v4131
    %4133 = vmatpush.msra.mxu0 %v4132
    %v4134 = vand.u32 %v485, 4294901760
    %v4135 = vsub.f32 %v485, %v4134
    %4136 = vmatpush.msra.mxu0 %v4135
    %v4137 = vand.u32 %v484, 4294901760
    %v4138 = vsub.f32 %v484, %v4137
    %4139 = vmatpush.msra.mxu0 %v4138
    %v4140 = vand.u32 %v483, 4294901760
    %v4141 = vsub.f32 %v483, %v4140
    %4142 = vmatpush.msra.mxu0 %v4141
    %v4143 = vand.u32 %v482, 4294901760
    %v4144 = vsub.f32 %v482, %v4143
    %4145 = vmatpush.msra.mxu0 %v4144
    %v4146 = vand.u32 %v481, 4294901760
    %v4147 = vsub.f32 %v481, %v4146
    %4148 = vmatpush.msra.mxu0 %v4147
    %v4149 = vand.u32 %v480, 4294901760
    %v4150 = vsub.f32 %v480, %v4149
    %4151 = vmatpush.msra.mxu0 %v4150
    %v4152 = vand.u32 %v479, 4294901760
    %v4153 = vsub.f32 %v479, %v4152
    %4154 = vmatpush.msra.mxu0 %v4153
    %v4155 = vand.u32 %v478, 4294901760
    %v4156 = vsub.f32 %v478, %v4155
    %4157 = vmatpush.msra.mxu0 %v4156
    %v4158 = vand.u32 %v313, 4294901760
    %v4159 = vsub.f32 %v313, %v4158
    %4160 = vmatmul.f32.gmra.mxu0 %v4159
    %v4161 = vpop.f32.mrf.mxu0
    %v4162 = vadd.f32 %v4108, %v4161
    %4163 = vdwg.mxu0
    %v4164 = vand.u32 %v493, 4294901760
    %4165 = vmatpush.msra.mxu0 %v4164
    %v4166 = vand.u32 %v492, 4294901760
    %4167 = vmatpush.msra.mxu0 %v4166
    %v4168 = vand.u32 %v491, 4294901760
    %4169 = vmatpush.msra.mxu0 %v4168
    %v4170 = vand.u32 %v490, 4294901760
    %4171 = vmatpush.msra.mxu0 %v4170
    %v4172 = vand.u32 %v489, 4294901760
    %4173 = vmatpush.msra.mxu0 %v4172
    %v4174 = vand.u32 %v488, 4294901760
    %4175 = vmatpush.msra.mxu0 %v4174
    %v4176 = vand.u32 %v487, 4294901760
    %4177 = vmatpush.msra.mxu0 %v4176
    %v4178 = vand.u32 %v486, 4294901760
    %4179 = vmatpush.msra.mxu0 %v4178
    %v4180 = vand.u32 %v485, 4294901760
    %4181 = vmatpush.msra.mxu0 %v4180
    %v4182 = vand.u32 %v484, 4294901760
    %4183 = vmatpush.msra.mxu0 %v4182
    %v4184 = vand.u32 %v483, 4294901760
    %4185 = vmatpush.msra.mxu0 %v4184
    %v4186 = vand.u32 %v482, 4294901760
    %4187 = vmatpush.msra.mxu0 %v4186
    %v4188 = vand.u32 %v481, 4294901760
    %4189 = vmatpush.msra.mxu0 %v4188
    %v4190 = vand.u32 %v480, 4294901760
    %4191 = vmatpush.msra.mxu0 %v4190
    %v4192 = vand.u32 %v479, 4294901760
    %4193 = vmatpush.msra.mxu0 %v4192
    %v4194 = vand.u32 %v478, 4294901760
    %4195 = vmatpush.msra.mxu0 %v4194
    %v4196 = vand.u32 %v313, 4294901760
    %v4197 = vsub.f32 %v313, %v4196
    %v4198 = vand.u32 %v4197, 4294901760
    %4199 = vmatmul.f32.gmra.mxu0 %v4198
    %v4200 = vpop.f32.mrf.mxu0
    %v4201 = vadd.f32 %v4162, %v4200
    %4202 = vdwg.mxu0
    %v4203 = vand.u32 %v493, 4294901760
    %v4204 = vsub.f32 %v493, %v4203
    %v4205 = vand.u32 %v4204, 4294901760
    %4206 = vmatpush.msra.mxu0 %v4205
    %v4207 = vand.u32 %v492, 4294901760
    %v4208 = vsub.f32 %v492, %v4207
    %v4209 = vand.u32 %v4208, 4294901760
    %4210 = vmatpush.msra.mxu0 %v4209
    %v4211 = vand.u32 %v491, 4294901760
    %v4212 = vsub.f32 %v491, %v4211
    %v4213 = vand.u32 %v4212, 4294901760
    %4214 = vmatpush.msra.mxu0 %v4213
    %v4215 = vand.u32 %v490, 4294901760
    %v4216 = vsub.f32 %v490, %v4215
    %v4217 = vand.u32 %v4216, 4294901760
    %4218 = vmatpush.msra.mxu0 %v4217
    %v4219 = vand.u32 %v489, 4294901760
    %v4220 = vsub.f32 %v489, %v4219
    %v4221 = vand.u32 %v4220, 4294901760
    %4222 = vmatpush.msra.mxu0 %v4221
    %v4223 = vand.u32 %v488, 4294901760
    %v4224 = vsub.f32 %v488, %v4223
    %v4225 = vand.u32 %v4224, 4294901760
    %4226 = vmatpush.msra.mxu0 %v4225
    %v4227 = vand.u32 %v487, 4294901760
    %v4228 = vsub.f32 %v487, %v4227
    %v4229 = vand.u32 %v4228, 4294901760
    %4230 = vmatpush.msra.mxu0 %v4229
    %v4231 = vand.u32 %v486, 4294901760
    %v4232 = vsub.f32 %v486, %v4231
    %v4233 = vand.u32 %v4232, 4294901760
    %4234 = vmatpush.msra.mxu0 %v4233
    %v4235 = vand.u32 %v485, 4294901760
    %v4236 = vsub.f32 %v485, %v4235
    %v4237 = vand.u32 %v4236, 4294901760
    %4238 = vmatpush.msra.mxu0 %v4237
    %v4239 = vand.u32 %v484, 4294901760
    %v4240 = vsub.f32 %v484, %v4239
    %v4241 = vand.u32 %v4240, 4294901760
    %4242 = vmatpush.msra.mxu0 %v4241
    %v4243 = vand.u32 %v483, 4294901760
    %v4244 = vsub.f32 %v483, %v4243
    %v4245 = vand.u32 %v4244, 4294901760
    %4246 = vmatpush.msra.mxu0 %v4245
    %v4247 = vand.u32 %v482, 4294901760
    %v4248 = vsub.f32 %v482, %v4247
    %v4249 = vand.u32 %v4248, 4294901760
    %4250 = vmatpush.msra.mxu0 %v4249
    %v4251 = vand.u32 %v481, 4294901760
    %v4252 = vsub.f32 %v481, %v4251
    %v4253 = vand.u32 %v4252, 4294901760
    %4254 = vmatpush.msra.mxu0 %v4253
    %v4255 = vand.u32 %v480, 4294901760
    %v4256 = vsub.f32 %v480, %v4255
    %v4257 = vand.u32 %v4256, 4294901760
    %4258 = vmatpush.msra.mxu0 %v4257
    %v4259 = vand.u32 %v479, 4294901760
    %v4260 = vsub.f32 %v479, %v4259
    %v4261 = vand.u32 %v4260, 4294901760
    %4262 = vmatpush.msra.mxu0 %v4261
    %v4263 = vand.u32 %v478, 4294901760
    %v4264 = vsub.f32 %v478, %v4263
    %v4265 = vand.u32 %v4264, 4294901760
    %4266 = vmatpush.msra.mxu0 %v4265
    %v4267 = vand.u32 %v313, 4294901760
    %4268 = vmatmul.f32.gmra.mxu0 %v4267
    %v4269 = vpop.f32.mrf.mxu0
    %v4270 = vadd.f32 %v4201, %v4269
    %4271 = vdwg.mxu0
    %v4272 = vand.u32 %v493, 4294901760
    %4273 = vmatpush.msra.mxu0 %v4272
    %v4274 = vand.u32 %v492, 4294901760
    %4275 = vmatpush.msra.mxu0 %v4274
    %v4276 = vand.u32 %v491, 4294901760
    %4277 = vmatpush.msra.mxu0 %v4276
    %v4278 = vand.u32 %v490, 4294901760
    %4279 = vmatpush.msra.mxu0 %v4278
    %v4280 = vand.u32 %v489, 4294901760
    %4281 = vmatpush.msra.mxu0 %v4280
    %v4282 = vand.u32 %v488, 4294901760
    %4283 = vmatpush.msra.mxu0 %v4282
    %v4284 = vand.u32 %v487, 4294901760
    %4285 = vmatpush.msra.mxu0 %v4284
    %v4286 = vand.u32 %v486, 4294901760
    %4287 = vmatpush.msra.mxu0 %v4286
    %v4288 = vand.u32 %v485, 4294901760
    %4289 = vmatpush.msra.mxu0 %v4288
    %v4290 = vand.u32 %v484, 4294901760
    %4291 = vmatpush.msra.mxu0 %v4290
    %v4292 = vand.u32 %v483, 4294901760
    %4293 = vmatpush.msra.mxu0 %v4292
    %v4294 = vand.u32 %v482, 4294901760
    %4295 = vmatpush.msra.mxu0 %v4294
    %v4296 = vand.u32 %v481, 4294901760
    %4297 = vmatpush.msra.mxu0 %v4296
    %v4298 = vand.u32 %v480, 4294901760
    %4299 = vmatpush.msra.mxu0 %v4298
    %v4300 = vand.u32 %v479, 4294901760
    %4301 = vmatpush.msra.mxu0 %v4300
    %v4302 = vand.u32 %v478, 4294901760
    %4303 = vmatpush.msra.mxu0 %v4302
    %v4304 = vand.u32 %v313, 4294901760
    %4305 = vmatmul.f32.gmra.mxu0 %v4304
    %v4306 = vpop.f32.mrf.mxu0
    %v4307 = vadd.f32 %v4270, %v4306
    %4308 = vdwg.mxu0
    %v4309 = vand.u32 %v509, 4294901760
    %4310 = vmatpush.msra.mxu0 %v4309
    %v4311 = vand.u32 %v508, 4294901760
    %4312 = vmatpush.msra.mxu0 %v4311
    %v4313 = vand.u32 %v507, 4294901760
    %4314 = vmatpush.msra.mxu0 %v4313
    %v4315 = vand.u32 %v506, 4294901760
    %4316 = vmatpush.msra.mxu0 %v4315
    %v4317 = vand.u32 %v505, 4294901760
    %4318 = vmatpush.msra.mxu0 %v4317
    %v4319 = vand.u32 %v504, 4294901760
    %4320 = vmatpush.msra.mxu0 %v4319
    %v4321 = vand.u32 %v503, 4294901760
    %4322 = vmatpush.msra.mxu0 %v4321
    %v4323 = vand.u32 %v502, 4294901760
    %4324 = vmatpush.msra.mxu0 %v4323
    %v4325 = vand.u32 %v501, 4294901760
    %4326 = vmatpush.msra.mxu0 %v4325
    %v4327 = vand.u32 %v500, 4294901760
    %4328 = vmatpush.msra.mxu0 %v4327
    %v4329 = vand.u32 %v499, 4294901760
    %4330 = vmatpush.msra.mxu0 %v4329
    %v4331 = vand.u32 %v498, 4294901760
    %4332 = vmatpush.msra.mxu0 %v4331
    %v4333 = vand.u32 %v497, 4294901760
    %4334 = vmatpush.msra.mxu0 %v4333
    %v4335 = vand.u32 %v496, 4294901760
    %4336 = vmatpush.msra.mxu0 %v4335
    %v4337 = vand.u32 %v495, 4294901760
    %4338 = vmatpush.msra.mxu0 %v4337
    %v4339 = vand.u32 %v494, 4294901760
    %4340 = vmatpush.msra.mxu0 %v4339
    %v4341 = vand.u32 %v314, 4294901760
    %v4342 = vsub.f32 %v314, %v4341
    %v4343 = vand.u32 %v4342, 4294901760
    %v4344 = vsub.f32 %v4342, %v4343
    %v4345 = vand.u32 %v4344, 4294901760
    %4346 = vmatmul.f32.gmra.mxu0 %v4345
    %v4347 = vpop.f32.mrf.mxu0
    %v4348 = vadd.f32 %v4307, %v4347
    %4349 = vdwg.mxu0
    %v4350 = vand.u32 %v509, 4294901760
    %v4351 = vsub.f32 %v509, %v4350
    %v4352 = vand.u32 %v4351, 4294901760
    %v4353 = vsub.f32 %v4351, %v4352
    %v4354 = vand.u32 %v4353, 4294901760
    %4355 = vmatpush.msra.mxu0 %v4354
    %v4356 = vand.u32 %v508, 4294901760
    %v4357 = vsub.f32 %v508, %v4356
    %v4358 = vand.u32 %v4357, 4294901760
    %v4359 = vsub.f32 %v4357, %v4358
    %v4360 = vand.u32 %v4359, 4294901760
    %4361 = vmatpush.msra.mxu0 %v4360
    %v4362 = vand.u32 %v507, 4294901760
    %v4363 = vsub.f32 %v507, %v4362
    %v4364 = vand.u32 %v4363, 4294901760
    %v4365 = vsub.f32 %v4363, %v4364
    %v4366 = vand.u32 %v4365, 4294901760
    %4367 = vmatpush.msra.mxu0 %v4366
    %v4368 = vand.u32 %v506, 4294901760
    %v4369 = vsub.f32 %v506, %v4368
    %v4370 = vand.u32 %v4369, 4294901760
    %v4371 = vsub.f32 %v4369, %v4370
    %v4372 = vand.u32 %v4371, 4294901760
    %4373 = vmatpush.msra.mxu0 %v4372
    %v4374 = vand.u32 %v505, 4294901760
    %v4375 = vsub.f32 %v505, %v4374
    %v4376 = vand.u32 %v4375, 4294901760
    %v4377 = vsub.f32 %v4375, %v4376
    %v4378 = vand.u32 %v4377, 4294901760
    %4379 = vmatpush.msra.mxu0 %v4378
    %v4380 = vand.u32 %v504, 4294901760
    %v4381 = vsub.f32 %v504, %v4380
    %v4382 = vand.u32 %v4381, 4294901760
    %v4383 = vsub.f32 %v4381, %v4382
    %v4384 = vand.u32 %v4383, 4294901760
    %4385 = vmatpush.msra.mxu0 %v4384
    %v4386 = vand.u32 %v503, 4294901760
    %v4387 = vsub.f32 %v503, %v4386
    %v4388 = vand.u32 %v4387, 4294901760
    %v4389 = vsub.f32 %v4387, %v4388
    %v4390 = vand.u32 %v4389, 4294901760
    %4391 = vmatpush.msra.mxu0 %v4390
    %v4392 = vand.u32 %v502, 4294901760
    %v4393 = vsub.f32 %v502, %v4392
    %v4394 = vand.u32 %v4393, 4294901760
    %v4395 = vsub.f32 %v4393, %v4394
    %v4396 = vand.u32 %v4395, 4294901760
    %4397 = vmatpush.msra.mxu0 %v4396
    %v4398 = vand.u32 %v501, 4294901760
    %v4399 = vsub.f32 %v501, %v4398
    %v4400 = vand.u32 %v4399, 4294901760
    %v4401 = vsub.f32 %v4399, %v4400
    %v4402 = vand.u32 %v4401, 4294901760
    %4403 = vmatpush.msra.mxu0 %v4402
    %v4404 = vand.u32 %v500, 4294901760
    %v4405 = vsub.f32 %v500, %v4404
    %v4406 = vand.u32 %v4405, 4294901760
    %v4407 = vsub.f32 %v4405, %v4406
    %v4408 = vand.u32 %v4407, 4294901760
    %4409 = vmatpush.msra.mxu0 %v4408
    %v4410 = vand.u32 %v499, 4294901760
    %v4411 = vsub.f32 %v499, %v4410
    %v4412 = vand.u32 %v4411, 4294901760
    %v4413 = vsub.f32 %v4411, %v4412
    %v4414 = vand.u32 %v4413, 4294901760
    %4415 = vmatpush.msra.mxu0 %v4414
    %v4416 = vand.u32 %v498, 4294901760
    %v4417 = vsub.f32 %v498, %v4416
    %v4418 = vand.u32 %v4417, 4294901760
    %v4419 = vsub.f32 %v4417, %v4418
    %v4420 = vand.u32 %v4419, 4294901760
    %4421 = vmatpush.msra.mxu0 %v4420
    %v4422 = vand.u32 %v497, 4294901760
    %v4423 = vsub.f32 %v497, %v4422
    %v4424 = vand.u32 %v4423, 4294901760
    %v4425 = vsub.f32 %v4423, %v4424
    %v4426 = vand.u32 %v4425, 4294901760
    %4427 = vmatpush.msra.mxu0 %v4426
    %v4428 = vand.u32 %v496, 4294901760
    %v4429 = vsub.f32 %v496, %v4428
    %v4430 = vand.u32 %v4429, 4294901760
    %v4431 = vsub.f32 %v4429, %v4430
    %v4432 = vand.u32 %v4431, 4294901760
    %4433 = vmatpush.msra.mxu0 %v4432
    %v4434 = vand.u32 %v495, 4294901760
    %v4435 = vsub.f32 %v495, %v4434
    %v4436 = vand.u32 %v4435, 4294901760
    %v4437 = vsub.f32 %v4435, %v4436
    %v4438 = vand.u32 %v4437, 4294901760
    %4439 = vmatpush.msra.mxu0 %v4438
    %v4440 = vand.u32 %v494, 4294901760
    %v4441 = vsub.f32 %v494, %v4440
    %v4442 = vand.u32 %v4441, 4294901760
    %v4443 = vsub.f32 %v4441, %v4442
    %v4444 = vand.u32 %v4443, 4294901760
    %4445 = vmatpush.msra.mxu0 %v4444
    %v4446 = vand.u32 %v314, 4294901760
    %4447 = vmatmul.f32.gmra.mxu0 %v4446
    %v4448 = vpop.f32.mrf.mxu0
    %v4449 = vadd.f32 %v4348, %v4448
    %4450 = vdwg.mxu0
    %v4451 = vand.u32 %v509, 4294901760
    %v4452 = vsub.f32 %v509, %v4451
    %4453 = vmatpush.msra.mxu0 %v4452
    %v4454 = vand.u32 %v508, 4294901760
    %v4455 = vsub.f32 %v508, %v4454
    %4456 = vmatpush.msra.mxu0 %v4455
    %v4457 = vand.u32 %v507, 4294901760
    %v4458 = vsub.f32 %v507, %v4457
    %4459 = vmatpush.msra.mxu0 %v4458
    %v4460 = vand.u32 %v506, 4294901760
    %v4461 = vsub.f32 %v506, %v4460
    %4462 = vmatpush.msra.mxu0 %v4461
    %v4463 = vand.u32 %v505, 4294901760
    %v4464 = vsub.f32 %v505, %v4463
    %4465 = vmatpush.msra.mxu0 %v4464
    %v4466 = vand.u32 %v504, 4294901760
    %v4467 = vsub.f32 %v504, %v4466
    %4468 = vmatpush.msra.mxu0 %v4467
    %v4469 = vand.u32 %v503, 4294901760
    %v4470 = vsub.f32 %v503, %v4469
    %4471 = vmatpush.msra.mxu0 %v4470
    %v4472 = vand.u32 %v502, 4294901760
    %v4473 = vsub.f32 %v502, %v4472
    %4474 = vmatpush.msra.mxu0 %v4473
    %v4475 = vand.u32 %v501, 4294901760
    %v4476 = vsub.f32 %v501, %v4475
    %4477 = vmatpush.msra.mxu0 %v4476
    %v4478 = vand.u32 %v500, 4294901760
    %v4479 = vsub.f32 %v500, %v4478
    %4480 = vmatpush.msra.mxu0 %v4479
    %v4481 = vand.u32 %v499, 4294901760
    %v4482 = vsub.f32 %v499, %v4481
    %4483 = vmatpush.msra.mxu0 %v4482
    %v4484 = vand.u32 %v498, 4294901760
    %v4485 = vsub.f32 %v498, %v4484
    %4486 = vmatpush.msra.mxu0 %v4485
    %v4487 = vand.u32 %v497, 4294901760
    %v4488 = vsub.f32 %v497, %v4487
    %4489 = vmatpush.msra.mxu0 %v4488
    %v4490 = vand.u32 %v496, 4294901760
    %v4491 = vsub.f32 %v496, %v4490
    %4492 = vmatpush.msra.mxu0 %v4491
    %v4493 = vand.u32 %v495, 4294901760
    %v4494 = vsub.f32 %v495, %v4493
    %4495 = vmatpush.msra.mxu0 %v4494
    %v4496 = vand.u32 %v494, 4294901760
    %v4497 = vsub.f32 %v494, %v4496
    %4498 = vmatpush.msra.mxu0 %v4497
    %v4499 = vand.u32 %v314, 4294901760
    %v4500 = vsub.f32 %v314, %v4499
    %4501 = vmatmul.f32.gmra.mxu0 %v4500
    %v4502 = vpop.f32.mrf.mxu0
    %v4503 = vadd.f32 %v4449, %v4502
    %4504 = vdwg.mxu0
    %v4505 = vand.u32 %v509, 4294901760
    %4506 = vmatpush.msra.mxu0 %v4505
    %v4507 = vand.u32 %v508, 4294901760
    %4508 = vmatpush.msra.mxu0 %v4507
    %v4509 = vand.u32 %v507, 4294901760
    %4510 = vmatpush.msra.mxu0 %v4509
    %v4511 = vand.u32 %v506, 4294901760
    %4512 = vmatpush.msra.mxu0 %v4511
    %v4513 = vand.u32 %v505, 4294901760
    %4514 = vmatpush.msra.mxu0 %v4513
    %v4515 = vand.u32 %v504, 4294901760
    %4516 = vmatpush.msra.mxu0 %v4515
    %v4517 = vand.u32 %v503, 4294901760
    %4518 = vmatpush.msra.mxu0 %v4517
    %v4519 = vand.u32 %v502, 4294901760
    %4520 = vmatpush.msra.mxu0 %v4519
    %v4521 = vand.u32 %v501, 4294901760
    %4522 = vmatpush.msra.mxu0 %v4521
    %v4523 = vand.u32 %v500, 4294901760
    %4524 = vmatpush.msra.mxu0 %v4523
    %v4525 = vand.u32 %v499, 4294901760
    %4526 = vmatpush.msra.mxu0 %v4525
    %v4527 = vand.u32 %v498, 4294901760
    %4528 = vmatpush.msra.mxu0 %v4527
    %v4529 = vand.u32 %v497, 4294901760
    %4530 = vmatpush.msra.mxu0 %v4529
    %v4531 = vand.u32 %v496, 4294901760
    %4532 = vmatpush.msra.mxu0 %v4531
    %v4533 = vand.u32 %v495, 4294901760
    %4534 = vmatpush.msra.mxu0 %v4533
    %v4535 = vand.u32 %v494, 4294901760
    %4536 = vmatpush.msra.mxu0 %v4535
    %v4537 = vand.u32 %v314, 4294901760
    %v4538 = vsub.f32 %v314, %v4537
    %v4539 = vand.u32 %v4538, 4294901760
    %4540 = vmatmul.f32.gmra.mxu0 %v4539
    %v4541 = vpop.f32.mrf.mxu0
    %v4542 = vadd.f32 %v4503, %v4541
    %4543 = vdwg.mxu0
    %v4544 = vand.u32 %v509, 4294901760
    %v4545 = vsub.f32 %v509, %v4544
    %v4546 = vand.u32 %v4545, 4294901760
    %4547 = vmatpush.msra.mxu0 %v4546
    %v4548 = vand.u32 %v508, 4294901760
    %v4549 = vsub.f32 %v508, %v4548
    %v4550 = vand.u32 %v4549, 4294901760
    %4551 = vmatpush.msra.mxu0 %v4550
    %v4552 = vand.u32 %v507, 4294901760
    %v4553 = vsub.f32 %v507, %v4552
    %v4554 = vand.u32 %v4553, 4294901760
    %4555 = vmatpush.msra.mxu0 %v4554
    %v4556 = vand.u32 %v506, 4294901760
    %v4557 = vsub.f32 %v506, %v4556
    %v4558 = vand.u32 %v4557, 4294901760
    %4559 = vmatpush.msra.mxu0 %v4558
    %v4560 = vand.u32 %v505, 4294901760
    %v4561 = vsub.f32 %v505, %v4560
    %v4562 = vand.u32 %v4561, 4294901760
    %4563 = vmatpush.msra.mxu0 %v4562
    %v4564 = vand.u32 %v504, 4294901760
    %v4565 = vsub.f32 %v504, %v4564
    %v4566 = vand.u32 %v4565, 4294901760
    %4567 = vmatpush.msra.mxu0 %v4566
    %v4568 = vand.u32 %v503, 4294901760
    %v4569 = vsub.f32 %v503, %v4568
    %v4570 = vand.u32 %v4569, 4294901760
    %4571 = vmatpush.msra.mxu0 %v4570
    %v4572 = vand.u32 %v502, 4294901760
    %v4573 = vsub.f32 %v502, %v4572
    %v4574 = vand.u32 %v4573, 4294901760
    %4575 = vmatpush.msra.mxu0 %v4574
    %v4576 = vand.u32 %v501, 4294901760
    %v4577 = vsub.f32 %v501, %v4576
    %v4578 = vand.u32 %v4577, 4294901760
    %4579 = vmatpush.msra.mxu0 %v4578
    %v4580 = vand.u32 %v500, 4294901760
    %v4581 = vsub.f32 %v500, %v4580
    %v4582 = vand.u32 %v4581, 4294901760
    %4583 = vmatpush.msra.mxu0 %v4582
    %v4584 = vand.u32 %v499, 4294901760
    %v4585 = vsub.f32 %v499, %v4584
    %v4586 = vand.u32 %v4585, 4294901760
    %4587 = vmatpush.msra.mxu0 %v4586
    %v4588 = vand.u32 %v498, 4294901760
    %v4589 = vsub.f32 %v498, %v4588
    %v4590 = vand.u32 %v4589, 4294901760
    %4591 = vmatpush.msra.mxu0 %v4590
    %v4592 = vand.u32 %v497, 4294901760
    %v4593 = vsub.f32 %v497, %v4592
    %v4594 = vand.u32 %v4593, 4294901760
    %4595 = vmatpush.msra.mxu0 %v4594
    %v4596 = vand.u32 %v496, 4294901760
    %v4597 = vsub.f32 %v496, %v4596
    %v4598 = vand.u32 %v4597, 4294901760
    %4599 = vmatpush.msra.mxu0 %v4598
    %v4600 = vand.u32 %v495, 4294901760
    %v4601 = vsub.f32 %v495, %v4600
    %v4602 = vand.u32 %v4601, 4294901760
    %4603 = vmatpush.msra.mxu0 %v4602
    %v4604 = vand.u32 %v494, 4294901760
    %v4605 = vsub.f32 %v494, %v4604
    %v4606 = vand.u32 %v4605, 4294901760
    %4607 = vmatpush.msra.mxu0 %v4606
    %v4608 = vand.u32 %v314, 4294901760
    %4609 = vmatmul.f32.gmra.mxu0 %v4608
    %v4610 = vpop.f32.mrf.mxu0
    %v4611 = vadd.f32 %v4542, %v4610
    %4612 = vdwg.mxu0
    %v4613 = vand.u32 %v509, 4294901760
    %4614 = vmatpush.msra.mxu0 %v4613
    %v4615 = vand.u32 %v508, 4294901760
    %4616 = vmatpush.msra.mxu0 %v4615
    %v4617 = vand.u32 %v507, 4294901760
    %4618 = vmatpush.msra.mxu0 %v4617
    %v4619 = vand.u32 %v506, 4294901760
    %4620 = vmatpush.msra.mxu0 %v4619
    %v4621 = vand.u32 %v505, 4294901760
    %4622 = vmatpush.msra.mxu0 %v4621
    %v4623 = vand.u32 %v504, 4294901760
    %4624 = vmatpush.msra.mxu0 %v4623
    %v4625 = vand.u32 %v503, 4294901760
    %4626 = vmatpush.msra.mxu0 %v4625
    %v4627 = vand.u32 %v502, 4294901760
    %4628 = vmatpush.msra.mxu0 %v4627
    %v4629 = vand.u32 %v501, 4294901760
    %4630 = vmatpush.msra.mxu0 %v4629
    %v4631 = vand.u32 %v500, 4294901760
    %4632 = vmatpush.msra.mxu0 %v4631
    %v4633 = vand.u32 %v499, 4294901760
    %4634 = vmatpush.msra.mxu0 %v4633
    %v4635 = vand.u32 %v498, 4294901760
    %4636 = vmatpush.msra.mxu0 %v4635
    %v4637 = vand.u32 %v497, 4294901760
    %4638 = vmatpush.msra.mxu0 %v4637
    %v4639 = vand.u32 %v496, 4294901760
    %4640 = vmatpush.msra.mxu0 %v4639
    %v4641 = vand.u32 %v495, 4294901760
    %4642 = vmatpush.msra.mxu0 %v4641
    %v4643 = vand.u32 %v494, 4294901760
    %4644 = vmatpush.msra.mxu0 %v4643
    %v4645 = vand.u32 %v314, 4294901760
    %4646 = vmatmul.f32.gmra.mxu0 %v4645
    %v4647 = vpop.f32.mrf.mxu0
    %v4648 = vadd.f32 %v4611, %v4647
    %4649 = vdwg.mxu0
    %v4650 = vand.u32 %v525, 4294901760
    %4651 = vmatpush.msra.mxu0 %v4650
    %v4652 = vand.u32 %v524, 4294901760
    %4653 = vmatpush.msra.mxu0 %v4652
    %v4654 = vand.u32 %v523, 4294901760
    %4655 = vmatpush.msra.mxu0 %v4654
    %v4656 = vand.u32 %v522, 4294901760
    %4657 = vmatpush.msra.mxu0 %v4656
    %v4658 = vand.u32 %v521, 4294901760
    %4659 = vmatpush.msra.mxu0 %v4658
    %v4660 = vand.u32 %v520, 4294901760
    %4661 = vmatpush.msra.mxu0 %v4660
    %v4662 = vand.u32 %v519, 4294901760
    %4663 = vmatpush.msra.mxu0 %v4662
    %v4664 = vand.u32 %v518, 4294901760
    %4665 = vmatpush.msra.mxu0 %v4664
    %v4666 = vand.u32 %v517, 4294901760
    %4667 = vmatpush.msra.mxu0 %v4666
    %v4668 = vand.u32 %v516, 4294901760
    %4669 = vmatpush.msra.mxu0 %v4668
    %v4670 = vand.u32 %v515, 4294901760
    %4671 = vmatpush.msra.mxu0 %v4670
    %v4672 = vand.u32 %v514, 4294901760
    %4673 = vmatpush.msra.mxu0 %v4672
    %v4674 = vand.u32 %v513, 4294901760
    %4675 = vmatpush.msra.mxu0 %v4674
    %v4676 = vand.u32 %v512, 4294901760
    %4677 = vmatpush.msra.mxu0 %v4676
    %v4678 = vand.u32 %v511, 4294901760
    %4679 = vmatpush.msra.mxu0 %v4678
    %v4680 = vand.u32 %v510, 4294901760
    %4681 = vmatpush.msra.mxu0 %v4680
    %v4682 = vand.u32 %v315, 4294901760
    %v4683 = vsub.f32 %v315, %v4682
    %v4684 = vand.u32 %v4683, 4294901760
    %v4685 = vsub.f32 %v4683, %v4684
    %v4686 = vand.u32 %v4685, 4294901760
    %4687 = vmatmul.f32.gmra.mxu0 %v4686
    %v4688 = vpop.f32.mrf.mxu0
    %v4689 = vadd.f32 %v4648, %v4688
    %4690 = vdwg.mxu0
    %v4691 = vand.u32 %v525, 4294901760
    %v4692 = vsub.f32 %v525, %v4691
    %v4693 = vand.u32 %v4692, 4294901760
    %v4694 = vsub.f32 %v4692, %v4693
    %v4695 = vand.u32 %v4694, 4294901760
    %4696 = vmatpush.msra.mxu0 %v4695
    %v4697 = vand.u32 %v524, 4294901760
    %v4698 = vsub.f32 %v524, %v4697
    %v4699 = vand.u32 %v4698, 4294901760
    %v4700 = vsub.f32 %v4698, %v4699
    %v4701 = vand.u32 %v4700, 4294901760
    %4702 = vmatpush.msra.mxu0 %v4701
    %v4703 = vand.u32 %v523, 4294901760
    %v4704 = vsub.f32 %v523, %v4703
    %v4705 = vand.u32 %v4704, 4294901760
    %v4706 = vsub.f32 %v4704, %v4705
    %v4707 = vand.u32 %v4706, 4294901760
    %4708 = vmatpush.msra.mxu0 %v4707
    %v4709 = vand.u32 %v522, 4294901760
    %v4710 = vsub.f32 %v522, %v4709
    %v4711 = vand.u32 %v4710, 4294901760
    %v4712 = vsub.f32 %v4710, %v4711
    %v4713 = vand.u32 %v4712, 4294901760
    %4714 = vmatpush.msra.mxu0 %v4713
    %v4715 = vand.u32 %v521, 4294901760
    %v4716 = vsub.f32 %v521, %v4715
    %v4717 = vand.u32 %v4716, 4294901760
    %v4718 = vsub.f32 %v4716, %v4717
    %v4719 = vand.u32 %v4718, 4294901760
    %4720 = vmatpush.msra.mxu0 %v4719
    %v4721 = vand.u32 %v520, 4294901760
    %v4722 = vsub.f32 %v520, %v4721
    %v4723 = vand.u32 %v4722, 4294901760
    %v4724 = vsub.f32 %v4722, %v4723
    %v4725 = vand.u32 %v4724, 4294901760
    %4726 = vmatpush.msra.mxu0 %v4725
    %v4727 = vand.u32 %v519, 4294901760
    %v4728 = vsub.f32 %v519, %v4727
    %v4729 = vand.u32 %v4728, 4294901760
    %v4730 = vsub.f32 %v4728, %v4729
    %v4731 = vand.u32 %v4730, 4294901760
    %4732 = vmatpush.msra.mxu0 %v4731
    %v4733 = vand.u32 %v518, 4294901760
    %v4734 = vsub.f32 %v518, %v4733
    %v4735 = vand.u32 %v4734, 4294901760
    %v4736 = vsub.f32 %v4734, %v4735
    %v4737 = vand.u32 %v4736, 4294901760
    %4738 = vmatpush.msra.mxu0 %v4737
    %v4739 = vand.u32 %v517, 4294901760
    %v4740 = vsub.f32 %v517, %v4739
    %v4741 = vand.u32 %v4740, 4294901760
    %v4742 = vsub.f32 %v4740, %v4741
    %v4743 = vand.u32 %v4742, 4294901760
    %4744 = vmatpush.msra.mxu0 %v4743
    %v4745 = vand.u32 %v516, 4294901760
    %v4746 = vsub.f32 %v516, %v4745
    %v4747 = vand.u32 %v4746, 4294901760
    %v4748 = vsub.f32 %v4746, %v4747
    %v4749 = vand.u32 %v4748, 4294901760
    %4750 = vmatpush.msra.mxu0 %v4749
    %v4751 = vand.u32 %v515, 4294901760
    %v4752 = vsub.f32 %v515, %v4751
    %v4753 = vand.u32 %v4752, 4294901760
    %v4754 = vsub.f32 %v4752, %v4753
    %v4755 = vand.u32 %v4754, 4294901760
    %4756 = vmatpush.msra.mxu0 %v4755
    %v4757 = vand.u32 %v514, 4294901760
    %v4758 = vsub.f32 %v514, %v4757
    %v4759 = vand.u32 %v4758, 4294901760
    %v4760 = vsub.f32 %v4758, %v4759
    %v4761 = vand.u32 %v4760, 4294901760
    %4762 = vmatpush.msra.mxu0 %v4761
    %v4763 = vand.u32 %v513, 4294901760
    %v4764 = vsub.f32 %v513, %v4763
    %v4765 = vand.u32 %v4764, 4294901760
    %v4766 = vsub.f32 %v4764, %v4765
    %v4767 = vand.u32 %v4766, 4294901760
    %4768 = vmatpush.msra.mxu0 %v4767
    %v4769 = vand.u32 %v512, 4294901760
    %v4770 = vsub.f32 %v512, %v4769
    %v4771 = vand.u32 %v4770, 4294901760
    %v4772 = vsub.f32 %v4770, %v4771
    %v4773 = vand.u32 %v4772, 4294901760
    %4774 = vmatpush.msra.mxu0 %v4773
    %v4775 = vand.u32 %v511, 4294901760
    %v4776 = vsub.f32 %v511, %v4775
    %v4777 = vand.u32 %v4776, 4294901760
    %v4778 = vsub.f32 %v4776, %v4777
    %v4779 = vand.u32 %v4778, 4294901760
    %4780 = vmatpush.msra.mxu0 %v4779
    %v4781 = vand.u32 %v510, 4294901760
    %v4782 = vsub.f32 %v510, %v4781
    %v4783 = vand.u32 %v4782, 4294901760
    %v4784 = vsub.f32 %v4782, %v4783
    %v4785 = vand.u32 %v4784, 4294901760
    %4786 = vmatpush.msra.mxu0 %v4785
    %v4787 = vand.u32 %v315, 4294901760
    %4788 = vmatmul.f32.gmra.mxu0 %v4787
    %v4789 = vpop.f32.mrf.mxu0
    %v4790 = vadd.f32 %v4689, %v4789
    %4791 = vdwg.mxu0
    %v4792 = vand.u32 %v525, 4294901760
    %v4793 = vsub.f32 %v525, %v4792
    %4794 = vmatpush.msra.mxu0 %v4793
    %v4795 = vand.u32 %v524, 4294901760
    %v4796 = vsub.f32 %v524, %v4795
    %4797 = vmatpush.msra.mxu0 %v4796
    %v4798 = vand.u32 %v523, 4294901760
    %v4799 = vsub.f32 %v523, %v4798
    %4800 = vmatpush.msra.mxu0 %v4799
    %v4801 = vand.u32 %v522, 4294901760
    %v4802 = vsub.f32 %v522, %v4801
    %4803 = vmatpush.msra.mxu0 %v4802
    %v4804 = vand.u32 %v521, 4294901760
    %v4805 = vsub.f32 %v521, %v4804
    %4806 = vmatpush.msra.mxu0 %v4805
    %v4807 = vand.u32 %v520, 4294901760
    %v4808 = vsub.f32 %v520, %v4807
    %4809 = vmatpush.msra.mxu0 %v4808
    %v4810 = vand.u32 %v519, 4294901760
    %v4811 = vsub.f32 %v519, %v4810
    %4812 = vmatpush.msra.mxu0 %v4811
    %v4813 = vand.u32 %v518, 4294901760
    %v4814 = vsub.f32 %v518, %v4813
    %4815 = vmatpush.msra.mxu0 %v4814
    %v4816 = vand.u32 %v517, 4294901760
    %v4817 = vsub.f32 %v517, %v4816
    %4818 = vmatpush.msra.mxu0 %v4817
    %v4819 = vand.u32 %v516, 4294901760
    %v4820 = vsub.f32 %v516, %v4819
    %4821 = vmatpush.msra.mxu0 %v4820
    %v4822 = vand.u32 %v515, 4294901760
    %v4823 = vsub.f32 %v515, %v4822
    %4824 = vmatpush.msra.mxu0 %v4823
    %v4825 = vand.u32 %v514, 4294901760
    %v4826 = vsub.f32 %v514, %v4825
    %4827 = vmatpush.msra.mxu0 %v4826
    %v4828 = vand.u32 %v513, 4294901760
    %v4829 = vsub.f32 %v513, %v4828
    %4830 = vmatpush.msra.mxu0 %v4829
    %v4831 = vand.u32 %v512, 4294901760
    %v4832 = vsub.f32 %v512, %v4831
    %4833 = vmatpush.msra.mxu0 %v4832
    %v4834 = vand.u32 %v511, 4294901760
    %v4835 = vsub.f32 %v511, %v4834
    %4836 = vmatpush.msra.mxu0 %v4835
    %v4837 = vand.u32 %v510, 4294901760
    %v4838 = vsub.f32 %v510, %v4837
    %4839 = vmatpush.msra.mxu0 %v4838
    %v4840 = vand.u32 %v315, 4294901760
    %v4841 = vsub.f32 %v315, %v4840
    %4842 = vmatmul.f32.gmra.mxu0 %v4841
    %v4843 = vpop.f32.mrf.mxu0
    %v4844 = vadd.f32 %v4790, %v4843
    %4845 = vdwg.mxu0
    %v4846 = vand.u32 %v525, 4294901760
    %4847 = vmatpush.msra.mxu0 %v4846
    %v4848 = vand.u32 %v524, 4294901760
    %4849 = vmatpush.msra.mxu0 %v4848
    %v4850 = vand.u32 %v523, 4294901760
    %4851 = vmatpush.msra.mxu0 %v4850
    %v4852 = vand.u32 %v522, 4294901760
    %4853 = vmatpush.msra.mxu0 %v4852
    %v4854 = vand.u32 %v521, 4294901760
    %4855 = vmatpush.msra.mxu0 %v4854
    %v4856 = vand.u32 %v520, 4294901760
    %4857 = vmatpush.msra.mxu0 %v4856
    %v4858 = vand.u32 %v519, 4294901760
    %4859 = vmatpush.msra.mxu0 %v4858
    %v4860 = vand.u32 %v518, 4294901760
    %4861 = vmatpush.msra.mxu0 %v4860
    %v4862 = vand.u32 %v517, 4294901760
    %4863 = vmatpush.msra.mxu0 %v4862
    %v4864 = vand.u32 %v516, 4294901760
    %4865 = vmatpush.msra.mxu0 %v4864
    %v4866 = vand.u32 %v515, 4294901760
    %4867 = vmatpush.msra.mxu0 %v4866
    %v4868 = vand.u32 %v514, 4294901760
    %4869 = vmatpush.msra.mxu0 %v4868
    %v4870 = vand.u32 %v513, 4294901760
    %4871 = vmatpush.msra.mxu0 %v4870
    %v4872 = vand.u32 %v512, 4294901760
    %4873 = vmatpush.msra.mxu0 %v4872
    %v4874 = vand.u32 %v511, 4294901760
    %4875 = vmatpush.msra.mxu0 %v4874
    %v4876 = vand.u32 %v510, 4294901760
    %4877 = vmatpush.msra.mxu0 %v4876
    %v4878 = vand.u32 %v315, 4294901760
    %v4879 = vsub.f32 %v315, %v4878
    %v4880 = vand.u32 %v4879, 4294901760
    %4881 = vmatmul.f32.gmra.mxu0 %v4880
    %v4882 = vpop.f32.mrf.mxu0
    %v4883 = vadd.f32 %v4844, %v4882
    %4884 = vdwg.mxu0
    %v4885 = vand.u32 %v525, 4294901760
    %v4886 = vsub.f32 %v525, %v4885
    %v4887 = vand.u32 %v4886, 4294901760
    %4888 = vmatpush.msra.mxu0 %v4887
    %v4889 = vand.u32 %v524, 4294901760
    %v4890 = vsub.f32 %v524, %v4889
    %v4891 = vand.u32 %v4890, 4294901760
    %4892 = vmatpush.msra.mxu0 %v4891
    %v4893 = vand.u32 %v523, 4294901760
    %v4894 = vsub.f32 %v523, %v4893
    %v4895 = vand.u32 %v4894, 4294901760
    %4896 = vmatpush.msra.mxu0 %v4895
    %v4897 = vand.u32 %v522, 4294901760
    %v4898 = vsub.f32 %v522, %v4897
    %v4899 = vand.u32 %v4898, 4294901760
    %4900 = vmatpush.msra.mxu0 %v4899
    %v4901 = vand.u32 %v521, 4294901760
    %v4902 = vsub.f32 %v521, %v4901
    %v4903 = vand.u32 %v4902, 4294901760
    %4904 = vmatpush.msra.mxu0 %v4903
    %v4905 = vand.u32 %v520, 4294901760
    %v4906 = vsub.f32 %v520, %v4905
    %v4907 = vand.u32 %v4906, 4294901760
    %4908 = vmatpush.msra.mxu0 %v4907
    %v4909 = vand.u32 %v519, 4294901760
    %v4910 = vsub.f32 %v519, %v4909
    %v4911 = vand.u32 %v4910, 4294901760
    %4912 = vmatpush.msra.mxu0 %v4911
    %v4913 = vand.u32 %v518, 4294901760
    %v4914 = vsub.f32 %v518, %v4913
    %v4915 = vand.u32 %v4914, 4294901760
    %4916 = vmatpush.msra.mxu0 %v4915
    %v4917 = vand.u32 %v517, 4294901760
    %v4918 = vsub.f32 %v517, %v4917
    %v4919 = vand.u32 %v4918, 4294901760
    %4920 = vmatpush.msra.mxu0 %v4919
    %v4921 = vand.u32 %v516, 4294901760
    %v4922 = vsub.f32 %v516, %v4921
    %v4923 = vand.u32 %v4922, 4294901760
    %4924 = vmatpush.msra.mxu0 %v4923
    %v4925 = vand.u32 %v515, 4294901760
    %v4926 = vsub.f32 %v515, %v4925
    %v4927 = vand.u32 %v4926, 4294901760
    %4928 = vmatpush.msra.mxu0 %v4927
    %v4929 = vand.u32 %v514, 4294901760
    %v4930 = vsub.f32 %v514, %v4929
    %v4931 = vand.u32 %v4930, 4294901760
    %4932 = vmatpush.msra.mxu0 %v4931
    %v4933 = vand.u32 %v513, 4294901760
    %v4934 = vsub.f32 %v513, %v4933
    %v4935 = vand.u32 %v4934, 4294901760
    %4936 = vmatpush.msra.mxu0 %v4935
    %v4937 = vand.u32 %v512, 4294901760
    %v4938 = vsub.f32 %v512, %v4937
    %v4939 = vand.u32 %v4938, 4294901760
    %4940 = vmatpush.msra.mxu0 %v4939
    %v4941 = vand.u32 %v511, 4294901760
    %v4942 = vsub.f32 %v511, %v4941
    %v4943 = vand.u32 %v4942, 4294901760
    %4944 = vmatpush.msra.mxu0 %v4943
    %v4945 = vand.u32 %v510, 4294901760
    %v4946 = vsub.f32 %v510, %v4945
    %v4947 = vand.u32 %v4946, 4294901760
    %4948 = vmatpush.msra.mxu0 %v4947
    %v4949 = vand.u32 %v315, 4294901760
    %4950 = vmatmul.f32.gmra.mxu0 %v4949
    %v4951 = vpop.f32.mrf.mxu0
    %v4952 = vadd.f32 %v4883, %v4951
    %4953 = vdwg.mxu0
    %v4954 = vand.u32 %v525, 4294901760
    %4955 = vmatpush.msra.mxu0 %v4954
    %v4956 = vand.u32 %v524, 4294901760
    %4957 = vmatpush.msra.mxu0 %v4956
    %v4958 = vand.u32 %v523, 4294901760
    %4959 = vmatpush.msra.mxu0 %v4958
    %v4960 = vand.u32 %v522, 4294901760
    %4961 = vmatpush.msra.mxu0 %v4960
    %v4962 = vand.u32 %v521, 4294901760
    %4963 = vmatpush.msra.mxu0 %v4962
    %v4964 = vand.u32 %v520, 4294901760
    %4965 = vmatpush.msra.mxu0 %v4964
    %v4966 = vand.u32 %v519, 4294901760
    %4967 = vmatpush.msra.mxu0 %v4966
    %v4968 = vand.u32 %v518, 4294901760
    %4969 = vmatpush.msra.mxu0 %v4968
    %v4970 = vand.u32 %v517, 4294901760
    %4971 = vmatpush.msra.mxu0 %v4970
    %v4972 = vand.u32 %v516, 4294901760
    %4973 = vmatpush.msra.mxu0 %v4972
    %v4974 = vand.u32 %v515, 4294901760
    %4975 = vmatpush.msra.mxu0 %v4974
    %v4976 = vand.u32 %v514, 4294901760
    %4977 = vmatpush.msra.mxu0 %v4976
    %v4978 = vand.u32 %v513, 4294901760
    %4979 = vmatpush.msra.mxu0 %v4978
    %v4980 = vand.u32 %v512, 4294901760
    %4981 = vmatpush.msra.mxu0 %v4980
    %v4982 = vand.u32 %v511, 4294901760
    %4983 = vmatpush.msra.mxu0 %v4982
    %v4984 = vand.u32 %v510, 4294901760
    %4985 = vmatpush.msra.mxu0 %v4984
    %v4986 = vand.u32 %v315, 4294901760
    %4987 = vmatmul.f32.gmra.mxu0 %v4986
    %v4988 = vpop.f32.mrf.mxu0
    %v4989 = vadd.f32 %v4952, %v4988
    %4990 = vdwg.mxu0
    %v4991 = vand.u32 %v541, 4294901760
    %4992 = vmatpush.msra.mxu0 %v4991
    %v4993 = vand.u32 %v540, 4294901760
    %4994 = vmatpush.msra.mxu0 %v4993
    %v4995 = vand.u32 %v539, 4294901760
    %4996 = vmatpush.msra.mxu0 %v4995
    %v4997 = vand.u32 %v538, 4294901760
    %4998 = vmatpush.msra.mxu0 %v4997
    %v4999 = vand.u32 %v537, 4294901760
    %5000 = vmatpush.msra.mxu0 %v4999
    %v5001 = vand.u32 %v536, 4294901760
    %5002 = vmatpush.msra.mxu0 %v5001
    %v5003 = vand.u32 %v535, 4294901760
    %5004 = vmatpush.msra.mxu0 %v5003
    %v5005 = vand.u32 %v534, 4294901760
    %5006 = vmatpush.msra.mxu0 %v5005
    %v5007 = vand.u32 %v533, 4294901760
    %5008 = vmatpush.msra.mxu0 %v5007
    %v5009 = vand.u32 %v532, 4294901760
    %5010 = vmatpush.msra.mxu0 %v5009
    %v5011 = vand.u32 %v531, 4294901760
    %5012 = vmatpush.msra.mxu0 %v5011
    %v5013 = vand.u32 %v530, 4294901760
    %5014 = vmatpush.msra.mxu0 %v5013
    %v5015 = vand.u32 %v529, 4294901760
    %5016 = vmatpush.msra.mxu0 %v5015
    %v5017 = vand.u32 %v528, 4294901760
    %5018 = vmatpush.msra.mxu0 %v5017
    %v5019 = vand.u32 %v527, 4294901760
    %5020 = vmatpush.msra.mxu0 %v5019
    %v5021 = vand.u32 %v526, 4294901760
    %5022 = vmatpush.msra.mxu0 %v5021
    %v5023 = vand.u32 %v316, 4294901760
    %v5024 = vsub.f32 %v316, %v5023
    %v5025 = vand.u32 %v5024, 4294901760
    %v5026 = vsub.f32 %v5024, %v5025
    %v5027 = vand.u32 %v5026, 4294901760
    %5028 = vmatmul.f32.gmra.mxu0 %v5027
    %v5029 = vpop.f32.mrf.mxu0
    %v5030 = vadd.f32 %v4989, %v5029
    %5031 = vdwg.mxu0
    %v5032 = vand.u32 %v541, 4294901760
    %v5033 = vsub.f32 %v541, %v5032
    %v5034 = vand.u32 %v5033, 4294901760
    %v5035 = vsub.f32 %v5033, %v5034
    %v5036 = vand.u32 %v5035, 4294901760
    %5037 = vmatpush.msra.mxu0 %v5036
    %v5038 = vand.u32 %v540, 4294901760
    %v5039 = vsub.f32 %v540, %v5038
    %v5040 = vand.u32 %v5039, 4294901760
    %v5041 = vsub.f32 %v5039, %v5040
    %v5042 = vand.u32 %v5041, 4294901760
    %5043 = vmatpush.msra.mxu0 %v5042
    %v5044 = vand.u32 %v539, 4294901760
    %v5045 = vsub.f32 %v539, %v5044
    %v5046 = vand.u32 %v5045, 4294901760
    %v5047 = vsub.f32 %v5045, %v5046
    %v5048 = vand.u32 %v5047, 4294901760
    %5049 = vmatpush.msra.mxu0 %v5048
    %v5050 = vand.u32 %v538, 4294901760
    %v5051 = vsub.f32 %v538, %v5050
    %v5052 = vand.u32 %v5051, 4294901760
    %v5053 = vsub.f32 %v5051, %v5052
    %v5054 = vand.u32 %v5053, 4294901760
    %5055 = vmatpush.msra.mxu0 %v5054
    %v5056 = vand.u32 %v537, 4294901760
    %v5057 = vsub.f32 %v537, %v5056
    %v5058 = vand.u32 %v5057, 4294901760
    %v5059 = vsub.f32 %v5057, %v5058
    %v5060 = vand.u32 %v5059, 4294901760
    %5061 = vmatpush.msra.mxu0 %v5060
    %v5062 = vand.u32 %v536, 4294901760
    %v5063 = vsub.f32 %v536, %v5062
    %v5064 = vand.u32 %v5063, 4294901760
    %v5065 = vsub.f32 %v5063, %v5064
    %v5066 = vand.u32 %v5065, 4294901760
    %5067 = vmatpush.msra.mxu0 %v5066
    %v5068 = vand.u32 %v535, 4294901760
    %v5069 = vsub.f32 %v535, %v5068
    %v5070 = vand.u32 %v5069, 4294901760
    %v5071 = vsub.f32 %v5069, %v5070
    %v5072 = vand.u32 %v5071, 4294901760
    %5073 = vmatpush.msra.mxu0 %v5072
    %v5074 = vand.u32 %v534, 4294901760
    %v5075 = vsub.f32 %v534, %v5074
    %v5076 = vand.u32 %v5075, 4294901760
    %v5077 = vsub.f32 %v5075, %v5076
    %v5078 = vand.u32 %v5077, 4294901760
    %5079 = vmatpush.msra.mxu0 %v5078
    %v5080 = vand.u32 %v533, 4294901760
    %v5081 = vsub.f32 %v533, %v5080
    %v5082 = vand.u32 %v5081, 4294901760
    %v5083 = vsub.f32 %v5081, %v5082
    %v5084 = vand.u32 %v5083, 4294901760
    %5085 = vmatpush.msra.mxu0 %v5084
    %v5086 = vand.u32 %v532, 4294901760
    %v5087 = vsub.f32 %v532, %v5086
    %v5088 = vand.u32 %v5087, 4294901760
    %v5089 = vsub.f32 %v5087, %v5088
    %v5090 = vand.u32 %v5089, 4294901760
    %5091 = vmatpush.msra.mxu0 %v5090
    %v5092 = vand.u32 %v531, 4294901760
    %v5093 = vsub.f32 %v531, %v5092
    %v5094 = vand.u32 %v5093, 4294901760
    %v5095 = vsub.f32 %v5093, %v5094
    %v5096 = vand.u32 %v5095, 4294901760
    %5097 = vmatpush.msra.mxu0 %v5096
    %v5098 = vand.u32 %v530, 4294901760
    %v5099 = vsub.f32 %v530, %v5098
    %v5100 = vand.u32 %v5099, 4294901760
    %v5101 = vsub.f32 %v5099, %v5100
    %v5102 = vand.u32 %v5101, 4294901760
    %5103 = vmatpush.msra.mxu0 %v5102
    %v5104 = vand.u32 %v529, 4294901760
    %v5105 = vsub.f32 %v529, %v5104
    %v5106 = vand.u32 %v5105, 4294901760
    %v5107 = vsub.f32 %v5105, %v5106
    %v5108 = vand.u32 %v5107, 4294901760
    %5109 = vmatpush.msra.mxu0 %v5108
    %v5110 = vand.u32 %v528, 4294901760
    %v5111 = vsub.f32 %v528, %v5110
    %v5112 = vand.u32 %v5111, 4294901760
    %v5113 = vsub.f32 %v5111, %v5112
    %v5114 = vand.u32 %v5113, 4294901760
    %5115 = vmatpush.msra.mxu0 %v5114
    %v5116 = vand.u32 %v527, 4294901760
    %v5117 = vsub.f32 %v527, %v5116
    %v5118 = vand.u32 %v5117, 4294901760
    %v5119 = vsub.f32 %v5117, %v5118
    %v5120 = vand.u32 %v5119, 4294901760
    %5121 = vmatpush.msra.mxu0 %v5120
    %v5122 = vand.u32 %v526, 4294901760
    %v5123 = vsub.f32 %v526, %v5122
    %v5124 = vand.u32 %v5123, 4294901760
    %v5125 = vsub.f32 %v5123, %v5124
    %v5126 = vand.u32 %v5125, 4294901760
    %5127 = vmatpush.msra.mxu0 %v5126
    %v5128 = vand.u32 %v316, 4294901760
    %5129 = vmatmul.f32.gmra.mxu0 %v5128
    %v5130 = vpop.f32.mrf.mxu0
    %v5131 = vadd.f32 %v5030, %v5130
    %5132 = vdwg.mxu0
    %v5133 = vand.u32 %v541, 4294901760
    %v5134 = vsub.f32 %v541, %v5133
    %5135 = vmatpush.msra.mxu0 %v5134
    %v5136 = vand.u32 %v540, 4294901760
    %v5137 = vsub.f32 %v540, %v5136
    %5138 = vmatpush.msra.mxu0 %v5137
    %v5139 = vand.u32 %v539, 4294901760
    %v5140 = vsub.f32 %v539, %v5139
    %5141 = vmatpush.msra.mxu0 %v5140
    %v5142 = vand.u32 %v538, 4294901760
    %v5143 = vsub.f32 %v538, %v5142
    %5144 = vmatpush.msra.mxu0 %v5143
    %v5145 = vand.u32 %v537, 4294901760
    %v5146 = vsub.f32 %v537, %v5145
    %5147 = vmatpush.msra.mxu0 %v5146
    %v5148 = vand.u32 %v536, 4294901760
    %v5149 = vsub.f32 %v536, %v5148
    %5150 = vmatpush.msra.mxu0 %v5149
    %v5151 = vand.u32 %v535, 4294901760
    %v5152 = vsub.f32 %v535, %v5151
    %5153 = vmatpush.msra.mxu0 %v5152
    %v5154 = vand.u32 %v534, 4294901760
    %v5155 = vsub.f32 %v534, %v5154
    %5156 = vmatpush.msra.mxu0 %v5155
    %v5157 = vand.u32 %v533, 4294901760
    %v5158 = vsub.f32 %v533, %v5157
    %5159 = vmatpush.msra.mxu0 %v5158
    %v5160 = vand.u32 %v532, 4294901760
    %v5161 = vsub.f32 %v532, %v5160
    %5162 = vmatpush.msra.mxu0 %v5161
    %v5163 = vand.u32 %v531, 4294901760
    %v5164 = vsub.f32 %v531, %v5163
    %5165 = vmatpush.msra.mxu0 %v5164
    %v5166 = vand.u32 %v530, 4294901760
    %v5167 = vsub.f32 %v530, %v5166
    %5168 = vmatpush.msra.mxu0 %v5167
    %v5169 = vand.u32 %v529, 4294901760
    %v5170 = vsub.f32 %v529, %v5169
    %5171 = vmatpush.msra.mxu0 %v5170
    %v5172 = vand.u32 %v528, 4294901760
    %v5173 = vsub.f32 %v528, %v5172
    %5174 = vmatpush.msra.mxu0 %v5173
    %v5175 = vand.u32 %v527, 4294901760
    %v5176 = vsub.f32 %v527, %v5175
    %5177 = vmatpush.msra.mxu0 %v5176
    %v5178 = vand.u32 %v526, 4294901760
    %v5179 = vsub.f32 %v526, %v5178
    %5180 = vmatpush.msra.mxu0 %v5179
    %v5181 = vand.u32 %v316, 4294901760
    %v5182 = vsub.f32 %v316, %v5181
    %5183 = vmatmul.f32.gmra.mxu0 %v5182
    %v5184 = vpop.f32.mrf.mxu0
    %v5185 = vadd.f32 %v5131, %v5184
    %5186 = vdwg.mxu0
    %v5187 = vand.u32 %v541, 4294901760
    %5188 = vmatpush.msra.mxu0 %v5187
    %v5189 = vand.u32 %v540, 4294901760
    %5190 = vmatpush.msra.mxu0 %v5189
    %v5191 = vand.u32 %v539, 4294901760
    %5192 = vmatpush.msra.mxu0 %v5191
    %v5193 = vand.u32 %v538, 4294901760
    %5194 = vmatpush.msra.mxu0 %v5193
    %v5195 = vand.u32 %v537, 4294901760
    %5196 = vmatpush.msra.mxu0 %v5195
    %v5197 = vand.u32 %v536, 4294901760
    %5198 = vmatpush.msra.mxu0 %v5197
    %v5199 = vand.u32 %v535, 4294901760
    %5200 = vmatpush.msra.mxu0 %v5199
    %v5201 = vand.u32 %v534, 4294901760
    %5202 = vmatpush.msra.mxu0 %v5201
    %v5203 = vand.u32 %v533, 4294901760
    %5204 = vmatpush.msra.mxu0 %v5203
    %v5205 = vand.u32 %v532, 4294901760
    %5206 = vmatpush.msra.mxu0 %v5205
    %v5207 = vand.u32 %v531, 4294901760
    %5208 = vmatpush.msra.mxu0 %v5207
    %v5209 = vand.u32 %v530, 4294901760
    %5210 = vmatpush.msra.mxu0 %v5209
    %v5211 = vand.u32 %v529, 4294901760
    %5212 = vmatpush.msra.mxu0 %v5211
    %v5213 = vand.u32 %v528, 4294901760
    %5214 = vmatpush.msra.mxu0 %v5213
    %v5215 = vand.u32 %v527, 4294901760
    %5216 = vmatpush.msra.mxu0 %v5215
    %v5217 = vand.u32 %v526, 4294901760
    %5218 = vmatpush.msra.mxu0 %v5217
    %v5219 = vand.u32 %v316, 4294901760
    %v5220 = vsub.f32 %v316, %v5219
    %v5221 = vand.u32 %v5220, 4294901760
    %5222 = vmatmul.f32.gmra.mxu0 %v5221
    %v5223 = vpop.f32.mrf.mxu0
    %v5224 = vadd.f32 %v5185, %v5223
    %5225 = vdwg.mxu0
    %v5226 = vand.u32 %v541, 4294901760
    %v5227 = vsub.f32 %v541, %v5226
    %v5228 = vand.u32 %v5227, 4294901760
    %5229 = vmatpush.msra.mxu0 %v5228
    %v5230 = vand.u32 %v540, 4294901760
    %v5231 = vsub.f32 %v540, %v5230
    %v5232 = vand.u32 %v5231, 4294901760
    %5233 = vmatpush.msra.mxu0 %v5232
    %v5234 = vand.u32 %v539, 4294901760
    %v5235 = vsub.f32 %v539, %v5234
    %v5236 = vand.u32 %v5235, 4294901760
    %5237 = vmatpush.msra.mxu0 %v5236
    %v5238 = vand.u32 %v538, 4294901760
    %v5239 = vsub.f32 %v538, %v5238
    %v5240 = vand.u32 %v5239, 4294901760
    %5241 = vmatpush.msra.mxu0 %v5240
    %v5242 = vand.u32 %v537, 4294901760
    %v5243 = vsub.f32 %v537, %v5242
    %v5244 = vand.u32 %v5243, 4294901760
    %5245 = vmatpush.msra.mxu0 %v5244
    %v5246 = vand.u32 %v536, 4294901760
    %v5247 = vsub.f32 %v536, %v5246
    %v5248 = vand.u32 %v5247, 4294901760
    %5249 = vmatpush.msra.mxu0 %v5248
    %v5250 = vand.u32 %v535, 4294901760
    %v5251 = vsub.f32 %v535, %v5250
    %v5252 = vand.u32 %v5251, 4294901760
    %5253 = vmatpush.msra.mxu0 %v5252
    %v5254 = vand.u32 %v534, 4294901760
    %v5255 = vsub.f32 %v534, %v5254
    %v5256 = vand.u32 %v5255, 4294901760
    %5257 = vmatpush.msra.mxu0 %v5256
    %v5258 = vand.u32 %v533, 4294901760
    %v5259 = vsub.f32 %v533, %v5258
    %v5260 = vand.u32 %v5259, 4294901760
    %5261 = vmatpush.msra.mxu0 %v5260
    %v5262 = vand.u32 %v532, 4294901760
    %v5263 = vsub.f32 %v532, %v5262
    %v5264 = vand.u32 %v5263, 4294901760
    %5265 = vmatpush.msra.mxu0 %v5264
    %v5266 = vand.u32 %v531, 4294901760
    %v5267 = vsub.f32 %v531, %v5266
    %v5268 = vand.u32 %v5267, 4294901760
    %5269 = vmatpush.msra.mxu0 %v5268
    %v5270 = vand.u32 %v530, 4294901760
    %v5271 = vsub.f32 %v530, %v5270
    %v5272 = vand.u32 %v5271, 4294901760
    %5273 = vmatpush.msra.mxu0 %v5272
    %v5274 = vand.u32 %v529, 4294901760
    %v5275 = vsub.f32 %v529, %v5274
    %v5276 = vand.u32 %v5275, 4294901760
    %5277 = vmatpush.msra.mxu0 %v5276
    %v5278 = vand.u32 %v528, 4294901760
    %v5279 = vsub.f32 %v528, %v5278
    %v5280 = vand.u32 %v5279, 4294901760
    %5281 = vmatpush.msra.mxu0 %v5280
    %v5282 = vand.u32 %v527, 4294901760
    %v5283 = vsub.f32 %v527, %v5282
    %v5284 = vand.u32 %v5283, 4294901760
    %5285 = vmatpush.msra.mxu0 %v5284
    %v5286 = vand.u32 %v526, 4294901760
    %v5287 = vsub.f32 %v526, %v5286
    %v5288 = vand.u32 %v5287, 4294901760
    %5289 = vmatpush.msra.mxu0 %v5288
    %v5290 = vand.u32 %v316, 4294901760
    %5291 = vmatmul.f32.gmra.mxu0 %v5290
    %v5292 = vpop.f32.mrf.mxu0
    %v5293 = vadd.f32 %v5224, %v5292
    %5294 = vdwg.mxu0
    %v5295 = vand.u32 %v541, 4294901760
    %5296 = vmatpush.msra.mxu0 %v5295
    %v5297 = vand.u32 %v540, 4294901760
    %5298 = vmatpush.msra.mxu0 %v5297
    %v5299 = vand.u32 %v539, 4294901760
    %5300 = vmatpush.msra.mxu0 %v5299
    %v5301 = vand.u32 %v538, 4294901760
    %5302 = vmatpush.msra.mxu0 %v5301
    %v5303 = vand.u32 %v537, 4294901760
    %5304 = vmatpush.msra.mxu0 %v5303
    %v5305 = vand.u32 %v536, 4294901760
    %5306 = vmatpush.msra.mxu0 %v5305
    %v5307 = vand.u32 %v535, 4294901760
    %5308 = vmatpush.msra.mxu0 %v5307
    %v5309 = vand.u32 %v534, 4294901760
    %5310 = vmatpush.msra.mxu0 %v5309
    %v5311 = vand.u32 %v533, 4294901760
    %5312 = vmatpush.msra.mxu0 %v5311
    %v5313 = vand.u32 %v532, 4294901760
    %5314 = vmatpush.msra.mxu0 %v5313
    %v5315 = vand.u32 %v531, 4294901760
    %5316 = vmatpush.msra.mxu0 %v5315
    %v5317 = vand.u32 %v530, 4294901760
    %5318 = vmatpush.msra.mxu0 %v5317
    %v5319 = vand.u32 %v529, 4294901760
    %5320 = vmatpush.msra.mxu0 %v5319
    %v5321 = vand.u32 %v528, 4294901760
    %5322 = vmatpush.msra.mxu0 %v5321
    %v5323 = vand.u32 %v527, 4294901760
    %5324 = vmatpush.msra.mxu0 %v5323
    %v5325 = vand.u32 %v526, 4294901760
    %5326 = vmatpush.msra.mxu0 %v5325
    %v5327 = vand.u32 %v316, 4294901760
    %5328 = vmatmul.f32.gmra.mxu0 %v5327
    %v5329 = vpop.f32.mrf.mxu0
    %v5330 = vadd.f32 %v5293, %v5329
    %5331 = vdwg.mxu0
    %v5332 = vand.u32 %v557, 4294901760
    %5333 = vmatpush.msra.mxu0 %v5332
    %v5334 = vand.u32 %v556, 4294901760
    %5335 = vmatpush.msra.mxu0 %v5334
    %v5336 = vand.u32 %v555, 4294901760
    %5337 = vmatpush.msra.mxu0 %v5336
    %v5338 = vand.u32 %v554, 4294901760
    %5339 = vmatpush.msra.mxu0 %v5338
    %v5340 = vand.u32 %v553, 4294901760
    %5341 = vmatpush.msra.mxu0 %v5340
    %v5342 = vand.u32 %v552, 4294901760
    %5343 = vmatpush.msra.mxu0 %v5342
    %v5344 = vand.u32 %v551, 4294901760
    %5345 = vmatpush.msra.mxu0 %v5344
    %v5346 = vand.u32 %v550, 4294901760
    %5347 = vmatpush.msra.mxu0 %v5346
    %v5348 = vand.u32 %v549, 4294901760
    %5349 = vmatpush.msra.mxu0 %v5348
    %v5350 = vand.u32 %v548, 4294901760
    %5351 = vmatpush.msra.mxu0 %v5350
    %v5352 = vand.u32 %v547, 4294901760
    %5353 = vmatpush.msra.mxu0 %v5352
    %v5354 = vand.u32 %v546, 4294901760
    %5355 = vmatpush.msra.mxu0 %v5354
    %v5356 = vand.u32 %v545, 4294901760
    %5357 = vmatpush.msra.mxu0 %v5356
    %v5358 = vand.u32 %v544, 4294901760
    %5359 = vmatpush.msra.mxu0 %v5358
    %v5360 = vand.u32 %v543, 4294901760
    %5361 = vmatpush.msra.mxu0 %v5360
    %v5362 = vand.u32 %v542, 4294901760
    %5363 = vmatpush.msra.mxu0 %v5362
    %v5364 = vand.u32 %v317, 4294901760
    %v5365 = vsub.f32 %v317, %v5364
    %v5366 = vand.u32 %v5365, 4294901760
    %v5367 = vsub.f32 %v5365, %v5366
    %v5368 = vand.u32 %v5367, 4294901760
    %5369 = vmatmul.f32.gmra.mxu0 %v5368
    %v5370 = vpop.f32.mrf.mxu0
    %v5371 = vadd.f32 %v5330, %v5370
    %5372 = vdwg.mxu0
    %v5373 = vand.u32 %v557, 4294901760
    %v5374 = vsub.f32 %v557, %v5373
    %v5375 = vand.u32 %v5374, 4294901760
    %v5376 = vsub.f32 %v5374, %v5375
    %v5377 = vand.u32 %v5376, 4294901760
    %5378 = vmatpush.msra.mxu0 %v5377
    %v5379 = vand.u32 %v556, 4294901760
    %v5380 = vsub.f32 %v556, %v5379
    %v5381 = vand.u32 %v5380, 4294901760
    %v5382 = vsub.f32 %v5380, %v5381
    %v5383 = vand.u32 %v5382, 4294901760
    %5384 = vmatpush.msra.mxu0 %v5383
    %v5385 = vand.u32 %v555, 4294901760
    %v5386 = vsub.f32 %v555, %v5385
    %v5387 = vand.u32 %v5386, 4294901760
    %v5388 = vsub.f32 %v5386, %v5387
    %v5389 = vand.u32 %v5388, 4294901760
    %5390 = vmatpush.msra.mxu0 %v5389
    %v5391 = vand.u32 %v554, 4294901760
    %v5392 = vsub.f32 %v554, %v5391
    %v5393 = vand.u32 %v5392, 4294901760
    %v5394 = vsub.f32 %v5392, %v5393
    %v5395 = vand.u32 %v5394, 4294901760
    %5396 = vmatpush.msra.mxu0 %v5395
    %v5397 = vand.u32 %v553, 4294901760
    %v5398 = vsub.f32 %v553, %v5397
    %v5399 = vand.u32 %v5398, 4294901760
    %v5400 = vsub.f32 %v5398, %v5399
    %v5401 = vand.u32 %v5400, 4294901760
    %5402 = vmatpush.msra.mxu0 %v5401
    %v5403 = vand.u32 %v552, 4294901760
    %v5404 = vsub.f32 %v552, %v5403
    %v5405 = vand.u32 %v5404, 4294901760
    %v5406 = vsub.f32 %v5404, %v5405
    %v5407 = vand.u32 %v5406, 4294901760
    %5408 = vmatpush.msra.mxu0 %v5407
    %v5409 = vand.u32 %v551, 4294901760
    %v5410 = vsub.f32 %v551, %v5409
    %v5411 = vand.u32 %v5410, 4294901760
    %v5412 = vsub.f32 %v5410, %v5411
    %v5413 = vand.u32 %v5412, 4294901760
    %5414 = vmatpush.msra.mxu0 %v5413
    %v5415 = vand.u32 %v550, 4294901760
    %v5416 = vsub.f32 %v550, %v5415
    %v5417 = vand.u32 %v5416, 4294901760
    %v5418 = vsub.f32 %v5416, %v5417
    %v5419 = vand.u32 %v5418, 4294901760
    %5420 = vmatpush.msra.mxu0 %v5419
    %v5421 = vand.u32 %v549, 4294901760
    %v5422 = vsub.f32 %v549, %v5421
    %v5423 = vand.u32 %v5422, 4294901760
    %v5424 = vsub.f32 %v5422, %v5423
    %v5425 = vand.u32 %v5424, 4294901760
    %5426 = vmatpush.msra.mxu0 %v5425
    %v5427 = vand.u32 %v548, 4294901760
    %v5428 = vsub.f32 %v548, %v5427
    %v5429 = vand.u32 %v5428, 4294901760
    %v5430 = vsub.f32 %v5428, %v5429
    %v5431 = vand.u32 %v5430, 4294901760
    %5432 = vmatpush.msra.mxu0 %v5431
    %v5433 = vand.u32 %v547, 4294901760
    %v5434 = vsub.f32 %v547, %v5433
    %v5435 = vand.u32 %v5434, 4294901760
    %v5436 = vsub.f32 %v5434, %v5435
    %v5437 = vand.u32 %v5436, 4294901760
    %5438 = vmatpush.msra.mxu0 %v5437
    %v5439 = vand.u32 %v546, 4294901760
    %v5440 = vsub.f32 %v546, %v5439
    %v5441 = vand.u32 %v5440, 4294901760
    %v5442 = vsub.f32 %v5440, %v5441
    %v5443 = vand.u32 %v5442, 4294901760
    %5444 = vmatpush.msra.mxu0 %v5443
    %v5445 = vand.u32 %v545, 4294901760
    %v5446 = vsub.f32 %v545, %v5445
    %v5447 = vand.u32 %v5446, 4294901760
    %v5448 = vsub.f32 %v5446, %v5447
    %v5449 = vand.u32 %v5448, 4294901760
    %5450 = vmatpush.msra.mxu0 %v5449
    %v5451 = vand.u32 %v544, 4294901760
    %v5452 = vsub.f32 %v544, %v5451
    %v5453 = vand.u32 %v5452, 4294901760
    %v5454 = vsub.f32 %v5452, %v5453
    %v5455 = vand.u32 %v5454, 4294901760
    %5456 = vmatpush.msra.mxu0 %v5455
    %v5457 = vand.u32 %v543, 4294901760
    %v5458 = vsub.f32 %v543, %v5457
    %v5459 = vand.u32 %v5458, 4294901760
    %v5460 = vsub.f32 %v5458, %v5459
    %v5461 = vand.u32 %v5460, 4294901760
    %5462 = vmatpush.msra.mxu0 %v5461
    %v5463 = vand.u32 %v542, 4294901760
    %v5464 = vsub.f32 %v542, %v5463
    %v5465 = vand.u32 %v5464, 4294901760
    %v5466 = vsub.f32 %v5464, %v5465
    %v5467 = vand.u32 %v5466, 4294901760
    %5468 = vmatpush.msra.mxu0 %v5467
    %v5469 = vand.u32 %v317, 4294901760
    %5470 = vmatmul.f32.gmra.mxu0 %v5469
    %v5471 = vpop.f32.mrf.mxu0
    %v5472 = vadd.f32 %v5371, %v5471
    %5473 = vdwg.mxu0
    %v5474 = vand.u32 %v557, 4294901760
    %v5475 = vsub.f32 %v557, %v5474
    %5476 = vmatpush.msra.mxu0 %v5475
    %v5477 = vand.u32 %v556, 4294901760
    %v5478 = vsub.f32 %v556, %v5477
    %5479 = vmatpush.msra.mxu0 %v5478
    %v5480 = vand.u32 %v555, 4294901760
    %v5481 = vsub.f32 %v555, %v5480
    %5482 = vmatpush.msra.mxu0 %v5481
    %v5483 = vand.u32 %v554, 4294901760
    %v5484 = vsub.f32 %v554, %v5483
    %5485 = vmatpush.msra.mxu0 %v5484
    %v5486 = vand.u32 %v553, 4294901760
    %v5487 = vsub.f32 %v553, %v5486
    %5488 = vmatpush.msra.mxu0 %v5487
    %v5489 = vand.u32 %v552, 4294901760
    %v5490 = vsub.f32 %v552, %v5489
    %5491 = vmatpush.msra.mxu0 %v5490
    %v5492 = vand.u32 %v551, 4294901760
    %v5493 = vsub.f32 %v551, %v5492
    %5494 = vmatpush.msra.mxu0 %v5493
    %v5495 = vand.u32 %v550, 4294901760
    %v5496 = vsub.f32 %v550, %v5495
    %5497 = vmatpush.msra.mxu0 %v5496
    %v5498 = vand.u32 %v549, 4294901760
    %v5499 = vsub.f32 %v549, %v5498
    %5500 = vmatpush.msra.mxu0 %v5499
    %v5501 = vand.u32 %v548, 4294901760
    %v5502 = vsub.f32 %v548, %v5501
    %5503 = vmatpush.msra.mxu0 %v5502
    %v5504 = vand.u32 %v547, 4294901760
    %v5505 = vsub.f32 %v547, %v5504
    %5506 = vmatpush.msra.mxu0 %v5505
    %v5507 = vand.u32 %v546, 4294901760
    %v5508 = vsub.f32 %v546, %v5507
    %5509 = vmatpush.msra.mxu0 %v5508
    %v5510 = vand.u32 %v545, 4294901760
    %v5511 = vsub.f32 %v545, %v5510
    %5512 = vmatpush.msra.mxu0 %v5511
    %v5513 = vand.u32 %v544, 4294901760
    %v5514 = vsub.f32 %v544, %v5513
    %5515 = vmatpush.msra.mxu0 %v5514
    %v5516 = vand.u32 %v543, 4294901760
    %v5517 = vsub.f32 %v543, %v5516
    %5518 = vmatpush.msra.mxu0 %v5517
    %v5519 = vand.u32 %v542, 4294901760
    %v5520 = vsub.f32 %v542, %v5519
    %5521 = vmatpush.msra.mxu0 %v5520
    %v5522 = vand.u32 %v317, 4294901760
    %v5523 = vsub.f32 %v317, %v5522
    %5524 = vmatmul.f32.gmra.mxu0 %v5523
    %v5525 = vpop.f32.mrf.mxu0
    %v5526 = vadd.f32 %v5472, %v5525
    %5527 = vdwg.mxu0
    %v5528 = vand.u32 %v557, 4294901760
    %5529 = vmatpush.msra.mxu0 %v5528
    %v5530 = vand.u32 %v556, 4294901760
    %5531 = vmatpush.msra.mxu0 %v5530
    %v5532 = vand.u32 %v555, 4294901760
    %5533 = vmatpush.msra.mxu0 %v5532
    %v5534 = vand.u32 %v554, 4294901760
    %5535 = vmatpush.msra.mxu0 %v5534
    %v5536 = vand.u32 %v553, 4294901760
    %5537 = vmatpush.msra.mxu0 %v5536
    %v5538 = vand.u32 %v552, 4294901760
    %5539 = vmatpush.msra.mxu0 %v5538
    %v5540 = vand.u32 %v551, 4294901760
    %5541 = vmatpush.msra.mxu0 %v5540
    %v5542 = vand.u32 %v550, 4294901760
    %5543 = vmatpush.msra.mxu0 %v5542
    %v5544 = vand.u32 %v549, 4294901760
    %5545 = vmatpush.msra.mxu0 %v5544
    %v5546 = vand.u32 %v548, 4294901760
    %5547 = vmatpush.msra.mxu0 %v5546
    %v5548 = vand.u32 %v547, 4294901760
    %5549 = vmatpush.msra.mxu0 %v5548
    %v5550 = vand.u32 %v546, 4294901760
    %5551 = vmatpush.msra.mxu0 %v5550
    %v5552 = vand.u32 %v545, 4294901760
    %5553 = vmatpush.msra.mxu0 %v5552
    %v5554 = vand.u32 %v544, 4294901760
    %5555 = vmatpush.msra.mxu0 %v5554
    %v5556 = vand.u32 %v543, 4294901760
    %5557 = vmatpush.msra.mxu0 %v5556
    %v5558 = vand.u32 %v542, 4294901760
    %5559 = vmatpush.msra.mxu0 %v5558
    %v5560 = vand.u32 %v317, 4294901760
    %v5561 = vsub.f32 %v317, %v5560
    %v5562 = vand.u32 %v5561, 4294901760
    %5563 = vmatmul.f32.gmra.mxu0 %v5562
    %v5564 = vpop.f32.mrf.mxu0
    %v5565 = vadd.f32 %v5526, %v5564
    %5566 = vdwg.mxu0
    %v5567 = vand.u32 %v557, 4294901760
    %v5568 = vsub.f32 %v557, %v5567
    %v5569 = vand.u32 %v5568, 4294901760
    %5570 = vmatpush.msra.mxu0 %v5569
    %v5571 = vand.u32 %v556, 4294901760
    %v5572 = vsub.f32 %v556, %v5571
    %v5573 = vand.u32 %v5572, 4294901760
    %5574 = vmatpush.msra.mxu0 %v5573
    %v5575 = vand.u32 %v555, 4294901760
    %v5576 = vsub.f32 %v555, %v5575
    %v5577 = vand.u32 %v5576, 4294901760
    %5578 = vmatpush.msra.mxu0 %v5577
    %v5579 = vand.u32 %v554, 4294901760
    %v5580 = vsub.f32 %v554, %v5579
    %v5581 = vand.u32 %v5580, 4294901760
    %5582 = vmatpush.msra.mxu0 %v5581
    %v5583 = vand.u32 %v553, 4294901760
    %v5584 = vsub.f32 %v553, %v5583
    %v5585 = vand.u32 %v5584, 4294901760
    %5586 = vmatpush.msra.mxu0 %v5585
    %v5587 = vand.u32 %v552, 4294901760
    %v5588 = vsub.f32 %v552, %v5587
    %v5589 = vand.u32 %v5588, 4294901760
    %5590 = vmatpush.msra.mxu0 %v5589
    %v5591 = vand.u32 %v551, 4294901760
    %v5592 = vsub.f32 %v551, %v5591
    %v5593 = vand.u32 %v5592, 4294901760
    %5594 = vmatpush.msra.mxu0 %v5593
    %v5595 = vand.u32 %v550, 4294901760
    %v5596 = vsub.f32 %v550, %v5595
    %v5597 = vand.u32 %v5596, 4294901760
    %5598 = vmatpush.msra.mxu0 %v5597
    %v5599 = vand.u32 %v549, 4294901760
    %v5600 = vsub.f32 %v549, %v5599
    %v5601 = vand.u32 %v5600, 4294901760
    %5602 = vmatpush.msra.mxu0 %v5601
    %v5603 = vand.u32 %v548, 4294901760
    %v5604 = vsub.f32 %v548, %v5603
    %v5605 = vand.u32 %v5604, 4294901760
    %5606 = vmatpush.msra.mxu0 %v5605
    %v5607 = vand.u32 %v547, 4294901760
    %v5608 = vsub.f32 %v547, %v5607
    %v5609 = vand.u32 %v5608, 4294901760
    %5610 = vmatpush.msra.mxu0 %v5609
    %v5611 = vand.u32 %v546, 4294901760
    %v5612 = vsub.f32 %v546, %v5611
    %v5613 = vand.u32 %v5612, 4294901760
    %5614 = vmatpush.msra.mxu0 %v5613
    %v5615 = vand.u32 %v545, 4294901760
    %v5616 = vsub.f32 %v545, %v5615
    %v5617 = vand.u32 %v5616, 4294901760
    %5618 = vmatpush.msra.mxu0 %v5617
    %v5619 = vand.u32 %v544, 4294901760
    %v5620 = vsub.f32 %v544, %v5619
    %v5621 = vand.u32 %v5620, 4294901760
    %5622 = vmatpush.msra.mxu0 %v5621
    %v5623 = vand.u32 %v543, 4294901760
    %v5624 = vsub.f32 %v543, %v5623
    %v5625 = vand.u32 %v5624, 4294901760
    %5626 = vmatpush.msra.mxu0 %v5625
    %v5627 = vand.u32 %v542, 4294901760
    %v5628 = vsub.f32 %v542, %v5627
    %v5629 = vand.u32 %v5628, 4294901760
    %5630 = vmatpush.msra.mxu0 %v5629
    %v5631 = vand.u32 %v317, 4294901760
    %5632 = vmatmul.f32.gmra.mxu0 %v5631
    %v5633 = vpop.f32.mrf.mxu0
    %v5634 = vadd.f32 %v5565, %v5633
    %5635 = vdwg.mxu0
    %v5636 = vand.u32 %v557, 4294901760
    %5637 = vmatpush.msra.mxu0 %v5636
    %v5638 = vand.u32 %v556, 4294901760
    %5639 = vmatpush.msra.mxu0 %v5638
    %v5640 = vand.u32 %v555, 4294901760
    %5641 = vmatpush.msra.mxu0 %v5640
    %v5642 = vand.u32 %v554, 4294901760
    %5643 = vmatpush.msra.mxu0 %v5642
    %v5644 = vand.u32 %v553, 4294901760
    %5645 = vmatpush.msra.mxu0 %v5644
    %v5646 = vand.u32 %v552, 4294901760
    %5647 = vmatpush.msra.mxu0 %v5646
    %v5648 = vand.u32 %v551, 4294901760
    %5649 = vmatpush.msra.mxu0 %v5648
    %v5650 = vand.u32 %v550, 4294901760
    %5651 = vmatpush.msra.mxu0 %v5650
    %v5652 = vand.u32 %v549, 4294901760
    %5653 = vmatpush.msra.mxu0 %v5652
    %v5654 = vand.u32 %v548, 4294901760
    %5655 = vmatpush.msra.mxu0 %v5654
    %v5656 = vand.u32 %v547, 4294901760
    %5657 = vmatpush.msra.mxu0 %v5656
    %v5658 = vand.u32 %v546, 4294901760
    %5659 = vmatpush.msra.mxu0 %v5658
    %v5660 = vand.u32 %v545, 4294901760
    %5661 = vmatpush.msra.mxu0 %v5660
    %v5662 = vand.u32 %v544, 4294901760
    %5663 = vmatpush.msra.mxu0 %v5662
    %v5664 = vand.u32 %v543, 4294901760
    %5665 = vmatpush.msra.mxu0 %v5664
    %v5666 = vand.u32 %v542, 4294901760
    %5667 = vmatpush.msra.mxu0 %v5666
    %v5668 = vand.u32 %v317, 4294901760
    %5669 = vmatmul.f32.gmra.mxu0 %v5668
    %v5670 = vpop.f32.mrf.mxu0
    %v5671 = vadd.f32 %v5634, %v5670
    %5672 = vdwg.mxu0
    %v5673 = vadd.f32 %v219, %v5671
    %vm5674 = vcmask 80896
    %5675 = vst.msk [vmem:[#allocation2] sm:$0xff] %vm5674, %v5673
    // Predicated region
    $region18: #{_item_100k_forward.1} parent=1 // pred_check
      _
    $region19: #{_item_100k_forward.1} parent=1 // pred_check_branch
      %5677 = sbr.rel (0) target = $region21
    $region20: #{_item_100k_forward.1} parent=1 // pred_region
      %5679 = vsyncadd [#allocation3], 0
      %s5681 = sshll.u32 [#allocation2], 4
      %s5682 = int_to_ptr.vmem [resolvable:$true] %s5681
      %s5683 = sshll.u32 %s4, 4
      %s5684 = int_to_ptr.hbm [resolvable:$true] %s5683
      %5686 = dma.vmem_to_hbm [thread:$0]  %s5682, 128, %s5684, [#allocation3]
    $region21: #{_item_100k_forward.1} parent=1 // pred_fallthru
      _
    // Predicated region
    $region22: #{_item_100k_forward.1} parent=1 // pred_check
      _
    $region23: #{_item_100k_forward.1} parent=1 // pred_check_branch
      %5688 = sbr.rel (0) target = $region25
    $region24: #{_item_100k_forward.1} parent=1 // pred_region
      %5690 = dma.done [#allocation3], 128
    $region25: #{_item_100k_forward.1} parent=1 // pred_fallthru
      _
    %5691 = vsyncpa [#allocation3], 1

</llo_original>
